<compile_context>
chip_gen: v5e
topology: v5e:2x2
jax: 0.10.0
libtpu: 0.0.40
codegen_flags: <defaults>
</compile_context>

<pallas_src>
import jax
import jax.numpy as jnp
from jax.experimental import pallas as pl
from jax.experimental.pallas import tpu as pltpu


def _round_up(x, m):
    return ((x + m - 1) // m) * m


def _encoder_kernel(x_ref,
                    w0_ref, b0_ref, w1_ref, b1_ref,
                    w2_ref, b2_ref, w3_ref, b3_ref,
                    wh_ref, bh_ref,
                    out_ref):
    # x tile: (TM, F) f32 straight from HBM; cast to bf16 in-kernel (avoids a
    # separate XLA pad/cast pass over x).  All matmuls hit the MXU, f32 accumulate.
    h = x_ref[...].astype(jnp.bfloat16)
    for w_ref, b_ref in ((w0_ref, b0_ref), (w1_ref, b1_ref),
                         (w2_ref, b2_ref), (w3_ref, b3_ref)):
        a = jnp.dot(h, w_ref[...], preferred_element_type=jnp.float32)
        a = jnp.maximum(a + b_ref[...], 0.0)          # bias + ReLU in f32 (VPU)
        h = a.astype(jnp.bfloat16)                    # back to bf16 for next MXU pass
    # Fused mu/log_var head: one matmul into a lane-dense (128-lane) padded output.
    out = jnp.dot(h, wh_ref[...], preferred_element_type=jnp.float32) + bh_ref[...]
    out_ref[...] = out.astype(out_ref.dtype)


def pack_params(params, latent_dim):
    """Cast weights to bf16 (native MXU rate); fuse the two head Linears into one
    lane-dense (fan_in, >=128) zero-padded weight + bias.  Biases stay f32."""
    packed = {}
    for i in range(4):
        packed[f"w{i}"] = params[f"w{i}"].astype(jnp.bfloat16)
        packed[f"b{i}"] = params[f"b{i}"].astype(jnp.float32)

    fan_in = params["wmu"].shape[0]
    head_pad = _round_up(max(2 * latent_dim, 128), 128)
    wh = jnp.zeros((fan_in, head_pad), jnp.bfloat16)
    wh = wh.at[:, :latent_dim].set(params["wmu"].astype(jnp.bfloat16))
    wh = wh.at[:, latent_dim:2 * latent_dim].set(params["wvar"].astype(jnp.bfloat16))
    bh = jnp.zeros((1, head_pad), jnp.float32)
    bh = bh.at[:, :latent_dim].set(params["bmu"].astype(jnp.float32))
    bh = bh.at[:, latent_dim:2 * latent_dim].set(params["bvar"].astype(jnp.float32))
    packed["wh"] = wh
    packed["bh"] = bh
    return packed


def _choose_tm(batch, tm_max=1024):
    """Largest 8-aligned row tile giving an even number (>=2) of batch tiles:
    big tiles amortize the ~0.35us fixed per-grid-step overhead, while an even
    tile count >=2 lets v7x's two TensorCores split the batch axis."""
    n_b = max(2, pl.cdiv(batch, tm_max))
    if n_b % 2:
        n_b += 1
    return max(8, _round_up(pl.cdiv(batch, n_b), 8))


def encoder_forward(x, packed, latent_dim, *, tm=None):
    """x: (B, in_channels) f32.  packed: output of pack_params.  Returns (mu, log_var)."""
    B, F = x.shape
    head_pad = packed["wh"].shape[1]
    if tm is None:
        tm = _choose_tm(B)
    n_b = pl.cdiv(B, tm)   # ragged last tile: Pallas clips the input/output DMAs

    flat = [x,
            packed["w0"], packed["b0"], packed["w1"], packed["b1"],
            packed["w2"], packed["b2"], packed["w3"], packed["b3"],
            packed["wh"], packed["bh"]]
    out_shape = jax.ShapeDtypeStruct((B, head_pad), jnp.float32)

    def call(dim_semantics, single_buffer_weights):
        def const_spec(a):
            # Weights/biases: full-array block, resident in VMEM across the grid
            # (constant index_map -> no re-DMA; Buffered(1) avoids a dead 2nd buffer).
            kw = {}
            if single_buffer_weights:
                kw["pipeline_mode"] = pl.Buffered(1)
            return pl.BlockSpec(a.shape, lambda i: (0,) * a.ndim,
                                memory_space=pltpu.VMEM, **kw)

        in_specs = [pl.BlockSpec((tm, F), lambda i: (i, 0), memory_space=pltpu.VMEM)]
        in_specs += [const_spec(a) for a in flat[1:]]
        out_specs = pl.BlockSpec((tm, head_pad), lambda i: (i, 0),
                                 memory_space=pltpu.VMEM)
        return pl.pallas_call(
            _encoder_kernel,
            grid=(n_b,),
            out_shape=out_shape,
            in_specs=in_specs,
            out_specs=out_specs,
            compiler_params=pltpu.CompilerParams(
                dimension_semantics=dim_semantics),
        )(*flat)

    # Preferred config first (real 2-TC split on v7x + single-buffered resident
    # weights); fall back if the installed jax/libtpu rejects either knob.
    configs = (((pltpu.CORE_PARALLEL,), True),
               ((pltpu.PARALLEL,), True),
               ((pltpu.PARALLEL,), False))
    out, last_err = None, None
    for sem, single in configs:
        try:
            out = call(sem, single)
            break
        except Exception as e:   # lowering/compile error -> try a safer config
            last_err = e
    if out is None:
        raise last_err

    mu = out[:, :latent_dim]
    log_var = out[:, latent_dim:2 * latent_dim]
    return mu, log_var


def init_params(key, in_channels, n_channels, latent_dim):
    """Deterministic synthetic parameters (Linear weights stored as (in, out))."""
    params = {}
    dims = [in_channels] + list(n_channels)
    keys = jax.random.split(key, len(n_channels) + 2)
    for i in range(len(n_channels)):
        fan_in, fan_out = dims[i], dims[i + 1]
        scale = 1.0 / jnp.sqrt(fan_in)
        params[f"w{i}"] = jax.random.uniform(keys[i], (fan_in, fan_out),
                                             jnp.float32, -scale, scale)
        params[f"b{i}"] = jax.random.uniform(jax.random.fold_in(keys[i], 1),
                                             (1, fan_out), jnp.float32, -scale, scale)
    fan_in = n_channels[-1]
    scale = 1.0 / jnp.sqrt(fan_in)
    params["wmu"] = jax.random.uniform(keys[-2], (fan_in, latent_dim),
                                       jnp.float32, -scale, scale)
    params["bmu"] = jax.random.uniform(jax.random.fold_in(keys[-2], 1),
                                       (1, latent_dim), jnp.float32, -scale, scale)
    params["wvar"] = jax.random.uniform(keys[-1], (fan_in, latent_dim),
                                        jnp.float32, -scale, scale)
    params["bvar"] = jax.random.uniform(jax.random.fold_in(keys[-1], 1),
                                        (1, latent_dim), jnp.float32, -scale, scale)
    return params


def encoder_ref(x, params):
    """Pure-JAX reference using the same bf16-operand / f32-accumulate numerics."""
    h = x
    for i in range(4):
        h = jnp.maximum(
            jnp.dot(h.astype(jnp.bfloat16), params[f"w{i}"].astype(jnp.bfloat16),
                    preferred_element_type=jnp.float32) + params[f"b{i}"], 0.0)
    hb = h.astype(jnp.bfloat16)
    mu = jnp.dot(hb, params["wmu"].astype(jnp.bfloat16),
                 preferred_element_type=jnp.float32) + params["bmu"]
    log_var = jnp.dot(hb, params["wvar"].astype(jnp.bfloat16),
                      preferred_element_type=jnp.float32) + params["bvar"]
    return mu, log_var


if __name__ == "__main__":
    key = jax.random.PRNGKey(0)
    k_param, k_x = jax.random.split(key)

    batch = 300                        # not a tile multiple -> exercises ragged last tile
    in_channels = 96                   # not a 128-lane multiple -> exercises odd-K matmul
    n_channels = [256, 256, 256, 256]  # module default hidden widths
    latent_dim = 16

    params = init_params(k_param, in_channels, n_channels, latent_dim)
    packed = pack_params(params, latent_dim)
    x = jax.random.normal(k_x, (batch, in_channels), jnp.float32)

    mu, log_var = encoder_forward(x, packed, latent_dim)
    mu, log_var = jax.block_until_ready((mu, log_var))

    mu_ref, lv_ref = encoder_ref(x, params)
    assert mu.shape == (batch, latent_dim) and log_var.shape == (batch, latent_dim)
    assert jnp.allclose(mu, mu_ref, atol=1e-2, rtol=1e-2)
    assert jnp.allclose(log_var, lv_ref, atol=1e-2, rtol=1e-2)

    print("KERNEL_OK")
</pallas_src>

<mosaic_0001>
module attributes {stable_mosaic.version = 11 : i64} {
  func.func @_encoder_kernel(%arg0: i32, %arg1: memref<152x96xf32, #tpu.memory_space<vmem>>, %arg2: memref<96x256xbf16, #tpu.memory_space<vmem>>, %arg3: memref<1x256xf32, #tpu.memory_space<vmem>>, %arg4: memref<256x256xbf16, #tpu.memory_space<vmem>>, %arg5: memref<1x256xf32, #tpu.memory_space<vmem>>, %arg6: memref<256x256xbf16, #tpu.memory_space<vmem>>, %arg7: memref<1x256xf32, #tpu.memory_space<vmem>>, %arg8: memref<256x256xbf16, #tpu.memory_space<vmem>>, %arg9: memref<1x256xf32, #tpu.memory_space<vmem>>, %arg10: memref<256x128xbf16, #tpu.memory_space<vmem>>, %arg11: memref<1x128xf32, #tpu.memory_space<vmem>>, %arg12: memref<152x128xf32, #tpu.memory_space<vmem>>) attributes {dimension_semantics = [#tpu.dimension_semantics<core_parallel>], iteration_bounds = array<i64: 2>, scalar_prefetch = 0 : i64, scratch_operands = 0 : i64, tpu.core_type = #tpu.core_type<tc>, window_params = [{transform_indices = @transform_0, window_bounds = array<i64: 152, 96>}, {pipeline_mode = #tpu.pipeline_mode<synchronous>, transform_indices = @transform_1, window_bounds = array<i64: 96, 256>}, {pipeline_mode = #tpu.pipeline_mode<synchronous>, transform_indices = @transform_2, window_bounds = array<i64: 1, 256>}, {pipeline_mode = #tpu.pipeline_mode<synchronous>, transform_indices = @transform_3, window_bounds = array<i64: 256, 256>}, {pipeline_mode = #tpu.pipeline_mode<synchronous>, transform_indices = @transform_4, window_bounds = array<i64: 1, 256>}, {pipeline_mode = #tpu.pipeline_mode<synchronous>, transform_indices = @transform_5, window_bounds = array<i64: 256, 256>}, {pipeline_mode = #tpu.pipeline_mode<synchronous>, transform_indices = @transform_6, window_bounds = array<i64: 1, 256>}, {pipeline_mode = #tpu.pipeline_mode<synchronous>, transform_indices = @transform_7, window_bounds = array<i64: 256, 256>}, {pipeline_mode = #tpu.pipeline_mode<synchronous>, transform_indices = @transform_8, window_bounds = array<i64: 1, 256>}, {pipeline_mode = #tpu.pipeline_mode<synchronous>, transform_indices = @transform_9, window_bounds = array<i64: 256, 128>}, {pipeline_mode = #tpu.pipeline_mode<synchronous>, transform_indices = @transform_10, window_bounds = array<i64: 1, 128>}, {transform_indices = @transform_11, window_bounds = array<i64: 152, 128>}]} {
    %c0 = arith.constant 0 : index
    %c0_0 = arith.constant 0 : index
    %0 = vector.load %arg1[%c0, %c0_0] : memref<152x96xf32, #tpu.memory_space<vmem>>, vector<152x96xf32>
    %1 = arith.truncf %0 : vector<152x96xf32> to vector<152x96xbf16>
    %c0_1 = arith.constant 0 : index
    %c0_2 = arith.constant 0 : index
    %2 = vector.load %arg2[%c0_1, %c0_2] : memref<96x256xbf16, #tpu.memory_space<vmem>>, vector<96x256xbf16>
    %cst = arith.constant dense<0.000000e+00> : vector<152x256xf32>
    %3 = tpu.matmul %1, %2, %cst {dimension_numbers = #tpu.dot_dimension_numbers<[1], [0], [0], [1], [0, 0, 1, 1], [], []>} : vector<152x96xbf16>, vector<96x256xbf16>, vector<152x256xf32> -> vector<152x256xf32>
    %c0_3 = arith.constant 0 : index
    %c0_4 = arith.constant 0 : index
    %4 = vector.load %arg3[%c0_3, %c0_4] : memref<1x256xf32, #tpu.memory_space<vmem>>, vector<1x256xf32>
    %5 = vector.broadcast %4 : vector<1x256xf32> to vector<152x256xf32>
    %6 = arith.addf %3, %5 : vector<152x256xf32>
    %cst_5 = arith.constant 0.000000e+00 : f32
    %7 = vector.broadcast %cst_5 : f32 to vector<152x256xf32>
    %8 = arith.maximumf %6, %7 : vector<152x256xf32>
    %9 = arith.truncf %8 : vector<152x256xf32> to vector<152x256xbf16>
    %c0_6 = arith.constant 0 : index
    %c0_7 = arith.constant 0 : index
    %10 = vector.load %arg4[%c0_6, %c0_7] : memref<256x256xbf16, #tpu.memory_space<vmem>>, vector<256x256xbf16>
    %cst_8 = arith.constant dense<0.000000e+00> : vector<152x256xf32>
    %11 = tpu.matmul %9, %10, %cst_8 {dimension_numbers = #tpu.dot_dimension_numbers<[1], [0], [0], [1], [0, 0, 1, 1], [], []>} : vector<152x256xbf16>, vector<256x256xbf16>, vector<152x256xf32> -> vector<152x256xf32>
    %c0_9 = arith.constant 0 : index
    %c0_10 = arith.constant 0 : index
    %12 = vector.load %arg5[%c0_9, %c0_10] : memref<1x256xf32, #tpu.memory_space<vmem>>, vector<1x256xf32>
    %13 = vector.broadcast %12 : vector<1x256xf32> to vector<152x256xf32>
    %14 = arith.addf %11, %13 : vector<152x256xf32>
    %cst_11 = arith.constant 0.000000e+00 : f32
    %15 = vector.broadcast %cst_11 : f32 to vector<152x256xf32>
    %16 = arith.maximumf %14, %15 : vector<152x256xf32>
    %17 = arith.truncf %16 : vector<152x256xf32> to vector<152x256xbf16>
    %c0_12 = arith.constant 0 : index
    %c0_13 = arith.constant 0 : index
    %18 = vector.load %arg6[%c0_12, %c0_13] : memref<256x256xbf16, #tpu.memory_space<vmem>>, vector<256x256xbf16>
    %cst_14 = arith.constant dense<0.000000e+00> : vector<152x256xf32>
    %19 = tpu.matmul %17, %18, %cst_14 {dimension_numbers = #tpu.dot_dimension_numbers<[1], [0], [0], [1], [0, 0, 1, 1], [], []>} : vector<152x256xbf16>, vector<256x256xbf16>, vector<152x256xf32> -> vector<152x256xf32>
    %c0_15 = arith.constant 0 : index
    %c0_16 = arith.constant 0 : index
    %20 = vector.load %arg7[%c0_15, %c0_16] : memref<1x256xf32, #tpu.memory_space<vmem>>, vector<1x256xf32>
    %21 = vector.broadcast %20 : vector<1x256xf32> to vector<152x256xf32>
    %22 = arith.addf %19, %21 : vector<152x256xf32>
    %cst_17 = arith.constant 0.000000e+00 : f32
    %23 = vector.broadcast %cst_17 : f32 to vector<152x256xf32>
    %24 = arith.maximumf %22, %23 : vector<152x256xf32>
    %25 = arith.truncf %24 : vector<152x256xf32> to vector<152x256xbf16>
    %c0_18 = arith.constant 0 : index
    %c0_19 = arith.constant 0 : index
    %26 = vector.load %arg8[%c0_18, %c0_19] : memref<256x256xbf16, #tpu.memory_space<vmem>>, vector<256x256xbf16>
    %cst_20 = arith.constant dense<0.000000e+00> : vector<152x256xf32>
    %27 = tpu.matmul %25, %26, %cst_20 {dimension_numbers = #tpu.dot_dimension_numbers<[1], [0], [0], [1], [0, 0, 1, 1], [], []>} : vector<152x256xbf16>, vector<256x256xbf16>, vector<152x256xf32> -> vector<152x256xf32>
    %c0_21 = arith.constant 0 : index
    %c0_22 = arith.constant 0 : index
    %28 = vector.load %arg9[%c0_21, %c0_22] : memref<1x256xf32, #tpu.memory_space<vmem>>, vector<1x256xf32>
    %29 = vector.broadcast %28 : vector<1x256xf32> to vector<152x256xf32>
    %30 = arith.addf %27, %29 : vector<152x256xf32>
    %cst_23 = arith.constant 0.000000e+00 : f32
    %31 = vector.broadcast %cst_23 : f32 to vector<152x256xf32>
    %32 = arith.maximumf %30, %31 : vector<152x256xf32>
    %33 = arith.truncf %32 : vector<152x256xf32> to vector<152x256xbf16>
    %c0_24 = arith.constant 0 : index
    %c0_25 = arith.constant 0 : index
    %34 = vector.load %arg10[%c0_24, %c0_25] : memref<256x128xbf16, #tpu.memory_space<vmem>>, vector<256x128xbf16>
    %cst_26 = arith.constant dense<0.000000e+00> : vector<152x128xf32>
    %35 = tpu.matmul %33, %34, %cst_26 {dimension_numbers = #tpu.dot_dimension_numbers<[1], [0], [0], [1], [0, 0, 1, 1], [], []>} : vector<152x256xbf16>, vector<256x128xbf16>, vector<152x128xf32> -> vector<152x128xf32>
    %c0_27 = arith.constant 0 : index
    %c0_28 = arith.constant 0 : index
    %36 = vector.load %arg11[%c0_27, %c0_28] : memref<1x128xf32, #tpu.memory_space<vmem>>, vector<1x128xf32>
    %37 = vector.broadcast %36 : vector<1x128xf32> to vector<152x128xf32>
    %38 = arith.addf %35, %37 : vector<152x128xf32>
    %c0_29 = arith.constant 0 : index
    %c0_30 = arith.constant 0 : index
    %39 = vector.load %arg12[%c0_29, %c0_30] : memref<152x128xf32, #tpu.memory_space<vmem>>, vector<152x128xf32>
    tpu.vector_store %arg12[%c0_29, %c0_30], %38 {strides = array<i32>} : memref<152x128xf32, #tpu.memory_space<vmem>>, vector<152x128xf32>,
    return
  }
  func.func @transform_0(%arg0: i32) -> (i32, i32) {
    %c0_i32 = arith.constant 0 : i32
    %c0_i32_0 = arith.constant 0 : i32
    return %arg0, %c0_i32 : i32, i32
  }
  func.func @transform_1(%arg0: i32) -> (i32, i32) {
    %c0_i32 = arith.constant 0 : i32
    %c0_i32_0 = arith.constant 0 : i32
    %c0_i32_1 = arith.constant 0 : i32
    return %c0_i32, %c0_i32_0 : i32, i32
  }
  func.func @transform_2(%arg0: i32) -> (i32, i32) {
    %c0_i32 = arith.constant 0 : i32
    %c0_i32_0 = arith.constant 0 : i32
    %c0_i32_1 = arith.constant 0 : i32
    return %c0_i32, %c0_i32_0 : i32, i32
  }
  func.func @transform_3(%arg0: i32) -> (i32, i32) {
    %c0_i32 = arith.constant 0 : i32
    %c0_i32_0 = arith.constant 0 : i32
    %c0_i32_1 = arith.constant 0 : i32
    return %c0_i32, %c0_i32_0 : i32, i32
  }
  func.func @transform_4(%arg0: i32) -> (i32, i32) {
    %c0_i32 = arith.constant 0 : i32
    %c0_i32_0 = arith.constant 0 : i32
    %c0_i32_1 = arith.constant 0 : i32
    return %c0_i32, %c0_i32_0 : i32, i32
  }
  func.func @transform_5(%arg0: i32) -> (i32, i32) {
    %c0_i32 = arith.constant 0 : i32
    %c0_i32_0 = arith.constant 0 : i32
    %c0_i32_1 = arith.constant 0 : i32
    return %c0_i32, %c0_i32_0 : i32, i32
  }
  func.func @transform_6(%arg0: i32) -> (i32, i32) {
    %c0_i32 = arith.constant 0 : i32
    %c0_i32_0 = arith.constant 0 : i32
    %c0_i32_1 = arith.constant 0 : i32
    return %c0_i32, %c0_i32_0 : i32, i32
  }
  func.func @transform_7(%arg0: i32) -> (i32, i32) {
    %c0_i32 = arith.constant 0 : i32
    %c0_i32_0 = arith.constant 0 : i32
    %c0_i32_1 = arith.constant 0 : i32
    return %c0_i32, %c0_i32_0 : i32, i32
  }
  func.func @transform_8(%arg0: i32) -> (i32, i32) {
    %c0_i32 = arith.constant 0 : i32
    %c0_i32_0 = arith.constant 0 : i32
    %c0_i32_1 = arith.constant 0 : i32
    return %c0_i32, %c0_i32_0 : i32, i32
  }
  func.func @transform_9(%arg0: i32) -> (i32, i32) {
    %c0_i32 = arith.constant 0 : i32
    %c0_i32_0 = arith.constant 0 : i32
    %c0_i32_1 = arith.constant 0 : i32
    return %c0_i32, %c0_i32_0 : i32, i32
  }
  func.func @transform_10(%arg0: i32) -> (i32, i32) {
    %c0_i32 = arith.constant 0 : i32
    %c0_i32_0 = arith.constant 0 : i32
    %c0_i32_1 = arith.constant 0 : i32
    return %c0_i32, %c0_i32_0 : i32, i32
  }
  func.func @transform_11(%arg0: i32) -> (i32, i32) {
    %c0_i32 = arith.constant 0 : i32
    %c0_i32_0 = arith.constant 0 : i32
    return %arg0, %c0_i32 : i32, i32
  }
}

module attributes {stable_mosaic.version = 11 : i64} {
  func.func @_encoder_kernel(%arg0: i32, %arg1: memref<152x96xf32, #tpu.memory_space<vmem>>, %arg2: memref<96x256xbf16, #tpu.memory_space<vmem>>, %arg3: memref<1x256xf32, #tpu.memory_space<vmem>>, %arg4: memref<256x256xbf16, #tpu.memory_space<vmem>>, %arg5: memref<1x256xf32, #tpu.memory_space<vmem>>, %arg6: memref<256x256xbf16, #tpu.memory_space<vmem>>, %arg7: memref<1x256xf32, #tpu.memory_space<vmem>>, %arg8: memref<256x256xbf16, #tpu.memory_space<vmem>>, %arg9: memref<1x256xf32, #tpu.memory_space<vmem>>, %arg10: memref<256x128xbf16, #tpu.memory_space<vmem>>, %arg11: memref<1x128xf32, #tpu.memory_space<vmem>>, %arg12: memref<152x128xf32, #tpu.memory_space<vmem>>) attributes {dimension_semantics = [#tpu.dimension_semantics<parallel>], iteration_bounds = array<i64: 2>, scalar_prefetch = 0 : i64, scratch_operands = 0 : i64, tpu.core_type = #tpu.core_type<tc>, window_params = [{transform_indices = @transform_0, window_bounds = array<i64: 152, 96>}, {pipeline_mode = #tpu.pipeline_mode<synchronous>, transform_indices = @transform_1, window_bounds = array<i64: 96, 256>}, {pipeline_mode = #tpu.pipeline_mode<synchronous>, transform_indices = @transform_2, window_bounds = array<i64: 1, 256>}, {pipeline_mode = #tpu.pipeline_mode<synchronous>, transform_indices = @transform_3, window_bounds = array<i64: 256, 256>}, {pipeline_mode = #tpu.pipeline_mode<synchronous>, transform_indices = @transform_4, window_bounds = array<i64: 1, 256>}, {pipeline_mode = #tpu.pipeline_mode<synchronous>, transform_indices = @transform_5, window_bounds = array<i64: 256, 256>}, {pipeline_mode = #tpu.pipeline_mode<synchronous>, transform_indices = @transform_6, window_bounds = array<i64: 1, 256>}, {pipeline_mode = #tpu.pipeline_mode<synchronous>, transform_indices = @transform_7, window_bounds = array<i64: 256, 256>}, {pipeline_mode = #tpu.pipeline_mode<synchronous>, transform_indices = @transform_8, window_bounds = array<i64: 1, 256>}, {pipeline_mode = #tpu.pipeline_mode<synchronous>, transform_indices = @transform_9, window_bounds = array<i64: 256, 128>}, {pipeline_mode = #tpu.pipeline_mode<synchronous>, transform_indices = @transform_10, window_bounds = array<i64: 1, 128>}, {transform_indices = @transform_11, window_bounds = array<i64: 152, 128>}]} {
    %c0 = arith.constant 0 : index
    %c0_0 = arith.constant 0 : index
    %0 = vector.load %arg1[%c0, %c0_0] : memref<152x96xf32, #tpu.memory_space<vmem>>, vector<152x96xf32>
    %1 = arith.truncf %0 : vector<152x96xf32> to vector<152x96xbf16>
    %c0_1 = arith.constant 0 : index
    %c0_2 = arith.constant 0 : index
    %2 = vector.load %arg2[%c0_1, %c0_2] : memref<96x256xbf16, #tpu.memory_space<vmem>>, vector<96x256xbf16>
    %cst = arith.constant dense<0.000000e+00> : vector<152x256xf32>
    %3 = tpu.matmul %1, %2, %cst {dimension_numbers = #tpu.dot_dimension_numbers<[1], [0], [0], [1], [0, 0, 1, 1], [], []>} : vector<152x96xbf16>, vector<96x256xbf16>, vector<152x256xf32> -> vector<152x256xf32>
    %c0_3 = arith.constant 0 : index
    %c0_4 = arith.constant 0 : index
    %4 = vector.load %arg3[%c0_3, %c0_4] : memref<1x256xf32, #tpu.memory_space<vmem>>, vector<1x256xf32>
    %5 = vector.broadcast %4 : vector<1x256xf32> to vector<152x256xf32>
    %6 = arith.addf %3, %5 : vector<152x256xf32>
    %cst_5 = arith.constant 0.000000e+00 : f32
    %7 = vector.broadcast %cst_5 : f32 to vector<152x256xf32>
    %8 = arith.maximumf %6, %7 : vector<152x256xf32>
    %9 = arith.truncf %8 : vector<152x256xf32> to vector<152x256xbf16>
    %c0_6 = arith.constant 0 : index
    %c0_7 = arith.constant 0 : index
    %10 = vector.load %arg4[%c0_6, %c0_7] : memref<256x256xbf16, #tpu.memory_space<vmem>>, vector<256x256xbf16>
    %cst_8 = arith.constant dense<0.000000e+00> : vector<152x256xf32>
    %11 = tpu.matmul %9, %10, %cst_8 {dimension_numbers = #tpu.dot_dimension_numbers<[1], [0], [0], [1], [0, 0, 1, 1], [], []>} : vector<152x256xbf16>, vector<256x256xbf16>, vector<152x256xf32> -> vector<152x256xf32>
    %c0_9 = arith.constant 0 : index
    %c0_10 = arith.constant 0 : index
    %12 = vector.load %arg5[%c0_9, %c0_10] : memref<1x256xf32, #tpu.memory_space<vmem>>, vector<1x256xf32>
    %13 = vector.broadcast %12 : vector<1x256xf32> to vector<152x256xf32>
    %14 = arith.addf %11, %13 : vector<152x256xf32>
    %cst_11 = arith.constant 0.000000e+00 : f32
    %15 = vector.broadcast %cst_11 : f32 to vector<152x256xf32>
    %16 = arith.maximumf %14, %15 : vector<152x256xf32>
    %17 = arith.truncf %16 : vector<152x256xf32> to vector<152x256xbf16>
    %c0_12 = arith.constant 0 : index
    %c0_13 = arith.constant 0 : index
    %18 = vector.load %arg6[%c0_12, %c0_13] : memref<256x256xbf16, #tpu.memory_space<vmem>>, vector<256x256xbf16>
    %cst_14 = arith.constant dense<0.000000e+00> : vector<152x256xf32>
    %19 = tpu.matmul %17, %18, %cst_14 {dimension_numbers = #tpu.dot_dimension_numbers<[1], [0], [0], [1], [0, 0, 1, 1], [], []>} : vector<152x256xbf16>, vector<256x256xbf16>, vector<152x256xf32> -> vector<152x256xf32>
    %c0_15 = arith.constant 0 : index
    %c0_16 = arith.constant 0 : index
    %20 = vector.load %arg7[%c0_15, %c0_16] : memref<1x256xf32, #tpu.memory_space<vmem>>, vector<1x256xf32>
    %21 = vector.broadcast %20 : vector<1x256xf32> to vector<152x256xf32>
    %22 = arith.addf %19, %21 : vector<152x256xf32>
    %cst_17 = arith.constant 0.000000e+00 : f32
    %23 = vector.broadcast %cst_17 : f32 to vector<152x256xf32>
    %24 = arith.maximumf %22, %23 : vector<152x256xf32>
    %25 = arith.truncf %24 : vector<152x256xf32> to vector<152x256xbf16>
    %c0_18 = arith.constant 0 : index
    %c0_19 = arith.constant 0 : index
    %26 = vector.load %arg8[%c0_18, %c0_19] : memref<256x256xbf16, #tpu.memory_space<vmem>>, vector<256x256xbf16>
    %cst_20 = arith.constant dense<0.000000e+00> : vector<152x256xf32>
    %27 = tpu.matmul %25, %26, %cst_20 {dimension_numbers = #tpu.dot_dimension_numbers<[1], [0], [0], [1], [0, 0, 1, 1], [], []>} : vector<152x256xbf16>, vector<256x256xbf16>, vector<152x256xf32> -> vector<152x256xf32>
    %c0_21 = arith.constant 0 : index
    %c0_22 = arith.constant 0 : index
    %28 = vector.load %arg9[%c0_21, %c0_22] : memref<1x256xf32, #tpu.memory_space<vmem>>, vector<1x256xf32>
    %29 = vector.broadcast %28 : vector<1x256xf32> to vector<152x256xf32>
    %30 = arith.addf %27, %29 : vector<152x256xf32>
    %cst_23 = arith.constant 0.000000e+00 : f32
    %31 = vector.broadcast %cst_23 : f32 to vector<152x256xf32>
    %32 = arith.maximumf %30, %31 : vector<152x256xf32>
    %33 = arith.truncf %32 : vector<152x256xf32> to vector<152x256xbf16>
    %c0_24 = arith.constant 0 : index
    %c0_25 = arith.constant 0 : index
    %34 = vector.load %arg10[%c0_24, %c0_25] : memref<256x128xbf16, #tpu.memory_space<vmem>>, vector<256x128xbf16>
    %cst_26 = arith.constant dense<0.000000e+00> : vector<152x128xf32>
    %35 = tpu.matmul %33, %34, %cst_26 {dimension_numbers = #tpu.dot_dimension_numbers<[1], [0], [0], [1], [0, 0, 1, 1], [], []>} : vector<152x256xbf16>, vector<256x128xbf16>, vector<152x128xf32> -> vector<152x128xf32>
    %c0_27 = arith.constant 0 : index
    %c0_28 = arith.constant 0 : index
    %36 = vector.load %arg11[%c0_27, %c0_28] : memref<1x128xf32, #tpu.memory_space<vmem>>, vector<1x128xf32>
    %37 = vector.broadcast %36 : vector<1x128xf32> to vector<152x128xf32>
    %38 = arith.addf %35, %37 : vector<152x128xf32>
    %c0_29 = arith.constant 0 : index
    %c0_30 = arith.constant 0 : index
    %39 = vector.load %arg12[%c0_29, %c0_30] : memref<152x128xf32, #tpu.memory_space<vmem>>, vector<152x128xf32>
    tpu.vector_store %arg12[%c0_29, %c0_30], %38 {strides = array<i32>} : memref<152x128xf32, #tpu.memory_space<vmem>>, vector<152x128xf32>,
    return
  }
  func.func @transform_0(%arg0: i32) -> (i32, i32) {
    %c0_i32 = arith.constant 0 : i32
    %c0_i32_0 = arith.constant 0 : i32
    return %arg0, %c0_i32 : i32, i32
  }
  func.func @transform_1(%arg0: i32) -> (i32, i32) {
    %c0_i32 = arith.constant 0 : i32
    %c0_i32_0 = arith.constant 0 : i32
    %c0_i32_1 = arith.constant 0 : i32
    return %c0_i32, %c0_i32_0 : i32, i32
  }
  func.func @transform_2(%arg0: i32) -> (i32, i32) {
    %c0_i32 = arith.constant 0 : i32
    %c0_i32_0 = arith.constant 0 : i32
    %c0_i32_1 = arith.constant 0 : i32
    return %c0_i32, %c0_i32_0 : i32, i32
  }
  func.func @transform_3(%arg0: i32) -> (i32, i32) {
    %c0_i32 = arith.constant 0 : i32
    %c0_i32_0 = arith.constant 0 : i32
    %c0_i32_1 = arith.constant 0 : i32
    return %c0_i32, %c0_i32_0 : i32, i32
  }
  func.func @transform_4(%arg0: i32) -> (i32, i32) {
    %c0_i32 = arith.constant 0 : i32
    %c0_i32_0 = arith.constant 0 : i32
    %c0_i32_1 = arith.constant 0 : i32
    return %c0_i32, %c0_i32_0 : i32, i32
  }
  func.func @transform_5(%arg0: i32) -> (i32, i32) {
    %c0_i32 = arith.constant 0 : i32
    %c0_i32_0 = arith.constant 0 : i32
    %c0_i32_1 = arith.constant 0 : i32
    return %c0_i32, %c0_i32_0 : i32, i32
  }
  func.func @transform_6(%arg0: i32) -> (i32, i32) {
    %c0_i32 = arith.constant 0 : i32
    %c0_i32_0 = arith.constant 0 : i32
    %c0_i32_1 = arith.constant 0 : i32
    return %c0_i32, %c0_i32_0 : i32, i32
  }
  func.func @transform_7(%arg0: i32) -> (i32, i32) {
    %c0_i32 = arith.constant 0 : i32
    %c0_i32_0 = arith.constant 0 : i32
    %c0_i32_1 = arith.constant 0 : i32
    return %c0_i32, %c0_i32_0 : i32, i32
  }
  func.func @transform_8(%arg0: i32) -> (i32, i32) {
    %c0_i32 = arith.constant 0 : i32
    %c0_i32_0 = arith.constant 0 : i32
    %c0_i32_1 = arith.constant 0 : i32
    return %c0_i32, %c0_i32_0 : i32, i32
  }
  func.func @transform_9(%arg0: i32) -> (i32, i32) {
    %c0_i32 = arith.constant 0 : i32
    %c0_i32_0 = arith.constant 0 : i32
    %c0_i32_1 = arith.constant 0 : i32
    return %c0_i32, %c0_i32_0 : i32, i32
  }
  func.func @transform_10(%arg0: i32) -> (i32, i32) {
    %c0_i32 = arith.constant 0 : i32
    %c0_i32_0 = arith.constant 0 : i32
    %c0_i32_1 = arith.constant 0 : i32
    return %c0_i32, %c0_i32_0 : i32, i32
  }
  func.func @transform_11(%arg0: i32) -> (i32, i32) {
    %c0_i32 = arith.constant 0 : i32
    %c0_i32_0 = arith.constant 0 : i32
    return %arg0, %c0_i32 : i32, i32
  }
}

module attributes {stable_mosaic.version = 11 : i64} {
  func.func @_encoder_kernel(%arg0: i32, %arg1: memref<152x96xf32, #tpu.memory_space<vmem>>, %arg2: memref<96x256xbf16, #tpu.memory_space<vmem>>, %arg3: memref<1x256xf32, #tpu.memory_space<vmem>>, %arg4: memref<256x256xbf16, #tpu.memory_space<vmem>>, %arg5: memref<1x256xf32, #tpu.memory_space<vmem>>, %arg6: memref<256x256xbf16, #tpu.memory_space<vmem>>, %arg7: memref<1x256xf32, #tpu.memory_space<vmem>>, %arg8: memref<256x256xbf16, #tpu.memory_space<vmem>>, %arg9: memref<1x256xf32, #tpu.memory_space<vmem>>, %arg10: memref<256x128xbf16, #tpu.memory_space<vmem>>, %arg11: memref<1x128xf32, #tpu.memory_space<vmem>>, %arg12: memref<152x128xf32, #tpu.memory_space<vmem>>) attributes {dimension_semantics = [#tpu.dimension_semantics<parallel>], iteration_bounds = array<i64: 2>, scalar_prefetch = 0 : i64, scratch_operands = 0 : i64, tpu.core_type = #tpu.core_type<tc>, window_params = [{transform_indices = @transform_0, window_bounds = array<i64: 152, 96>}, {pipeline_mode = #tpu.pipeline_mode<synchronous>, transform_indices = @transform_1, window_bounds = array<i64: 96, 256>}, {pipeline_mode = #tpu.pipeline_mode<synchronous>, transform_indices = @transform_2, window_bounds = array<i64: 1, 256>}, {pipeline_mode = #tpu.pipeline_mode<synchronous>, transform_indices = @transform_3, window_bounds = array<i64: 256, 256>}, {pipeline_mode = #tpu.pipeline_mode<synchronous>, transform_indices = @transform_4, window_bounds = array<i64: 1, 256>}, {pipeline_mode = #tpu.pipeline_mode<synchronous>, transform_indices = @transform_5, window_bounds = array<i64: 256, 256>}, {pipeline_mode = #tpu.pipeline_mode<synchronous>, transform_indices = @transform_6, window_bounds = array<i64: 1, 256>}, {pipeline_mode = #tpu.pipeline_mode<synchronous>, transform_indices = @transform_7, window_bounds = array<i64: 256, 256>}, {pipeline_mode = #tpu.pipeline_mode<synchronous>, transform_indices = @transform_8, window_bounds = array<i64: 1, 256>}, {pipeline_mode = #tpu.pipeline_mode<synchronous>, transform_indices = @transform_9, window_bounds = array<i64: 256, 128>}, {pipeline_mode = #tpu.pipeline_mode<synchronous>, transform_indices = @transform_10, window_bounds = array<i64: 1, 128>}, {transform_indices = @transform_11, window_bounds = array<i64: 152, 128>}]} {
    %c0 = arith.constant 0 : index
    %c0_0 = arith.constant 0 : index
    %0 = vector.load %arg1[%c0, %c0_0] : memref<152x96xf32, #tpu.memory_space<vmem>>, vector<152x96xf32>
    %1 = arith.truncf %0 : vector<152x96xf32> to vector<152x96xbf16>
    %c0_1 = arith.constant 0 : index
    %c0_2 = arith.constant 0 : index
    %2 = vector.load %arg2[%c0_1, %c0_2] : memref<96x256xbf16, #tpu.memory_space<vmem>>, vector<96x256xbf16>
    %cst = arith.constant dense<0.000000e+00> : vector<152x256xf32>
    %3 = tpu.matmul %1, %2, %cst {dimension_numbers = #tpu.dot_dimension_numbers<[1], [0], [0], [1], [0, 0, 1, 1], [], []>} : vector<152x96xbf16>, vector<96x256xbf16>, vector<152x256xf32> -> vector<152x256xf32>
    %c0_3 = arith.constant 0 : index
    %c0_4 = arith.constant 0 : index
    %4 = vector.load %arg3[%c0_3, %c0_4] : memref<1x256xf32, #tpu.memory_space<vmem>>, vector<1x256xf32>
    %5 = vector.broadcast %4 : vector<1x256xf32> to vector<152x256xf32>
    %6 = arith.addf %3, %5 : vector<152x256xf32>
    %cst_5 = arith.constant 0.000000e+00 : f32
    %7 = vector.broadcast %cst_5 : f32 to vector<152x256xf32>
    %8 = arith.maximumf %6, %7 : vector<152x256xf32>
    %9 = arith.truncf %8 : vector<152x256xf32> to vector<152x256xbf16>
    %c0_6 = arith.constant 0 : index
    %c0_7 = arith.constant 0 : index
    %10 = vector.load %arg4[%c0_6, %c0_7] : memref<256x256xbf16, #tpu.memory_space<vmem>>, vector<256x256xbf16>
    %cst_8 = arith.constant dense<0.000000e+00> : vector<152x256xf32>
    %11 = tpu.matmul %9, %10, %cst_8 {dimension_numbers = #tpu.dot_dimension_numbers<[1], [0], [0], [1], [0, 0, 1, 1], [], []>} : vector<152x256xbf16>, vector<256x256xbf16>, vector<152x256xf32> -> vector<152x256xf32>
    %c0_9 = arith.constant 0 : index
    %c0_10 = arith.constant 0 : index
    %12 = vector.load %arg5[%c0_9, %c0_10] : memref<1x256xf32, #tpu.memory_space<vmem>>, vector<1x256xf32>
    %13 = vector.broadcast %12 : vector<1x256xf32> to vector<152x256xf32>
    %14 = arith.addf %11, %13 : vector<152x256xf32>
    %cst_11 = arith.constant 0.000000e+00 : f32
    %15 = vector.broadcast %cst_11 : f32 to vector<152x256xf32>
    %16 = arith.maximumf %14, %15 : vector<152x256xf32>
    %17 = arith.truncf %16 : vector<152x256xf32> to vector<152x256xbf16>
    %c0_12 = arith.constant 0 : index
    %c0_13 = arith.constant 0 : index
    %18 = vector.load %arg6[%c0_12, %c0_13] : memref<256x256xbf16, #tpu.memory_space<vmem>>, vector<256x256xbf16>
    %cst_14 = arith.constant dense<0.000000e+00> : vector<152x256xf32>
    %19 = tpu.matmul %17, %18, %cst_14 {dimension_numbers = #tpu.dot_dimension_numbers<[1], [0], [0], [1], [0, 0, 1, 1], [], []>} : vector<152x256xbf16>, vector<256x256xbf16>, vector<152x256xf32> -> vector<152x256xf32>
    %c0_15 = arith.constant 0 : index
    %c0_16 = arith.constant 0 : index
    %20 = vector.load %arg7[%c0_15, %c0_16] : memref<1x256xf32, #tpu.memory_space<vmem>>, vector<1x256xf32>
    %21 = vector.broadcast %20 : vector<1x256xf32> to vector<152x256xf32>
    %22 = arith.addf %19, %21 : vector<152x256xf32>
    %cst_17 = arith.constant 0.000000e+00 : f32
    %23 = vector.broadcast %cst_17 : f32 to vector<152x256xf32>
    %24 = arith.maximumf %22, %23 : vector<152x256xf32>
    %25 = arith.truncf %24 : vector<152x256xf32> to vector<152x256xbf16>
    %c0_18 = arith.constant 0 : index
    %c0_19 = arith.constant 0 : index
    %26 = vector.load %arg8[%c0_18, %c0_19] : memref<256x256xbf16, #tpu.memory_space<vmem>>, vector<256x256xbf16>
    %cst_20 = arith.constant dense<0.000000e+00> : vector<152x256xf32>
    %27 = tpu.matmul %25, %26, %cst_20 {dimension_numbers = #tpu.dot_dimension_numbers<[1], [0], [0], [1], [0, 0, 1, 1], [], []>} : vector<152x256xbf16>, vector<256x256xbf16>, vector<152x256xf32> -> vector<152x256xf32>
    %c0_21 = arith.constant 0 : index
    %c0_22 = arith.constant 0 : index
    %28 = vector.load %arg9[%c0_21, %c0_22] : memref<1x256xf32, #tpu.memory_space<vmem>>, vector<1x256xf32>
    %29 = vector.broadcast %28 : vector<1x256xf32> to vector<152x256xf32>
    %30 = arith.addf %27, %29 : vector<152x256xf32>
    %cst_23 = arith.constant 0.000000e+00 : f32
    %31 = vector.broadcast %cst_23 : f32 to vector<152x256xf32>
    %32 = arith.maximumf %30, %31 : vector<152x256xf32>
    %33 = arith.truncf %32 : vector<152x256xf32> to vector<152x256xbf16>
    %c0_24 = arith.constant 0 : index
    %c0_25 = arith.constant 0 : index
    %34 = vector.load %arg10[%c0_24, %c0_25] : memref<256x128xbf16, #tpu.memory_space<vmem>>, vector<256x128xbf16>
    %cst_26 = arith.constant dense<0.000000e+00> : vector<152x128xf32>
    %35 = tpu.matmul %33, %34, %cst_26 {dimension_numbers = #tpu.dot_dimension_numbers<[1], [0], [0], [1], [0, 0, 1, 1], [], []>} : vector<152x256xbf16>, vector<256x128xbf16>, vector<152x128xf32> -> vector<152x128xf32>
    %c0_27 = arith.constant 0 : index
    %c0_28 = arith.constant 0 : index
    %36 = vector.load %arg11[%c0_27, %c0_28] : memref<1x128xf32, #tpu.memory_space<vmem>>, vector<1x128xf32>
    %37 = vector.broadcast %36 : vector<1x128xf32> to vector<152x128xf32>
    %38 = arith.addf %35, %37 : vector<152x128xf32>
    %c0_29 = arith.constant 0 : index
    %c0_30 = arith.constant 0 : index
    %39 = vector.load %arg12[%c0_29, %c0_30] : memref<152x128xf32, #tpu.memory_space<vmem>>, vector<152x128xf32>
    tpu.vector_store %arg12[%c0_29, %c0_30], %38 {strides = array<i32>} : memref<152x128xf32, #tpu.memory_space<vmem>>, vector<152x128xf32>,
    return
  }
  func.func @transform_0(%arg0: i32) -> (i32, i32) {
    %c0_i32 = arith.constant 0 : i32
    %c0_i32_0 = arith.constant 0 : i32
    return %arg0, %c0_i32 : i32, i32
  }
  func.func @transform_1(%arg0: i32) -> (i32, i32) {
    %c0_i32 = arith.constant 0 : i32
    %c0_i32_0 = arith.constant 0 : i32
    %c0_i32_1 = arith.constant 0 : i32
    return %c0_i32, %c0_i32_0 : i32, i32
  }
  func.func @transform_2(%arg0: i32) -> (i32, i32) {
    %c0_i32 = arith.constant 0 : i32
    %c0_i32_0 = arith.constant 0 : i32
    %c0_i32_1 = arith.constant 0 : i32
    return %c0_i32, %c0_i32_0 : i32, i32
  }
  func.func @transform_3(%arg0: i32) -> (i32, i32) {
    %c0_i32 = arith.constant 0 : i32
    %c0_i32_0 = arith.constant 0 : i32
    %c0_i32_1 = arith.constant 0 : i32
    return %c0_i32, %c0_i32_0 : i32, i32
  }
  func.func @transform_4(%arg0: i32) -> (i32, i32) {
    %c0_i32 = arith.constant 0 : i32
    %c0_i32_0 = arith.constant 0 : i32
    %c0_i32_1 = arith.constant 0 : i32
    return %c0_i32, %c0_i32_0 : i32, i32
  }
  func.func @transform_5(%arg0: i32) -> (i32, i32) {
    %c0_i32 = arith.constant 0 : i32
    %c0_i32_0 = arith.constant 0 : i32
    %c0_i32_1 = arith.constant 0 : i32
    return %c0_i32, %c0_i32_0 : i32, i32
  }
  func.func @transform_6(%arg0: i32) -> (i32, i32) {
    %c0_i32 = arith.constant 0 : i32
    %c0_i32_0 = arith.constant 0 : i32
    %c0_i32_1 = arith.constant 0 : i32
    return %c0_i32, %c0_i32_0 : i32, i32
  }
  func.func @transform_7(%arg0: i32) -> (i32, i32) {
    %c0_i32 = arith.constant 0 : i32
    %c0_i32_0 = arith.constant 0 : i32
    %c0_i32_1 = arith.constant 0 : i32
    return %c0_i32, %c0_i32_0 : i32, i32
  }
  func.func @transform_8(%arg0: i32) -> (i32, i32) {
    %c0_i32 = arith.constant 0 : i32
    %c0_i32_0 = arith.constant 0 : i32
    %c0_i32_1 = arith.constant 0 : i32
    return %c0_i32, %c0_i32_0 : i32, i32
  }
  func.func @transform_9(%arg0: i32) -> (i32, i32) {
    %c0_i32 = arith.constant 0 : i32
    %c0_i32_0 = arith.constant 0 : i32
    %c0_i32_1 = arith.constant 0 : i32
    return %c0_i32, %c0_i32_0 : i32, i32
  }
  func.func @transform_10(%arg0: i32) -> (i32, i32) {
    %c0_i32 = arith.constant 0 : i32
    %c0_i32_0 = arith.constant 0 : i32
    %c0_i32_1 = arith.constant 0 : i32
    return %c0_i32, %c0_i32_0 : i32, i32
  }
  func.func @transform_11(%arg0: i32) -> (i32, i32) {
    %c0_i32 = arith.constant 0 : i32
    %c0_i32_0 = arith.constant 0 : i32
    return %arg0, %c0_i32 : i32, i32
  }
}

</mosaic_0001>

<llo_original>
// kernel: tpu_custom_call.1
$region0: #{tpu_custom_call.1}
  #allocation0 [shape = 'u32[]', space=smem, size = 0x4, offset = 0x4, fixed_abs, tag = 'smem constant byte address 0x4 - core index']
  #allocation1 [shape = 'u32[72,128]{1,0:T(1,128)}', space=vmem, size = 0x9000, scoped, tag = 'internal scratch']
  %s0 = inlined_call_operand.vmem [shape: f32[300,96], index: 0, kind: input, shape index: {}]
  %s1 = inlined_call_operand.hbm [shape: bf16[96,256], index: 1, kind: input, shape index: {}]
  %s2 = inlined_call_operand.vmem [shape: f32[1,256], index: 2, kind: input, shape index: {}]
  %s3 = inlined_call_operand.vmem [shape: bf16[256,256], index: 3, kind: input, shape index: {}]
  %s4 = inlined_call_operand.vmem [shape: f32[1,256], index: 4, kind: input, shape index: {}]
  %s5 = inlined_call_operand.vmem [shape: bf16[256,256], index: 5, kind: input, shape index: {}]
  %s6 = inlined_call_operand.vmem [shape: f32[1,256], index: 6, kind: input, shape index: {}]
  %s7 = inlined_call_operand.hbm [shape: bf16[256,256], index: 7, kind: input, shape index: {}]
  %s8 = inlined_call_operand.vmem [shape: f32[1,256], index: 8, kind: input, shape index: {}]
  %s9 = inlined_call_operand.hbm [shape: bf16[256,128], index: 9, kind: input, shape index: {}]
  %s10 = inlined_call_operand.vmem [shape: f32[1,128], index: 10, kind: input, shape index: {}]
  %s11 = inlined_call_operand.hbm [shape: f32[300,128], index: 11, kind: output, shape index: {}]
  %s12 = sld [smem:[#allocation0]]
  $region89: #{tpu_custom_call.1} parent=0
    _
  %s14 = ssub.s32 1, %s12
  %s15 = scalar_select 0, %s14, %s12
  $region1: #{tpu_custom_call.1} parent=0
    #allocation2 [shape = 'u8[49152]{0}', space=vmem, size = 0xc000, scoped, tag = 'input window, operand 1, single buffered']
    #allocation3 [shape = 's32[2]{0}', space=sflag, size = 0x8, scoped, tag = 'scoped memory for tpu_custom_call.1']
    #allocation4 [shape = 's32[2]{0}', space=sflag, size = 0x8, scoped, tag = 'scoped memory for tpu_custom_call.1']
    #allocation5 [shape = 'u8[131072]{0}', space=vmem, size = 0x20000, scoped, tag = 'input window, operand 7, single buffered']
    #allocation6 [shape = 's32[1]{0}', space=sflag, size = 0x4, scoped, tag = 'scoped memory for tpu_custom_call.1']
    #allocation7 [shape = 'u8[65536]{0}', space=vmem, size = 0x10000, scoped, tag = 'input window, operand 9, single buffered']
    #allocation8 [shape = 'u8[155648]{0}', space=vmem, size = 0x26000, scoped, tag = 'output window, operand 0']
    %16 = vsyncpa [#allocation3], 0
    %17 = vsyncpa [#allocation6], 0
    %18 = vsyncpa [#allocation4], 0
    %s19 = scalar_lea.sflag [#allocation4], 1
    %20 = vsyncpa %s19, 0
    loop: start=0, step=1, limit=4
    $region2: #{tpu_custom_call.1} parent=1 // loop_pre_header
      _
    $region3: #{tpu_custom_call.1} parent=1 // loop_header
      %s22 = sphi 0, %s26
      %p23 = scmp.ge.s32.totalorder %s22, 4
      %s32 = sphi 0, %s34
      %s35 = sphi 0, %s32
      %s36 = sphi 0, %s35
      %s52 = sphi 0, %s36
      %s56 = sphi 0, %s56
      %s58 = sphi 0, %s56
      %s59 = sphi 0, %s58
      %s73 = sphi 0, %s59
      %s77 = sphi 0, %s77
      %s79 = sphi 0, %s77
      %s80 = sphi 0, %s79
      %s94 = sphi 0, %s80
      %s98 = sphi 0, %s98
      %s100 = sphi 0, %s98
      %s101 = sphi 0, %s100
      %s115 = sphi 0, %s101
      %s119 = sphi 0, %s119
      %s121 = sphi 0, %s119
      %s122 = sphi 0, %s121
      %s136 = sphi 0, %s122
      %s140 = sphi 0, %s140
      %s142 = sphi 0, %s140
      %s143 = sphi 0, %s142
      %s157 = sphi 0, %s143
      %s161 = sphi 0, %s161
      %s163 = sphi 0, %s161
      %s164 = sphi 0, %s163
      %s178 = sphi 0, %s164
      %s182 = sphi 0, %s182
      %s184 = sphi 0, %s182
      %s185 = sphi 0, %s184
      %s199 = sphi 0, %s185
      %s203 = sphi 0, %s203
      %s205 = sphi 0, %s203
      %s206 = sphi 0, %s205
      %s220 = sphi 0, %s206
      %s224 = sphi 0, %s224
      %s226 = sphi 0, %s224
      %s227 = sphi 0, %s226
      %s241 = sphi 0, %s227
      %s245 = sphi 0, %s245
      %s247 = sphi 0, %s245
      %s248 = sphi 0, %s247
      %s262 = sphi 0, %s248
      %s268 = sphi 0, %s270
      %s271 = sphi 0, %s268
      %s272 = sphi 0, %s271
      %s288 = sphi 0, %s272
    $region4: #{tpu_custom_call.1} parent=1 // loop_header_branch
      %25 = sbr.rel (%p23) target = $region8
    $region5: #{tpu_custom_call.1} parent=1 // loop_body
      %s27 = ssub.s32 %s22, 1
      %s28 = ssub.s32 %s22, 2
      %s29 = sadd.s32 %s22, 1
      %s30 = ssub.s32 %s22, %s29
      %p31 = scmp.eq.s32.totalorder %s30, 0
      %s33 = sadd.s32 %s32, 1
      %s34 = scalar_select %p31, %s32, %s33
      %p37 = pneg %p31
      %p38 = scmp.eq.s32.totalorder %s22, 1
      %p39 = por %p37, %p38
      %p40 = scmp.ne.s32.totalorder %s32, %s35
      %p41 = scmp.eq.s32.totalorder %s22, 0
      %p42 = por %p40, %p41
      %p43 = scmp.ne.s32.totalorder %s32, %s35
      %p44 = scmp.eq.s32.totalorder %s27, 1
      %p45 = por %p43, %p44
      %p46 = scmp.ne.s32.totalorder %s35, %s36
      %p47 = scmp.eq.s32.totalorder %s27, 0
      %p48 = por %p46, %p47
      %p49 = scmp.ne.s32.totalorder %s35, %s36
      %p50 = scmp.eq.s32.totalorder %s28, 1
      %p51 = por %p49, %p50
      %p53 = scmp.ne.s32.totalorder %s36, %s52
      %p54 = scmp.eq.s32.totalorder %s28, 0
      %p55 = por %p53, %p54
      %s57 = sadd.s32 %s56, 1
      %p60 = scmp.eq.s32.totalorder %s22, 1
      %p61 = scmp.ne.s32.totalorder %s56, %s58
      %p62 = scmp.eq.s32.totalorder %s22, 0
      %p63 = por %p61, %p62
      %p64 = scmp.ne.s32.totalorder %s56, %s58
      %p65 = scmp.eq.s32.totalorder %s27, 1
      %p66 = por %p64, %p65
      %p67 = scmp.ne.s32.totalorder %s58, %s59
      %p68 = scmp.eq.s32.totalorder %s27, 0
      %p69 = por %p67, %p68
      %p70 = scmp.ne.s32.totalorder %s58, %s59
      %p71 = scmp.eq.s32.totalorder %s28, 1
      %p72 = por %p70, %p71
      %p74 = scmp.ne.s32.totalorder %s59, %s73
      %p75 = scmp.eq.s32.totalorder %s28, 0
      %p76 = por %p74, %p75
      %s78 = sadd.s32 %s77, 1
      %p81 = scmp.eq.s32.totalorder %s22, 1
      %p82 = scmp.ne.s32.totalorder %s77, %s79
      %p83 = scmp.eq.s32.totalorder %s22, 0
      %p84 = por %p82, %p83
      %p85 = scmp.ne.s32.totalorder %s77, %s79
      %p86 = scmp.eq.s32.totalorder %s27, 1
      %p87 = por %p85, %p86
      %p88 = scmp.ne.s32.totalorder %s79, %s80
      %p89 = scmp.eq.s32.totalorder %s27, 0
      %p90 = por %p88, %p89
      %p91 = scmp.ne.s32.totalorder %s79, %s80
      %p92 = scmp.eq.s32.totalorder %s28, 1
      %p93 = por %p91, %p92
      %p95 = scmp.ne.s32.totalorder %s80, %s94
      %p96 = scmp.eq.s32.totalorder %s28, 0
      %p97 = por %p95, %p96
      %s99 = sadd.s32 %s98, 1
      %p102 = scmp.eq.s32.totalorder %s22, 1
      %p103 = scmp.ne.s32.totalorder %s98, %s100
      %p104 = scmp.eq.s32.totalorder %s22, 0
      %p105 = por %p103, %p104
      %p106 = scmp.ne.s32.totalorder %s98, %s100
      %p107 = scmp.eq.s32.totalorder %s27, 1
      %p108 = por %p106, %p107
      %p109 = scmp.ne.s32.totalorder %s100, %s101
      %p110 = scmp.eq.s32.totalorder %s27, 0
      %p111 = por %p109, %p110
      %p112 = scmp.ne.s32.totalorder %s100, %s101
      %p113 = scmp.eq.s32.totalorder %s28, 1
      %p114 = por %p112, %p113
      %p116 = scmp.ne.s32.totalorder %s101, %s115
      %p117 = scmp.eq.s32.totalorder %s28, 0
      %p118 = por %p116, %p117
      %s120 = sadd.s32 %s119, 1
      %p123 = scmp.eq.s32.totalorder %s22, 1
      %p124 = scmp.ne.s32.totalorder %s119, %s121
      %p125 = scmp.eq.s32.totalorder %s22, 0
      %p126 = por %p124, %p125
      %p127 = scmp.ne.s32.totalorder %s119, %s121
      %p128 = scmp.eq.s32.totalorder %s27, 1
      %p129 = por %p127, %p128
      %p130 = scmp.ne.s32.totalorder %s121, %s122
      %p131 = scmp.eq.s32.totalorder %s27, 0
      %p132 = por %p130, %p131
      %p133 = scmp.ne.s32.totalorder %s121, %s122
      %p134 = scmp.eq.s32.totalorder %s28, 1
      %p135 = por %p133, %p134
      %p137 = scmp.ne.s32.totalorder %s122, %s136
      %p138 = scmp.eq.s32.totalorder %s28, 0
      %p139 = por %p137, %p138
      %s141 = sadd.s32 %s140, 1
      %p144 = scmp.eq.s32.totalorder %s22, 1
      %p145 = scmp.ne.s32.totalorder %s140, %s142
      %p146 = scmp.eq.s32.totalorder %s22, 0
      %p147 = por %p145, %p146
      %p148 = scmp.ne.s32.totalorder %s140, %s142
      %p149 = scmp.eq.s32.totalorder %s27, 1
      %p150 = por %p148, %p149
      %p151 = scmp.ne.s32.totalorder %s142, %s143
      %p152 = scmp.eq.s32.totalorder %s27, 0
      %p153 = por %p151, %p152
      %p154 = scmp.ne.s32.totalorder %s142, %s143
      %p155 = scmp.eq.s32.totalorder %s28, 1
      %p156 = por %p154, %p155
      %p158 = scmp.ne.s32.totalorder %s143, %s157
      %p159 = scmp.eq.s32.totalorder %s28, 0
      %p160 = por %p158, %p159
      %s162 = sadd.s32 %s161, 1
      %p165 = scmp.eq.s32.totalorder %s22, 1
      %p166 = scmp.ne.s32.totalorder %s161, %s163
      %p167 = scmp.eq.s32.totalorder %s22, 0
      %p168 = por %p166, %p167
      %p169 = scmp.ne.s32.totalorder %s161, %s163
      %p170 = scmp.eq.s32.totalorder %s27, 1
      %p171 = por %p169, %p170
      %p172 = scmp.ne.s32.totalorder %s163, %s164
      %p173 = scmp.eq.s32.totalorder %s27, 0
      %p174 = por %p172, %p173
      %p175 = scmp.ne.s32.totalorder %s163, %s164
      %p176 = scmp.eq.s32.totalorder %s28, 1
      %p177 = por %p175, %p176
      %p179 = scmp.ne.s32.totalorder %s164, %s178
      %p180 = scmp.eq.s32.totalorder %s28, 0
      %p181 = por %p179, %p180
      %s183 = sadd.s32 %s182, 1
      %p186 = scmp.eq.s32.totalorder %s22, 1
      %p187 = scmp.ne.s32.totalorder %s182, %s184
      %p188 = scmp.eq.s32.totalorder %s22, 0
      %p189 = por %p187, %p188
      %p190 = scmp.ne.s32.totalorder %s182, %s184
      %p191 = scmp.eq.s32.totalorder %s27, 1
      %p192 = por %p190, %p191
      %p193 = scmp.ne.s32.totalorder %s184, %s185
      %p194 = scmp.eq.s32.totalorder %s27, 0
      %p195 = por %p193, %p194
      %p196 = scmp.ne.s32.totalorder %s184, %s185
      %p197 = scmp.eq.s32.totalorder %s28, 1
      %p198 = por %p196, %p197
      %p200 = scmp.ne.s32.totalorder %s185, %s199
      %p201 = scmp.eq.s32.totalorder %s28, 0
      %p202 = por %p200, %p201
      %s204 = sadd.s32 %s203, 1
      %p207 = scmp.eq.s32.totalorder %s22, 1
      %p208 = scmp.ne.s32.totalorder %s203, %s205
      %p209 = scmp.eq.s32.totalorder %s22, 0
      %p210 = por %p208, %p209
      %p211 = scmp.ne.s32.totalorder %s203, %s205
      %p212 = scmp.eq.s32.totalorder %s27, 1
      %p213 = por %p211, %p212
      %p214 = scmp.ne.s32.totalorder %s205, %s206
      %p215 = scmp.eq.s32.totalorder %s27, 0
      %p216 = por %p214, %p215
      %p217 = scmp.ne.s32.totalorder %s205, %s206
      %p218 = scmp.eq.s32.totalorder %s28, 1
      %p219 = por %p217, %p218
      %p221 = scmp.ne.s32.totalorder %s206, %s220
      %p222 = scmp.eq.s32.totalorder %s28, 0
      %p223 = por %p221, %p222
      %s225 = sadd.s32 %s224, 1
      %p228 = scmp.eq.s32.totalorder %s22, 1
      %p229 = scmp.ne.s32.totalorder %s224, %s226
      %p230 = scmp.eq.s32.totalorder %s22, 0
      %p231 = por %p229, %p230
      %p232 = scmp.ne.s32.totalorder %s224, %s226
      %p233 = scmp.eq.s32.totalorder %s27, 1
      %p234 = por %p232, %p233
      %p235 = scmp.ne.s32.totalorder %s226, %s227
      %p236 = scmp.eq.s32.totalorder %s27, 0
      %p237 = por %p235, %p236
      %p238 = scmp.ne.s32.totalorder %s226, %s227
      %p239 = scmp.eq.s32.totalorder %s28, 1
      %p240 = por %p238, %p239
      %p242 = scmp.ne.s32.totalorder %s227, %s241
      %p243 = scmp.eq.s32.totalorder %s28, 0
      %p244 = por %p242, %p243
      %s246 = sadd.s32 %s245, 1
      %p249 = scmp.eq.s32.totalorder %s22, 1
      %p250 = scmp.ne.s32.totalorder %s245, %s247
      %p251 = scmp.eq.s32.totalorder %s22, 0
      %p252 = por %p250, %p251
      %p253 = scmp.ne.s32.totalorder %s245, %s247
      %p254 = scmp.eq.s32.totalorder %s27, 1
      %p255 = por %p253, %p254
      %p256 = scmp.ne.s32.totalorder %s247, %s248
      %p257 = scmp.eq.s32.totalorder %s27, 0
      %p258 = por %p256, %p257
      %p259 = scmp.ne.s32.totalorder %s247, %s248
      %p260 = scmp.eq.s32.totalorder %s28, 1
      %p261 = por %p259, %p260
      %p263 = scmp.ne.s32.totalorder %s248, %s262
      %p264 = scmp.eq.s32.totalorder %s28, 0
      %p265 = por %p263, %p264
      %s266 = ssub.s32 %s22, %s29
      %p267 = scmp.eq.s32.totalorder %s266, 0
      %s269 = sadd.s32 %s268, 1
      %s270 = scalar_select %p267, %s268, %s269
      %p273 = pneg %p267
      %p274 = scmp.eq.s32.totalorder %s22, 1
      %p275 = por %p273, %p274
      %p276 = scmp.ne.s32.totalorder %s268, %s271
      %p277 = scmp.eq.s32.totalorder %s22, 0
      %p278 = por %p276, %p277
      %p279 = scmp.ne.s32.totalorder %s268, %s271
      %p280 = scmp.eq.s32.totalorder %s27, 1
      %p281 = por %p279, %p280
      %p282 = scmp.ne.s32.totalorder %s271, %s272
      %p283 = scmp.eq.s32.totalorder %s27, 0
      %p284 = por %p282, %p283
      %p285 = scmp.ne.s32.totalorder %s271, %s272
      %p286 = scmp.eq.s32.totalorder %s28, 1
      %p287 = por %p285, %p286
      %p289 = scmp.ne.s32.totalorder %s272, %s288
      %p290 = scmp.eq.s32.totalorder %s28, 0
      %p291 = por %p289, %p290
      %p292 = scmp.le.s32.totalorder 1, %s22
      %p293 = scmp.lt.s32.totalorder %s22, 3
      %p294 = pnand %p292, %p293
      %p295 = pneg %p294
      // Predicated region
      $region9: #{tpu_custom_call.1} parent=5 // pred_check
        _
      $region10: #{tpu_custom_call.1} parent=5 // pred_check_branch
        %297 = sbr.rel (%p294) target = $region12
      $region11: #{tpu_custom_call.1} parent=5 // pred_region
        %s298 = ssub.s32 %s22, 1
        // Predicated region
        $region13: #{tpu_custom_call.1} parent=11 // pred_check
          %p299 = pneg %p69
        $region14: #{tpu_custom_call.1} parent=11 // pred_check_branch
          %301 = sbr.rel (%p299) target = $region16
        $region15: #{tpu_custom_call.1} parent=11 // pred_region
          %303 = vsyncadd [#allocation3], 0
          %s304 = sshll.u32 %s1, 4
          %s305 = int_to_ptr.hbm [resolvable:$true] %s304
          %s306 = sshll.u32 [#allocation2], 4
          %s307 = int_to_ptr.vmem [resolvable:$true] %s306
          %312 = dma.hbm_to_vmem [thread:$0]  %s305, 1536, %s307, [#allocation3], 128, 128, 8
        $region16: #{tpu_custom_call.1} parent=11 // pred_fallthru
          _
        // Predicated region
        $region17: #{tpu_custom_call.1} parent=11 // pred_check
          %p313 = pneg %p90
        $region18: #{tpu_custom_call.1} parent=11 // pred_check_branch
          %315 = sbr.rel (%p313) target = $region20
        $region19: #{tpu_custom_call.1} parent=11 // pred_region
          _
        $region20: #{tpu_custom_call.1} parent=11 // pred_fallthru
          _
        // Predicated region
        $region21: #{tpu_custom_call.1} parent=11 // pred_check
          %p316 = pneg %p111
        $region22: #{tpu_custom_call.1} parent=11 // pred_check_branch
          %318 = sbr.rel (%p316) target = $region24
        $region23: #{tpu_custom_call.1} parent=11 // pred_region
          _
        $region24: #{tpu_custom_call.1} parent=11 // pred_fallthru
          _
        // Predicated region
        $region25: #{tpu_custom_call.1} parent=11 // pred_check
          %p319 = pneg %p132
        $region26: #{tpu_custom_call.1} parent=11 // pred_check_branch
          %321 = sbr.rel (%p319) target = $region28
        $region27: #{tpu_custom_call.1} parent=11 // pred_region
          _
        $region28: #{tpu_custom_call.1} parent=11 // pred_fallthru
          _
        // Predicated region
        $region29: #{tpu_custom_call.1} parent=11 // pred_check
          %p322 = pneg %p153
        $region30: #{tpu_custom_call.1} parent=11 // pred_check_branch
          %324 = sbr.rel (%p322) target = $region32
        $region31: #{tpu_custom_call.1} parent=11 // pred_region
          _
        $region32: #{tpu_custom_call.1} parent=11 // pred_fallthru
          _
        // Predicated region
        $region33: #{tpu_custom_call.1} parent=11 // pred_check
          %p325 = pneg %p174
        $region34: #{tpu_custom_call.1} parent=11 // pred_check_branch
          %327 = sbr.rel (%p325) target = $region36
        $region35: #{tpu_custom_call.1} parent=11 // pred_region
          _
        $region36: #{tpu_custom_call.1} parent=11 // pred_fallthru
          _
        // Predicated region
        $region37: #{tpu_custom_call.1} parent=11 // pred_check
          %p328 = pneg %p195
        $region38: #{tpu_custom_call.1} parent=11 // pred_check_branch
          %330 = sbr.rel (%p328) target = $region40
        $region39: #{tpu_custom_call.1} parent=11 // pred_region
          %332 = vsyncadd [#allocation6], 0
          %s333 = sshll.u32 %s7, 4
          %s334 = int_to_ptr.hbm [resolvable:$true] %s333
          %s335 = sshll.u32 [#allocation5], 4
          %s336 = int_to_ptr.vmem [resolvable:$true] %s335
          %341 = dma.hbm_to_vmem [thread:$0]  %s334, 4096, %s336, [#allocation6], 128, 128, 8
        $region40: #{tpu_custom_call.1} parent=11 // pred_fallthru
          _
        // Predicated region
        $region41: #{tpu_custom_call.1} parent=11 // pred_check
          %p342 = pneg %p216
        $region42: #{tpu_custom_call.1} parent=11 // pred_check_branch
          %344 = sbr.rel (%p342) target = $region44
        $region43: #{tpu_custom_call.1} parent=11 // pred_region
          _
        $region44: #{tpu_custom_call.1} parent=11 // pred_fallthru
          _
        // Predicated region
        $region45: #{tpu_custom_call.1} parent=11 // pred_check
          %p345 = pneg %p237
        $region46: #{tpu_custom_call.1} parent=11 // pred_check_branch
          %347 = sbr.rel (%p345) target = $region48
        $region47: #{tpu_custom_call.1} parent=11 // pred_region
          %349 = vsyncadd [#allocation6], 0
          %s350 = sshll.u32 %s9, 4
          %s351 = int_to_ptr.hbm [resolvable:$true] %s350
          %s352 = sshll.u32 [#allocation7], 4
          %s353 = int_to_ptr.vmem [resolvable:$true] %s352
          %358 = dma.hbm_to_vmem [thread:$0]  %s351, 2048, %s353, [#allocation6], 64, 64, 4
        $region48: #{tpu_custom_call.1} parent=11 // pred_fallthru
          _
        // Predicated region
        $region49: #{tpu_custom_call.1} parent=11 // pred_check
          %p359 = pneg %p258
        $region50: #{tpu_custom_call.1} parent=11 // pred_check_branch
          %361 = sbr.rel (%p359) target = $region52
        $region51: #{tpu_custom_call.1} parent=11 // pred_region
          _
        $region52: #{tpu_custom_call.1} parent=11 // pred_fallthru
          _
      $region12: #{tpu_custom_call.1} parent=5 // pred_fallthru
        _
      %p362 = scmp.lt.s32.totalorder %s22, 2
      // Predicated region
      $region53: #{tpu_custom_call.1} parent=5 // pred_check
        %p363 = pneg %p362
      $region54: #{tpu_custom_call.1} parent=5 // pred_check_branch
        %365 = sbr.rel (%p363) target = $region56
      $region55: #{tpu_custom_call.1} parent=5 // pred_region
        // Predicated region
        $region57: #{tpu_custom_call.1} parent=55 // pred_check
          %p366 = pneg %p42
        $region58: #{tpu_custom_call.1} parent=55 // pred_check_branch
          %368 = sbr.rel (%p366) target = $region60
        $region59: #{tpu_custom_call.1} parent=55 // pred_region
          %s369 = smul.u32 19, %s22
          %p370 = scmp.lt.s32.totalorder %s369, 37
          %s371 = scalar_select %p370, %s369, 37
          %s372 = smul.addr %s371, 8
          %s373 = scalar_lea.vmem %s0, %s372
          %s374 = smul.u32 19, %s22
        $region60: #{tpu_custom_call.1} parent=55 // pred_fallthru
          _
      $region56: #{tpu_custom_call.1} parent=5 // pred_fallthru
        _
      %p375 = scmp.le.s32.totalorder 1, %s22
      %p376 = scmp.lt.s32.totalorder %s22, 3
      %p377 = pnand %p375, %p376
      %p378 = pneg %p377
      // Predicated region
      $region61: #{tpu_custom_call.1} parent=5 // pred_check
        _
      $region62: #{tpu_custom_call.1} parent=5 // pred_check_branch
        %380 = sbr.rel (%p377) target = $region64
      $region63: #{tpu_custom_call.1} parent=5 // pred_region
        %s381 = ssub.s32 %s22, 1
        // Predicated region
        $region65: #{tpu_custom_call.1} parent=63 // pred_check
          %p382 = pneg %p69
        $region66: #{tpu_custom_call.1} parent=63 // pred_check_branch
          %384 = sbr.rel (%p382) target = $region68
        $region67: #{tpu_custom_call.1} parent=63 // pred_region
          %386 = dma.done [#allocation3], 1536
        $region68: #{tpu_custom_call.1} parent=63 // pred_fallthru
          _
        // Predicated region
        $region69: #{tpu_custom_call.1} parent=63 // pred_check
          %p387 = pneg %p195
        $region70: #{tpu_custom_call.1} parent=63 // pred_check_branch
          %389 = sbr.rel (%p387) target = $region72
        $region71: #{tpu_custom_call.1} parent=63 // pred_region
          %391 = dma.done [#allocation6], 4096
        $region72: #{tpu_custom_call.1} parent=63 // pred_fallthru
          _
        // Predicated region
        $region73: #{tpu_custom_call.1} parent=63 // pred_check
          %p392 = pneg %p237
        $region74: #{tpu_custom_call.1} parent=63 // pred_check_branch
          %394 = sbr.rel (%p392) target = $region76
        $region75: #{tpu_custom_call.1} parent=63 // pred_region
          %396 = dma.done [#allocation6], 2048
        $region76: #{tpu_custom_call.1} parent=63 // pred_fallthru
          _
        %s397 = smul.u32 19, %s27
        %p398 = scmp.lt.s32.totalorder %s397, 37
        %s399 = scalar_select %p398, %s397, 37
        %s400 = smul.addr %s399, 8
        %s401 = scalar_lea.vmem %s0, %s400
        %p402 = pneg %p48
        %p403 = pneg %p45
        %p404 = pneg %p69
        %p405 = pneg %p66
        %p406 = pneg %p90
        %p407 = pneg %p87
        %p408 = pneg %p111
        %p409 = pneg %p108
        %p410 = pneg %p132
        %p411 = pneg %p129
        %p412 = pneg %p153
        %p413 = pneg %p150
        %p414 = pneg %p174
        %p415 = pneg %p171
        %p416 = pneg %p195
        %p417 = pneg %p192
        %p418 = pneg %p216
        %p419 = pneg %p213
        %p420 = pneg %p237
        %p421 = pneg %p234
        %p422 = pneg %p258
        %p423 = pneg %p255
        %p424 = pneg %p284
        %p425 = pneg %p281
        %s426 = sand.u32 %s271, 1
        %s427 = scalar_lea.sflag [#allocation4], %s426
        %s428 = sand.u32 %s271, 1
        %s429 = smul.addr %s428, 152
        %s430 = scalar_lea.vmem [#allocation8], %s429
        %s431 = smul.u32 19, %s27
        %p432 = scmp.lt.s32.totalorder %s431, 37
        %s433 = scalar_select %p432, %s431, 37
        %s434 = smul.addr %s433, 8
        %s435 = scalar_lea.vmem %s0, %s434
        %s436 = smul.u32 19, %s27
        %s437 = smul.u32 19, %s27
        %v439 = vld [vmem:[%s435] sm:$0xff]
        %v440 = vld [vmem:[%s435 + $0x8] sm:$0xff]
        %v441 = vld [vmem:[%s435 + $0x10] sm:$0xff]
        %v442 = vld [vmem:[%s435 + $0x18] sm:$0xff]
        %v443 = vld [vmem:[%s435 + $0x20] sm:$0xff]
        %v444 = vld [vmem:[%s435 + $0x28] sm:$0xff]
        %v445 = vld [vmem:[%s435 + $0x30] sm:$0xff]
        %v446 = vld [vmem:[%s435 + $0x38] sm:$0xff]
        %v447 = vld [vmem:[%s435 + $0x40] sm:$0xff]
        %v448 = vld [vmem:[%s435 + $0x48] sm:$0xff]
        %v449 = vld [vmem:[%s435 + $0x50] sm:$0xff]
        %v450 = vld [vmem:[%s435 + $0x58] sm:$0xff]
        %v451 = vld [vmem:[%s435 + $0x60] sm:$0xff]
        %v452 = vld [vmem:[%s435 + $0x68] sm:$0xff]
        %v453 = vld [vmem:[%s435 + $0x70] sm:$0xff]
        %v454 = vld [vmem:[%s435 + $0x78] sm:$0xff]
        %v455 = vld [vmem:[%s435 + $0x80] sm:$0xff]
        %v456 = vld [vmem:[%s435 + $0x88] sm:$0xff]
        %v457 = vld [vmem:[%s435 + $0x90] sm:$0xff]
        %v458 = vpack.c.bf16 %v440, %v439
        %v459 = vpack.c.bf16 %v442, %v441
        %v460 = vpack.c.bf16 %v444, %v443
        %v461 = vpack.c.bf16 %v446, %v445
        %v462 = vpack.c.bf16 %v448, %v447
        %v463 = vpack.c.bf16 %v450, %v449
        %v464 = vpack.c.bf16 %v452, %v451
        %v465 = vpack.c.bf16 %v454, %v453
        %v466 = vpack.c.bf16 %v456, %v455
        %v467 = vpack.c.bf16 %v457, %v457
        %v468 = vld [vmem:[#allocation2] sm:$0xff]
        %v469 = vld [vmem:[#allocation2 + $0x8] sm:$0xff]
        %v470 = vld [vmem:[#allocation2 + $0x10] sm:$0xff]
        %v471 = vld [vmem:[#allocation2 + $0x18] sm:$0xff]
        %v472 = vld [vmem:[#allocation2 + $0x20] sm:$0xff]
        %v473 = vld [vmem:[#allocation2 + $0x28] sm:$0xff]
        %v474 = vld [vmem:[#allocation2 + $0x30] sm:$0xff]
        %v475 = vld [vmem:[#allocation2 + $0x38] sm:$0xff]
        %v476 = vld [vmem:[#allocation2 + $0x40] sm:$0xff]
        %v477 = vld [vmem:[#allocation2 + $0x48] sm:$0xff]
        %v478 = vld [vmem:[#allocation2 + $0x50] sm:$0xff]
        %v479 = vld [vmem:[#allocation2 + $0x58] sm:$0xff]
        %v480 = vld [vmem:[%s2] sm:$0x3]
        %v482 = vperm.slane %v480, 0
        %v483 = vperm.slane %v480, 1
        %v498 = vunpack.c.l.b16 %v468
        %v499 = vunpack.c.h.b16 %v468
        %v500 = vunpack.c.l.b16 %v469
        %v501 = vunpack.c.h.b16 %v469
        %v502 = vunpack.c.l.b16 %v470
        %v503 = vunpack.c.h.b16 %v470
        %v504 = vunpack.c.l.b16 %v471
        %v505 = vunpack.c.h.b16 %v471
        %v506 = vunpack.c.l.b16 %v472
        %v507 = vunpack.c.h.b16 %v472
        %v508 = vunpack.c.l.b16 %v473
        %v509 = vunpack.c.h.b16 %v473
        %v510 = vunpack.c.l.b16 %v474
        %v511 = vunpack.c.h.b16 %v474
        %v512 = vunpack.c.l.b16 %v475
        %v513 = vunpack.c.h.b16 %v475
        %v514 = vunpack.c.l.b16 %v476
        %v515 = vunpack.c.h.b16 %v476
        %v516 = vunpack.c.l.b16 %v477
        %v517 = vunpack.c.h.b16 %v477
        %v518 = vunpack.c.l.b16 %v478
        %v519 = vunpack.c.h.b16 %v478
        %v520 = vunpack.c.l.b16 %v479
        %v521 = vunpack.c.h.b16 %v479
        %v522 = vpack.c.b16 %v500, %v498
        %v523 = vpack.c.b16 %v501, %v499
        %v524 = vpack.c.b16 %v504, %v502
        %v525 = vpack.c.b16 %v505, %v503
        %v526 = vpack.c.b16 %v508, %v506
        %v527 = vpack.c.b16 %v509, %v507
        %v528 = vpack.c.b16 %v512, %v510
        %v529 = vpack.c.b16 %v513, %v511
        %v530 = vpack.c.b16 %v516, %v514
        %v531 = vpack.c.b16 %v517, %v515
        %v532 = vpack.c.b16 %v520, %v518
        %v533 = vpack.c.b16 %v521, %v519
        %vm546 = vcmask 785408
        %v548 = vsel %vm546, %v458, 0
        %v551 = vsel %vm546, %v459, 0
        %v554 = vsel %vm546, %v460, 0
        %v557 = vsel %vm546, %v461, 0
        %v560 = vsel %vm546, %v462, 0
        %v563 = vsel %vm546, %v463, 0
        %v566 = vsel %vm546, %v464, 0
        %v569 = vsel %vm546, %v465, 0
        %v572 = vsel %vm546, %v466, 0
        %v575 = vsel %vm546, %v467, 0
        %577 = vmatpush.bf16.msra.mxu0 0
        %578 = vmatpush.bf16.msra.mxu0 0
        %579 = vmatpush.bf16.msra.mxu0 %v532
        %580 = vmatpush.bf16.msra.mxu0 %v530
        %581 = vmatpush.bf16.msra.mxu0 %v528
        %582 = vmatpush.bf16.msra.mxu0 %v526
        %583 = vmatpush.bf16.msra.mxu0 %v524
        %584 = vmatpush.bf16.msra.mxu0 %v522
        %585 = vmatmul.bf16.gmra.mxu0 %v548
        %v586 = vpop.f32.mrf.mxu0
        %v587 = vadd.f32 %v482, %v586
        %v588 = vpop.f32.mrf.mxu0
        %v589 = vadd.f32 %v482, %v588
        %590 = vmatmul.bf16.gmra.mxu0 %v551
        %v591 = vpop.f32.mrf.mxu0
        %v592 = vadd.f32 %v482, %v591
        %v593 = vpop.f32.mrf.mxu0
        %v594 = vadd.f32 %v482, %v593
        %595 = vmatmul.bf16.gmra.mxu0 %v554
        %v596 = vpop.f32.mrf.mxu0
        %v597 = vadd.f32 %v482, %v596
        %v598 = vpop.f32.mrf.mxu0
        %v599 = vadd.f32 %v482, %v598
        %600 = vmatmul.bf16.gmra.mxu0 %v557
        %v601 = vpop.f32.mrf.mxu0
        %v602 = vadd.f32 %v482, %v601
        %v603 = vpop.f32.mrf.mxu0
        %v604 = vadd.f32 %v482, %v603
        %605 = vmatmul.bf16.gmra.mxu0 %v560
        %v606 = vpop.f32.mrf.mxu0
        %v607 = vadd.f32 %v482, %v606
        %v608 = vpop.f32.mrf.mxu0
        %v609 = vadd.f32 %v482, %v608
        %610 = vmatmul.bf16.gmra.mxu0 %v563
        %v611 = vpop.f32.mrf.mxu0
        %v612 = vadd.f32 %v482, %v611
        %v613 = vpop.f32.mrf.mxu0
        %v614 = vadd.f32 %v482, %v613
        %615 = vmatmul.bf16.gmra.mxu0 %v566
        %v616 = vpop.f32.mrf.mxu0
        %v617 = vadd.f32 %v482, %v616
        %v618 = vpop.f32.mrf.mxu0
        %v619 = vadd.f32 %v482, %v618
        %620 = vmatmul.bf16.gmra.mxu0 %v569
        %v621 = vpop.f32.mrf.mxu0
        %v622 = vadd.f32 %v482, %v621
        %v623 = vpop.f32.mrf.mxu0
        %v624 = vadd.f32 %v482, %v623
        %625 = vmatmul.bf16.gmra.mxu0 %v572
        %v626 = vpop.f32.mrf.mxu0
        %v627 = vadd.f32 %v482, %v626
        %v628 = vpop.f32.mrf.mxu0
        %v629 = vadd.f32 %v482, %v628
        %630 = vmatmul.bf16.gmra.mxu0 %v575
        %v631 = vpop.f32.mrf.mxu0
        %v632 = vadd.f32 %v482, %v631
        %v633 = vpop.f32.mrf.mxu0
        %634 = vdwg.mxu0
        %635 = vmatpush.bf16.msra.mxu0 0
        %636 = vmatpush.bf16.msra.mxu0 0
        %637 = vmatpush.bf16.msra.mxu0 %v533
        %638 = vmatpush.bf16.msra.mxu0 %v531
        %639 = vmatpush.bf16.msra.mxu0 %v529
        %640 = vmatpush.bf16.msra.mxu0 %v527
        %641 = vmatpush.bf16.msra.mxu0 %v525
        %642 = vmatpush.bf16.msra.mxu0 %v523
        %643 = vmatmul.bf16.gmra.mxu0 %v548
        %v644 = vpop.f32.mrf.mxu0
        %v645 = vadd.f32 %v483, %v644
        %v646 = vpop.f32.mrf.mxu0
        %v647 = vadd.f32 %v483, %v646
        %648 = vmatmul.bf16.gmra.mxu0 %v551
        %v649 = vpop.f32.mrf.mxu0
        %v650 = vadd.f32 %v483, %v649
        %v651 = vpop.f32.mrf.mxu0
        %v652 = vadd.f32 %v483, %v651
        %653 = vmatmul.bf16.gmra.mxu0 %v554
        %v654 = vpop.f32.mrf.mxu0
        %v655 = vadd.f32 %v483, %v654
        %v656 = vpop.f32.mrf.mxu0
        %v657 = vadd.f32 %v483, %v656
        %658 = vmatmul.bf16.gmra.mxu0 %v557
        %v659 = vpop.f32.mrf.mxu0
        %v660 = vadd.f32 %v483, %v659
        %v661 = vpop.f32.mrf.mxu0
        %v662 = vadd.f32 %v483, %v661
        %663 = vmatmul.bf16.gmra.mxu0 %v560
        %v664 = vpop.f32.mrf.mxu0
        %v665 = vadd.f32 %v483, %v664
        %v666 = vpop.f32.mrf.mxu0
        %v667 = vadd.f32 %v483, %v666
        %668 = vmatmul.bf16.gmra.mxu0 %v563
        %v669 = vpop.f32.mrf.mxu0
        %v670 = vadd.f32 %v483, %v669
        %v671 = vpop.f32.mrf.mxu0
        %v672 = vadd.f32 %v483, %v671
        %673 = vmatmul.bf16.gmra.mxu0 %v566
        %v674 = vpop.f32.mrf.mxu0
        %v675 = vadd.f32 %v483, %v674
        %v676 = vpop.f32.mrf.mxu0
        %v677 = vadd.f32 %v483, %v676
        %678 = vmatmul.bf16.gmra.mxu0 %v569
        %v679 = vpop.f32.mrf.mxu0
        %v680 = vadd.f32 %v483, %v679
        %v681 = vpop.f32.mrf.mxu0
        %v682 = vadd.f32 %v483, %v681
        %683 = vmatmul.bf16.gmra.mxu0 %v572
        %v684 = vpop.f32.mrf.mxu0
        %v685 = vadd.f32 %v483, %v684
        %v686 = vpop.f32.mrf.mxu0
        %v687 = vadd.f32 %v483, %v686
        %688 = vmatmul.bf16.gmra.mxu0 %v575
        %v689 = vpop.f32.mrf.mxu0
        %v690 = vadd.f32 %v483, %v689
        %v691 = vpop.f32.mrf.mxu0
        %692 = vdwg.mxu0
        %v693 = vmax.f32 %v587, 0.0
        %v694 = vmax.f32 %v645, 0.0
        %v695 = vmax.f32 %v589, 0.0
        %v696 = vmax.f32 %v647, 0.0
        %v697 = vmax.f32 %v592, 0.0
        %v698 = vmax.f32 %v650, 0.0
        %v699 = vmax.f32 %v594, 0.0
        %v700 = vmax.f32 %v652, 0.0
        %v701 = vmax.f32 %v597, 0.0
        %v702 = vmax.f32 %v655, 0.0
        %v703 = vmax.f32 %v599, 0.0
        %v704 = vmax.f32 %v657, 0.0
        %v705 = vmax.f32 %v602, 0.0
        %v706 = vmax.f32 %v660, 0.0
        %v707 = vmax.f32 %v604, 0.0
        %v708 = vmax.f32 %v662, 0.0
        %v709 = vmax.f32 %v607, 0.0
        %v710 = vmax.f32 %v665, 0.0
        %v711 = vmax.f32 %v609, 0.0
        %v712 = vmax.f32 %v667, 0.0
        %v713 = vmax.f32 %v612, 0.0
        %v714 = vmax.f32 %v670, 0.0
        %v715 = vmax.f32 %v614, 0.0
        %v716 = vmax.f32 %v672, 0.0
        %v717 = vmax.f32 %v617, 0.0
        %v718 = vmax.f32 %v675, 0.0
        %v719 = vmax.f32 %v619, 0.0
        %v720 = vmax.f32 %v677, 0.0
        %v721 = vmax.f32 %v622, 0.0
        %v722 = vmax.f32 %v680, 0.0
        %v723 = vmax.f32 %v624, 0.0
        %v724 = vmax.f32 %v682, 0.0
        %v725 = vmax.f32 %v627, 0.0
        %v726 = vmax.f32 %v685, 0.0
        %v727 = vmax.f32 %v629, 0.0
        %v728 = vmax.f32 %v687, 0.0
        %v729 = vmax.f32 %v632, 0.0
        %v730 = vmax.f32 %v690, 0.0
        %v731 = vpack.c.bf16 %v695, %v693
        %v732 = vpack.c.bf16 %v696, %v694
        %v733 = vpack.c.bf16 %v699, %v697
        %v734 = vpack.c.bf16 %v700, %v698
        %v735 = vpack.c.bf16 %v703, %v701
        %v736 = vpack.c.bf16 %v704, %v702
        %v737 = vpack.c.bf16 %v707, %v705
        %v738 = vpack.c.bf16 %v708, %v706
        %v739 = vpack.c.bf16 %v711, %v709
        %v740 = vpack.c.bf16 %v712, %v710
        %v741 = vpack.c.bf16 %v715, %v713
        %v742 = vpack.c.bf16 %v716, %v714
        %v743 = vpack.c.bf16 %v719, %v717
        %v744 = vpack.c.bf16 %v720, %v718
        %v745 = vpack.c.bf16 %v723, %v721
        %v746 = vpack.c.bf16 %v724, %v722
        %v747 = vpack.c.bf16 %v727, %v725
        %v748 = vpack.c.bf16 %v728, %v726
        %v749 = vpack.c.bf16 %v729, %v729
        %v750 = vpack.c.bf16 %v730, %v730
        %v751 = vld [vmem:[%s3] sm:$0xff]
        %v752 = vld [vmem:[%s3 + $0x8] sm:$0xff]
        %v753 = vld [vmem:[%s3 + $0x10] sm:$0xff]
        %v754 = vld [vmem:[%s3 + $0x18] sm:$0xff]
        %v755 = vld [vmem:[%s3 + $0x20] sm:$0xff]
        %v756 = vld [vmem:[%s3 + $0x28] sm:$0xff]
        %v757 = vld [vmem:[%s3 + $0x30] sm:$0xff]
        %v758 = vld [vmem:[%s3 + $0x38] sm:$0xff]
        %v759 = vld [vmem:[%s3 + $0x40] sm:$0xff]
        %v760 = vld [vmem:[%s3 + $0x48] sm:$0xff]
        %v761 = vld [vmem:[%s3 + $0x50] sm:$0xff]
        %v762 = vld [vmem:[%s3 + $0x58] sm:$0xff]
        %v763 = vld [vmem:[%s3 + $0x60] sm:$0xff]
        %v764 = vld [vmem:[%s3 + $0x68] sm:$0xff]
        %v765 = vld [vmem:[%s3 + $0x70] sm:$0xff]
        %v766 = vld [vmem:[%s3 + $0x78] sm:$0xff]
        %v767 = vld [vmem:[%s3 + $0x80] sm:$0xff]
        %v768 = vld [vmem:[%s3 + $0x88] sm:$0xff]
        %v769 = vld [vmem:[%s3 + $0x90] sm:$0xff]
        %v770 = vld [vmem:[%s3 + $0x98] sm:$0xff]
        %v771 = vld [vmem:[%s3 + $0xa0] sm:$0xff]
        %v772 = vld [vmem:[%s3 + $0xa8] sm:$0xff]
        %v773 = vld [vmem:[%s3 + $0xb0] sm:$0xff]
        %v774 = vld [vmem:[%s3 + $0xb8] sm:$0xff]
        %v775 = vld [vmem:[%s3 + $0xc0] sm:$0xff]
        %v776 = vld [vmem:[%s3 + $0xc8] sm:$0xff]
        %v777 = vld [vmem:[%s3 + $0xd0] sm:$0xff]
        %v778 = vld [vmem:[%s3 + $0xd8] sm:$0xff]
        %v779 = vld [vmem:[%s3 + $0xe0] sm:$0xff]
        %v780 = vld [vmem:[%s3 + $0xe8] sm:$0xff]
        %v781 = vld [vmem:[%s3 + $0xf0] sm:$0xff]
        %v782 = vld [vmem:[%s3 + $0xf8] sm:$0xff]
        %v783 = vld [vmem:[%s4] sm:$0x3]
        %v785 = vperm.slane %v783, 0
        %v786 = vperm.slane %v783, 1
        %v821 = vunpack.c.l.b16 %v751
        %v822 = vunpack.c.h.b16 %v751
        %v823 = vunpack.c.l.b16 %v752
        %v824 = vunpack.c.h.b16 %v752
        %v825 = vunpack.c.l.b16 %v753
        %v826 = vunpack.c.h.b16 %v753
        %v827 = vunpack.c.l.b16 %v754
        %v828 = vunpack.c.h.b16 %v754
        %v829 = vunpack.c.l.b16 %v755
        %v830 = vunpack.c.h.b16 %v755
        %v831 = vunpack.c.l.b16 %v756
        %v832 = vunpack.c.h.b16 %v756
        %v833 = vunpack.c.l.b16 %v757
        %v834 = vunpack.c.h.b16 %v757
        %v835 = vunpack.c.l.b16 %v758
        %v836 = vunpack.c.h.b16 %v758
        %v837 = vunpack.c.l.b16 %v759
        %v838 = vunpack.c.h.b16 %v759
        %v839 = vunpack.c.l.b16 %v760
        %v840 = vunpack.c.h.b16 %v760
        %v841 = vunpack.c.l.b16 %v761
        %v842 = vunpack.c.h.b16 %v761
        %v843 = vunpack.c.l.b16 %v762
        %v844 = vunpack.c.h.b16 %v762
        %v845 = vunpack.c.l.b16 %v763
        %v846 = vunpack.c.h.b16 %v763
        %v847 = vunpack.c.l.b16 %v764
        %v848 = vunpack.c.h.b16 %v764
        %v849 = vunpack.c.l.b16 %v765
        %v850 = vunpack.c.h.b16 %v765
        %v851 = vunpack.c.l.b16 %v766
        %v852 = vunpack.c.h.b16 %v766
        %v853 = vunpack.c.l.b16 %v767
        %v854 = vunpack.c.h.b16 %v767
        %v855 = vunpack.c.l.b16 %v768
        %v856 = vunpack.c.h.b16 %v768
        %v857 = vunpack.c.l.b16 %v769
        %v858 = vunpack.c.h.b16 %v769
        %v859 = vunpack.c.l.b16 %v770
        %v860 = vunpack.c.h.b16 %v770
        %v861 = vunpack.c.l.b16 %v771
        %v862 = vunpack.c.h.b16 %v771
        %v863 = vunpack.c.l.b16 %v772
        %v864 = vunpack.c.h.b16 %v772
        %v865 = vunpack.c.l.b16 %v773
        %v866 = vunpack.c.h.b16 %v773
        %v867 = vunpack.c.l.b16 %v774
        %v868 = vunpack.c.h.b16 %v774
        %v869 = vunpack.c.l.b16 %v775
        %v870 = vunpack.c.h.b16 %v775
        %v871 = vunpack.c.l.b16 %v776
        %v872 = vunpack.c.h.b16 %v776
        %v873 = vunpack.c.l.b16 %v777
        %v874 = vunpack.c.h.b16 %v777
        %v875 = vunpack.c.l.b16 %v778
        %v876 = vunpack.c.h.b16 %v778
        %v877 = vunpack.c.l.b16 %v779
        %v878 = vunpack.c.h.b16 %v779
        %v879 = vunpack.c.l.b16 %v780
        %v880 = vunpack.c.h.b16 %v780
        %v881 = vunpack.c.l.b16 %v781
        %v882 = vunpack.c.h.b16 %v781
        %v883 = vunpack.c.l.b16 %v782
        %v884 = vunpack.c.h.b16 %v782
        %v885 = vpack.c.b16 %v823, %v821
        %v886 = vpack.c.b16 %v824, %v822
        %v887 = vpack.c.b16 %v827, %v825
        %v888 = vpack.c.b16 %v828, %v826
        %v889 = vpack.c.b16 %v831, %v829
        %v890 = vpack.c.b16 %v832, %v830
        %v891 = vpack.c.b16 %v835, %v833
        %v892 = vpack.c.b16 %v836, %v834
        %v893 = vpack.c.b16 %v839, %v837
        %v894 = vpack.c.b16 %v840, %v838
        %v895 = vpack.c.b16 %v843, %v841
        %v896 = vpack.c.b16 %v844, %v842
        %v897 = vpack.c.b16 %v847, %v845
        %v898 = vpack.c.b16 %v848, %v846
        %v899 = vpack.c.b16 %v851, %v849
        %v900 = vpack.c.b16 %v852, %v850
        %v901 = vpack.c.b16 %v855, %v853
        %v902 = vpack.c.b16 %v856, %v854
        %v903 = vpack.c.b16 %v859, %v857
        %v904 = vpack.c.b16 %v860, %v858
        %v905 = vpack.c.b16 %v863, %v861
        %v906 = vpack.c.b16 %v864, %v862
        %v907 = vpack.c.b16 %v867, %v865
        %v908 = vpack.c.b16 %v868, %v866
        %v909 = vpack.c.b16 %v871, %v869
        %v910 = vpack.c.b16 %v872, %v870
        %v911 = vpack.c.b16 %v875, %v873
        %v912 = vpack.c.b16 %v876, %v874
        %v913 = vpack.c.b16 %v879, %v877
        %v914 = vpack.c.b16 %v880, %v878
        %v915 = vpack.c.b16 %v883, %v881
        %v916 = vpack.c.b16 %v884, %v882
        %949 = vmatpush.bf16.msra.mxu0 %v899
        %950 = vmatpush.bf16.msra.mxu0 %v897
        %951 = vmatpush.bf16.msra.mxu0 %v895
        %952 = vmatpush.bf16.msra.mxu0 %v893
        %953 = vmatpush.bf16.msra.mxu0 %v891
        %954 = vmatpush.bf16.msra.mxu0 %v889
        %955 = vmatpush.bf16.msra.mxu0 %v887
        %956 = vmatpush.bf16.msra.mxu0 %v885
        %957 = vmatmul.bf16.gmra.mxu0 %v731
        %v958 = vpop.f32.mrf.mxu0
        %v959 = vadd.f32 %v785, %v958
        %v960 = vpop.f32.mrf.mxu0
        %v961 = vadd.f32 %v785, %v960
        %962 = vmatmul.bf16.gmra.mxu0 %v733
        %v963 = vpop.f32.mrf.mxu0
        %v964 = vadd.f32 %v785, %v963
        %v965 = vpop.f32.mrf.mxu0
        %v966 = vadd.f32 %v785, %v965
        %967 = vmatmul.bf16.gmra.mxu0 %v735
        %v968 = vpop.f32.mrf.mxu0
        %v969 = vadd.f32 %v785, %v968
        %v970 = vpop.f32.mrf.mxu0
        %v971 = vadd.f32 %v785, %v970
        %972 = vmatmul.bf16.gmra.mxu0 %v737
        %v973 = vpop.f32.mrf.mxu0
        %v974 = vadd.f32 %v785, %v973
        %v975 = vpop.f32.mrf.mxu0
        %v976 = vadd.f32 %v785, %v975
        %977 = vmatmul.bf16.gmra.mxu0 %v739
        %v978 = vpop.f32.mrf.mxu0
        %v979 = vadd.f32 %v785, %v978
        %v980 = vpop.f32.mrf.mxu0
        %v981 = vadd.f32 %v785, %v980
        %982 = vmatmul.bf16.gmra.mxu0 %v741
        %v983 = vpop.f32.mrf.mxu0
        %v984 = vadd.f32 %v785, %v983
        %v985 = vpop.f32.mrf.mxu0
        %v986 = vadd.f32 %v785, %v985
        %987 = vmatmul.bf16.gmra.mxu0 %v743
        %v988 = vpop.f32.mrf.mxu0
        %v989 = vadd.f32 %v785, %v988
        %v990 = vpop.f32.mrf.mxu0
        %v991 = vadd.f32 %v785, %v990
        %992 = vmatmul.bf16.gmra.mxu0 %v745
        %v993 = vpop.f32.mrf.mxu0
        %v994 = vadd.f32 %v785, %v993
        %v995 = vpop.f32.mrf.mxu0
        %v996 = vadd.f32 %v785, %v995
        %997 = vmatmul.bf16.gmra.mxu0 %v747
        %v998 = vpop.f32.mrf.mxu0
        %v999 = vadd.f32 %v785, %v998
        %v1000 = vpop.f32.mrf.mxu0
        %v1001 = vadd.f32 %v785, %v1000
        %1002 = vmatmul.bf16.gmra.mxu0 %v749
        %v1003 = vpop.f32.mrf.mxu0
        %v1004 = vadd.f32 %v785, %v1003
        %v1005 = vpop.f32.mrf.mxu0
        %1006 = vdwg.mxu0
        %1007 = vmatpush.bf16.msra.mxu0 %v915
        %1008 = vmatpush.bf16.msra.mxu0 %v913
        %1009 = vmatpush.bf16.msra.mxu0 %v911
        %1010 = vmatpush.bf16.msra.mxu0 %v909
        %1011 = vmatpush.bf16.msra.mxu0 %v907
        %1012 = vmatpush.bf16.msra.mxu0 %v905
        %1013 = vmatpush.bf16.msra.mxu0 %v903
        %1014 = vmatpush.bf16.msra.mxu0 %v901
        %1015 = vmatmul.bf16.gmra.mxu0 %v732
        %v1016 = vpop.f32.mrf.mxu0
        %v1017 = vadd.f32 %v959, %v1016
        %v1018 = vpop.f32.mrf.mxu0
        %v1019 = vadd.f32 %v961, %v1018
        %1020 = vmatmul.bf16.gmra.mxu0 %v734
        %v1021 = vpop.f32.mrf.mxu0
        %v1022 = vadd.f32 %v964, %v1021
        %v1023 = vpop.f32.mrf.mxu0
        %v1024 = vadd.f32 %v966, %v1023
        %1025 = vmatmul.bf16.gmra.mxu0 %v736
        %v1026 = vpop.f32.mrf.mxu0
        %v1027 = vadd.f32 %v969, %v1026
        %v1028 = vpop.f32.mrf.mxu0
        %v1029 = vadd.f32 %v971, %v1028
        %1030 = vmatmul.bf16.gmra.mxu0 %v738
        %v1031 = vpop.f32.mrf.mxu0
        %v1032 = vadd.f32 %v974, %v1031
        %v1033 = vpop.f32.mrf.mxu0
        %v1034 = vadd.f32 %v976, %v1033
        %1035 = vmatmul.bf16.gmra.mxu0 %v740
        %v1036 = vpop.f32.mrf.mxu0
        %v1037 = vadd.f32 %v979, %v1036
        %v1038 = vpop.f32.mrf.mxu0
        %v1039 = vadd.f32 %v981, %v1038
        %1040 = vmatmul.bf16.gmra.mxu0 %v742
        %v1041 = vpop.f32.mrf.mxu0
        %v1042 = vadd.f32 %v984, %v1041
        %v1043 = vpop.f32.mrf.mxu0
        %v1044 = vadd.f32 %v986, %v1043
        %1045 = vmatmul.bf16.gmra.mxu0 %v744
        %v1046 = vpop.f32.mrf.mxu0
        %v1047 = vadd.f32 %v989, %v1046
        %v1048 = vpop.f32.mrf.mxu0
        %v1049 = vadd.f32 %v991, %v1048
        %1050 = vmatmul.bf16.gmra.mxu0 %v746
        %v1051 = vpop.f32.mrf.mxu0
        %v1052 = vadd.f32 %v994, %v1051
        %v1053 = vpop.f32.mrf.mxu0
        %v1054 = vadd.f32 %v996, %v1053
        %1055 = vmatmul.bf16.gmra.mxu0 %v748
        %v1056 = vpop.f32.mrf.mxu0
        %v1057 = vadd.f32 %v999, %v1056
        %v1058 = vpop.f32.mrf.mxu0
        %v1059 = vadd.f32 %v1001, %v1058
        %1060 = vmatmul.bf16.gmra.mxu0 %v750
        %v1061 = vpop.f32.mrf.mxu0
        %v1062 = vadd.f32 %v1004, %v1061
        %v1063 = vpop.f32.mrf.mxu0
        %1064 = vdwg.mxu0
        %1065 = vmatpush.bf16.msra.mxu0 %v900
        %1066 = vmatpush.bf16.msra.mxu0 %v898
        %1067 = vmatpush.bf16.msra.mxu0 %v896
        %1068 = vmatpush.bf16.msra.mxu0 %v894
        %1069 = vmatpush.bf16.msra.mxu0 %v892
        %1070 = vmatpush.bf16.msra.mxu0 %v890
        %1071 = vmatpush.bf16.msra.mxu0 %v888
        %1072 = vmatpush.bf16.msra.mxu0 %v886
        %1073 = vmatmul.bf16.gmra.mxu0 %v731
        %v1074 = vpop.f32.mrf.mxu0
        %v1075 = vadd.f32 %v786, %v1074
        %v1076 = vpop.f32.mrf.mxu0
        %v1077 = vadd.f32 %v786, %v1076
        %1078 = vmatmul.bf16.gmra.mxu0 %v733
        %v1079 = vpop.f32.mrf.mxu0
        %v1080 = vadd.f32 %v786, %v1079
        %v1081 = vpop.f32.mrf.mxu0
        %v1082 = vadd.f32 %v786, %v1081
        %1083 = vmatmul.bf16.gmra.mxu0 %v735
        %v1084 = vpop.f32.mrf.mxu0
        %v1085 = vadd.f32 %v786, %v1084
        %v1086 = vpop.f32.mrf.mxu0
        %v1087 = vadd.f32 %v786, %v1086
        %1088 = vmatmul.bf16.gmra.mxu0 %v737
        %v1089 = vpop.f32.mrf.mxu0
        %v1090 = vadd.f32 %v786, %v1089
        %v1091 = vpop.f32.mrf.mxu0
        %v1092 = vadd.f32 %v786, %v1091
        %1093 = vmatmul.bf16.gmra.mxu0 %v739
        %v1094 = vpop.f32.mrf.mxu0
        %v1095 = vadd.f32 %v786, %v1094
        %v1096 = vpop.f32.mrf.mxu0
        %v1097 = vadd.f32 %v786, %v1096
        %1098 = vmatmul.bf16.gmra.mxu0 %v741
        %v1099 = vpop.f32.mrf.mxu0
        %v1100 = vadd.f32 %v786, %v1099
        %v1101 = vpop.f32.mrf.mxu0
        %v1102 = vadd.f32 %v786, %v1101
        %1103 = vmatmul.bf16.gmra.mxu0 %v743
        %v1104 = vpop.f32.mrf.mxu0
        %v1105 = vadd.f32 %v786, %v1104
        %v1106 = vpop.f32.mrf.mxu0
        %v1107 = vadd.f32 %v786, %v1106
        %1108 = vmatmul.bf16.gmra.mxu0 %v745
        %v1109 = vpop.f32.mrf.mxu0
        %v1110 = vadd.f32 %v786, %v1109
        %v1111 = vpop.f32.mrf.mxu0
        %v1112 = vadd.f32 %v786, %v1111
        %1113 = vmatmul.bf16.gmra.mxu0 %v747
        %v1114 = vpop.f32.mrf.mxu0
        %v1115 = vadd.f32 %v786, %v1114
        %v1116 = vpop.f32.mrf.mxu0
        %v1117 = vadd.f32 %v786, %v1116
        %1118 = vmatmul.bf16.gmra.mxu0 %v749
        %v1119 = vpop.f32.mrf.mxu0
        %v1120 = vadd.f32 %v786, %v1119
        %v1121 = vpop.f32.mrf.mxu0
        %1122 = vdwg.mxu0
        %1123 = vmatpush.bf16.msra.mxu0 %v916
        %1124 = vmatpush.bf16.msra.mxu0 %v914
        %1125 = vmatpush.bf16.msra.mxu0 %v912
        %1126 = vmatpush.bf16.msra.mxu0 %v910
        %1127 = vmatpush.bf16.msra.mxu0 %v908
        %1128 = vmatpush.bf16.msra.mxu0 %v906
        %1129 = vmatpush.bf16.msra.mxu0 %v904
        %1130 = vmatpush.bf16.msra.mxu0 %v902
        %1131 = vmatmul.bf16.gmra.mxu0 %v732
        %v1132 = vpop.f32.mrf.mxu0
        %v1133 = vadd.f32 %v1075, %v1132
        %v1134 = vpop.f32.mrf.mxu0
        %v1135 = vadd.f32 %v1077, %v1134
        %1136 = vmatmul.bf16.gmra.mxu0 %v734
        %v1137 = vpop.f32.mrf.mxu0
        %v1138 = vadd.f32 %v1080, %v1137
        %v1139 = vpop.f32.mrf.mxu0
        %v1140 = vadd.f32 %v1082, %v1139
        %1141 = vmatmul.bf16.gmra.mxu0 %v736
        %v1142 = vpop.f32.mrf.mxu0
        %v1143 = vadd.f32 %v1085, %v1142
        %v1144 = vpop.f32.mrf.mxu0
        %v1145 = vadd.f32 %v1087, %v1144
        %1146 = vmatmul.bf16.gmra.mxu0 %v738
        %v1147 = vpop.f32.mrf.mxu0
        %v1148 = vadd.f32 %v1090, %v1147
        %v1149 = vpop.f32.mrf.mxu0
        %v1150 = vadd.f32 %v1092, %v1149
        %1151 = vmatmul.bf16.gmra.mxu0 %v740
        %v1152 = vpop.f32.mrf.mxu0
        %v1153 = vadd.f32 %v1095, %v1152
        %v1154 = vpop.f32.mrf.mxu0
        %v1155 = vadd.f32 %v1097, %v1154
        %1156 = vmatmul.bf16.gmra.mxu0 %v742
        %v1157 = vpop.f32.mrf.mxu0
        %v1158 = vadd.f32 %v1100, %v1157
        %v1159 = vpop.f32.mrf.mxu0
        %v1160 = vadd.f32 %v1102, %v1159
        %1161 = vmatmul.bf16.gmra.mxu0 %v744
        %v1162 = vpop.f32.mrf.mxu0
        %v1163 = vadd.f32 %v1105, %v1162
        %v1164 = vpop.f32.mrf.mxu0
        %v1165 = vadd.f32 %v1107, %v1164
        %1166 = vmatmul.bf16.gmra.mxu0 %v746
        %v1167 = vpop.f32.mrf.mxu0
        %v1168 = vadd.f32 %v1110, %v1167
        %v1169 = vpop.f32.mrf.mxu0
        %v1170 = vadd.f32 %v1112, %v1169
        %1171 = vmatmul.bf16.gmra.mxu0 %v748
        %v1172 = vpop.f32.mrf.mxu0
        %v1173 = vadd.f32 %v1115, %v1172
        %v1174 = vpop.f32.mrf.mxu0
        %v1175 = vadd.f32 %v1117, %v1174
        %1176 = vmatmul.bf16.gmra.mxu0 %v750
        %v1177 = vpop.f32.mrf.mxu0
        %v1178 = vadd.f32 %v1120, %v1177
        %v1179 = vpop.f32.mrf.mxu0
        %1180 = vdwg.mxu0
        %v1181 = vmax.f32 %v1017, 0.0
        %v1182 = vmax.f32 %v1133, 0.0
        %v1183 = vmax.f32 %v1019, 0.0
        %v1184 = vmax.f32 %v1135, 0.0
        %v1185 = vmax.f32 %v1022, 0.0
        %v1186 = vmax.f32 %v1138, 0.0
        %v1187 = vmax.f32 %v1024, 0.0
        %v1188 = vmax.f32 %v1140, 0.0
        %v1189 = vmax.f32 %v1027, 0.0
        %v1190 = vmax.f32 %v1143, 0.0
        %v1191 = vmax.f32 %v1029, 0.0
        %v1192 = vmax.f32 %v1145, 0.0
        %v1193 = vmax.f32 %v1032, 0.0
        %v1194 = vmax.f32 %v1148, 0.0
        %v1195 = vmax.f32 %v1034, 0.0
        %v1196 = vmax.f32 %v1150, 0.0
        %v1197 = vmax.f32 %v1037, 0.0
        %v1198 = vmax.f32 %v1153, 0.0
        %v1199 = vmax.f32 %v1039, 0.0
        %v1200 = vmax.f32 %v1155, 0.0
        %v1201 = vmax.f32 %v1042, 0.0
        %v1202 = vmax.f32 %v1158, 0.0
        %v1203 = vmax.f32 %v1044, 0.0
        %v1204 = vmax.f32 %v1160, 0.0
        %v1205 = vmax.f32 %v1047, 0.0
        %v1206 = vmax.f32 %v1163, 0.0
        %v1207 = vmax.f32 %v1049, 0.0
        %v1208 = vmax.f32 %v1165, 0.0
        %v1209 = vmax.f32 %v1052, 0.0
        %v1210 = vmax.f32 %v1168, 0.0
        %v1211 = vmax.f32 %v1054, 0.0
        %v1212 = vmax.f32 %v1170, 0.0
        %v1213 = vmax.f32 %v1057, 0.0
        %v1214 = vmax.f32 %v1173, 0.0
        %v1215 = vmax.f32 %v1059, 0.0
        %v1216 = vmax.f32 %v1175, 0.0
        %v1217 = vmax.f32 %v1062, 0.0
        %v1218 = vmax.f32 %v1178, 0.0
        %v1219 = vpack.c.bf16 %v1183, %v1181
        %v1220 = vpack.c.bf16 %v1184, %v1182
        %v1221 = vpack.c.bf16 %v1187, %v1185
        %v1222 = vpack.c.bf16 %v1188, %v1186
        %v1223 = vpack.c.bf16 %v1191, %v1189
        %v1224 = vpack.c.bf16 %v1192, %v1190
        %v1225 = vpack.c.bf16 %v1195, %v1193
        %v1226 = vpack.c.bf16 %v1196, %v1194
        %v1227 = vpack.c.bf16 %v1199, %v1197
        %v1228 = vpack.c.bf16 %v1200, %v1198
        %v1229 = vpack.c.bf16 %v1203, %v1201
        %v1230 = vpack.c.bf16 %v1204, %v1202
        %v1231 = vpack.c.bf16 %v1207, %v1205
        %v1232 = vpack.c.bf16 %v1208, %v1206
        %v1233 = vpack.c.bf16 %v1211, %v1209
        %v1234 = vpack.c.bf16 %v1212, %v1210
        %v1235 = vpack.c.bf16 %v1215, %v1213
        %v1236 = vpack.c.bf16 %v1216, %v1214
        %v1237 = vpack.c.bf16 %v1217, %v1217
        %v1238 = vpack.c.bf16 %v1218, %v1218
        %v1239 = vld [vmem:[%s5] sm:$0xff]
        %v1240 = vld [vmem:[%s5 + $0x8] sm:$0xff]
        %v1241 = vld [vmem:[%s5 + $0x10] sm:$0xff]
        %v1242 = vld [vmem:[%s5 + $0x18] sm:$0xff]
        %v1243 = vld [vmem:[%s5 + $0x20] sm:$0xff]
        %v1244 = vld [vmem:[%s5 + $0x28] sm:$0xff]
        %v1245 = vld [vmem:[%s5 + $0x30] sm:$0xff]
        %v1246 = vld [vmem:[%s5 + $0x38] sm:$0xff]
        %v1247 = vld [vmem:[%s5 + $0x40] sm:$0xff]
        %v1248 = vld [vmem:[%s5 + $0x48] sm:$0xff]
        %v1249 = vld [vmem:[%s5 + $0x50] sm:$0xff]
        %v1250 = vld [vmem:[%s5 + $0x58] sm:$0xff]
        %v1251 = vld [vmem:[%s5 + $0x60] sm:$0xff]
        %v1252 = vld [vmem:[%s5 + $0x68] sm:$0xff]
        %v1253 = vld [vmem:[%s5 + $0x70] sm:$0xff]
        %v1254 = vld [vmem:[%s5 + $0x78] sm:$0xff]
        %v1255 = vld [vmem:[%s5 + $0x80] sm:$0xff]
        %v1256 = vld [vmem:[%s5 + $0x88] sm:$0xff]
        %v1257 = vld [vmem:[%s5 + $0x90] sm:$0xff]
        %v1258 = vld [vmem:[%s5 + $0x98] sm:$0xff]
        %v1259 = vld [vmem:[%s5 + $0xa0] sm:$0xff]
        %v1260 = vld [vmem:[%s5 + $0xa8] sm:$0xff]
        %v1261 = vld [vmem:[%s5 + $0xb0] sm:$0xff]
        %v1262 = vld [vmem:[%s5 + $0xb8] sm:$0xff]
        %v1263 = vld [vmem:[%s5 + $0xc0] sm:$0xff]
        %v1264 = vld [vmem:[%s5 + $0xc8] sm:$0xff]
        %v1265 = vld [vmem:[%s5 + $0xd0] sm:$0xff]
        %v1266 = vld [vmem:[%s5 + $0xd8] sm:$0xff]
        %v1267 = vld [vmem:[%s5 + $0xe0] sm:$0xff]
        %v1268 = vld [vmem:[%s5 + $0xe8] sm:$0xff]
        %v1269 = vld [vmem:[%s5 + $0xf0] sm:$0xff]
        %v1270 = vld [vmem:[%s5 + $0xf8] sm:$0xff]
        %v1271 = vld [vmem:[%s6] sm:$0x3]
        %v1273 = vperm.slane %v1271, 0
        %v1274 = vperm.slane %v1271, 1
        %v1309 = vunpack.c.l.b16 %v1239
        %v1310 = vunpack.c.h.b16 %v1239
        %v1311 = vunpack.c.l.b16 %v1240
        %v1312 = vunpack.c.h.b16 %v1240
        %v1313 = vunpack.c.l.b16 %v1241
        %v1314 = vunpack.c.h.b16 %v1241
        %v1315 = vunpack.c.l.b16 %v1242
        %v1316 = vunpack.c.h.b16 %v1242
        %v1317 = vunpack.c.l.b16 %v1243
        %v1318 = vunpack.c.h.b16 %v1243
        %v1319 = vunpack.c.l.b16 %v1244
        %v1320 = vunpack.c.h.b16 %v1244
        %v1321 = vunpack.c.l.b16 %v1245
        %v1322 = vunpack.c.h.b16 %v1245
        %v1323 = vunpack.c.l.b16 %v1246
        %v1324 = vunpack.c.h.b16 %v1246
        %v1325 = vunpack.c.l.b16 %v1247
        %v1326 = vunpack.c.h.b16 %v1247
        %v1327 = vunpack.c.l.b16 %v1248
        %v1328 = vunpack.c.h.b16 %v1248
        %v1329 = vunpack.c.l.b16 %v1249
        %v1330 = vunpack.c.h.b16 %v1249
        %v1331 = vunpack.c.l.b16 %v1250
        %v1332 = vunpack.c.h.b16 %v1250
        %v1333 = vunpack.c.l.b16 %v1251
        %v1334 = vunpack.c.h.b16 %v1251
        %v1335 = vunpack.c.l.b16 %v1252
        %v1336 = vunpack.c.h.b16 %v1252
        %v1337 = vunpack.c.l.b16 %v1253
        %v1338 = vunpack.c.h.b16 %v1253
        %v1339 = vunpack.c.l.b16 %v1254
        %v1340 = vunpack.c.h.b16 %v1254
        %v1341 = vunpack.c.l.b16 %v1255
        %v1342 = vunpack.c.h.b16 %v1255
        %v1343 = vunpack.c.l.b16 %v1256
        %v1344 = vunpack.c.h.b16 %v1256
        %v1345 = vunpack.c.l.b16 %v1257
        %v1346 = vunpack.c.h.b16 %v1257
        %v1347 = vunpack.c.l.b16 %v1258
        %v1348 = vunpack.c.h.b16 %v1258
        %v1349 = vunpack.c.l.b16 %v1259
        %v1350 = vunpack.c.h.b16 %v1259
        %v1351 = vunpack.c.l.b16 %v1260
        %v1352 = vunpack.c.h.b16 %v1260
        %v1353 = vunpack.c.l.b16 %v1261
        %v1354 = vunpack.c.h.b16 %v1261
        %v1355 = vunpack.c.l.b16 %v1262
        %v1356 = vunpack.c.h.b16 %v1262
        %v1357 = vunpack.c.l.b16 %v1263
        %v1358 = vunpack.c.h.b16 %v1263
        %v1359 = vunpack.c.l.b16 %v1264
        %v1360 = vunpack.c.h.b16 %v1264
        %v1361 = vunpack.c.l.b16 %v1265
        %v1362 = vunpack.c.h.b16 %v1265
        %v1363 = vunpack.c.l.b16 %v1266
        %v1364 = vunpack.c.h.b16 %v1266
        %v1365 = vunpack.c.l.b16 %v1267
        %v1366 = vunpack.c.h.b16 %v1267
        %v1367 = vunpack.c.l.b16 %v1268
        %v1368 = vunpack.c.h.b16 %v1268
        %v1369 = vunpack.c.l.b16 %v1269
        %v1370 = vunpack.c.h.b16 %v1269
        %v1371 = vunpack.c.l.b16 %v1270
        %v1372 = vunpack.c.h.b16 %v1270
        %v1373 = vpack.c.b16 %v1311, %v1309
        %v1374 = vpack.c.b16 %v1312, %v1310
        %v1375 = vpack.c.b16 %v1315, %v1313
        %v1376 = vpack.c.b16 %v1316, %v1314
        %v1377 = vpack.c.b16 %v1319, %v1317
        %v1378 = vpack.c.b16 %v1320, %v1318
        %v1379 = vpack.c.b16 %v1323, %v1321
        %v1380 = vpack.c.b16 %v1324, %v1322
        %v1381 = vpack.c.b16 %v1327, %v1325
        %v1382 = vpack.c.b16 %v1328, %v1326
        %v1383 = vpack.c.b16 %v1331, %v1329
        %v1384 = vpack.c.b16 %v1332, %v1330
        %v1385 = vpack.c.b16 %v1335, %v1333
        %v1386 = vpack.c.b16 %v1336, %v1334
        %v1387 = vpack.c.b16 %v1339, %v1337
        %v1388 = vpack.c.b16 %v1340, %v1338
        %v1389 = vpack.c.b16 %v1343, %v1341
        %v1390 = vpack.c.b16 %v1344, %v1342
        %v1391 = vpack.c.b16 %v1347, %v1345
        %v1392 = vpack.c.b16 %v1348, %v1346
        %v1393 = vpack.c.b16 %v1351, %v1349
        %v1394 = vpack.c.b16 %v1352, %v1350
        %v1395 = vpack.c.b16 %v1355, %v1353
        %v1396 = vpack.c.b16 %v1356, %v1354
        %v1397 = vpack.c.b16 %v1359, %v1357
        %v1398 = vpack.c.b16 %v1360, %v1358
        %v1399 = vpack.c.b16 %v1363, %v1361
        %v1400 = vpack.c.b16 %v1364, %v1362
        %v1401 = vpack.c.b16 %v1367, %v1365
        %v1402 = vpack.c.b16 %v1368, %v1366
        %v1403 = vpack.c.b16 %v1371, %v1369
        %v1404 = vpack.c.b16 %v1372, %v1370
        %1437 = vmatpush.bf16.msra.mxu0 %v1387
        %1438 = vmatpush.bf16.msra.mxu0 %v1385
        %1439 = vmatpush.bf16.msra.mxu0 %v1383
        %1440 = vmatpush.bf16.msra.mxu0 %v1381
        %1441 = vmatpush.bf16.msra.mxu0 %v1379
        %1442 = vmatpush.bf16.msra.mxu0 %v1377
        %1443 = vmatpush.bf16.msra.mxu0 %v1375
        %1444 = vmatpush.bf16.msra.mxu0 %v1373
        %1445 = vmatmul.bf16.gmra.mxu0 %v1219
        %v1446 = vpop.f32.mrf.mxu0
        %v1447 = vadd.f32 %v1273, %v1446
        %v1448 = vpop.f32.mrf.mxu0
        %v1449 = vadd.f32 %v1273, %v1448
        %1450 = vmatmul.bf16.gmra.mxu0 %v1221
        %v1451 = vpop.f32.mrf.mxu0
        %v1452 = vadd.f32 %v1273, %v1451
        %v1453 = vpop.f32.mrf.mxu0
        %v1454 = vadd.f32 %v1273, %v1453
        %1455 = vmatmul.bf16.gmra.mxu0 %v1223
        %v1456 = vpop.f32.mrf.mxu0
        %v1457 = vadd.f32 %v1273, %v1456
        %v1458 = vpop.f32.mrf.mxu0
        %v1459 = vadd.f32 %v1273, %v1458
        %1460 = vmatmul.bf16.gmra.mxu0 %v1225
        %v1461 = vpop.f32.mrf.mxu0
        %v1462 = vadd.f32 %v1273, %v1461
        %v1463 = vpop.f32.mrf.mxu0
        %v1464 = vadd.f32 %v1273, %v1463
        %1465 = vmatmul.bf16.gmra.mxu0 %v1227
        %v1466 = vpop.f32.mrf.mxu0
        %v1467 = vadd.f32 %v1273, %v1466
        %v1468 = vpop.f32.mrf.mxu0
        %v1469 = vadd.f32 %v1273, %v1468
        %1470 = vmatmul.bf16.gmra.mxu0 %v1229
        %v1471 = vpop.f32.mrf.mxu0
        %v1472 = vadd.f32 %v1273, %v1471
        %v1473 = vpop.f32.mrf.mxu0
        %v1474 = vadd.f32 %v1273, %v1473
        %1475 = vmatmul.bf16.gmra.mxu0 %v1231
        %v1476 = vpop.f32.mrf.mxu0
        %v1477 = vadd.f32 %v1273, %v1476
        %v1478 = vpop.f32.mrf.mxu0
        %v1479 = vadd.f32 %v1273, %v1478
        %1480 = vmatmul.bf16.gmra.mxu0 %v1233
        %v1481 = vpop.f32.mrf.mxu0
        %v1482 = vadd.f32 %v1273, %v1481
        %v1483 = vpop.f32.mrf.mxu0
        %v1484 = vadd.f32 %v1273, %v1483
        %1485 = vmatmul.bf16.gmra.mxu0 %v1235
        %v1486 = vpop.f32.mrf.mxu0
        %v1487 = vadd.f32 %v1273, %v1486
        %v1488 = vpop.f32.mrf.mxu0
        %v1489 = vadd.f32 %v1273, %v1488
        %1490 = vmatmul.bf16.gmra.mxu0 %v1237
        %v1491 = vpop.f32.mrf.mxu0
        %v1492 = vadd.f32 %v1273, %v1491
        %v1493 = vpop.f32.mrf.mxu0
        %1494 = vdwg.mxu0
        %1495 = vmatpush.bf16.msra.mxu0 %v1403
        %1496 = vmatpush.bf16.msra.mxu0 %v1401
        %1497 = vmatpush.bf16.msra.mxu0 %v1399
        %1498 = vmatpush.bf16.msra.mxu0 %v1397
        %1499 = vmatpush.bf16.msra.mxu0 %v1395
        %1500 = vmatpush.bf16.msra.mxu0 %v1393
        %1501 = vmatpush.bf16.msra.mxu0 %v1391
        %1502 = vmatpush.bf16.msra.mxu0 %v1389
        %1503 = vmatmul.bf16.gmra.mxu0 %v1220
        %v1504 = vpop.f32.mrf.mxu0
        %v1505 = vadd.f32 %v1447, %v1504
        %v1506 = vpop.f32.mrf.mxu0
        %v1507 = vadd.f32 %v1449, %v1506
        %1508 = vmatmul.bf16.gmra.mxu0 %v1222
        %v1509 = vpop.f32.mrf.mxu0
        %v1510 = vadd.f32 %v1452, %v1509
        %v1511 = vpop.f32.mrf.mxu0
        %v1512 = vadd.f32 %v1454, %v1511
        %1513 = vmatmul.bf16.gmra.mxu0 %v1224
        %v1514 = vpop.f32.mrf.mxu0
        %v1515 = vadd.f32 %v1457, %v1514
        %v1516 = vpop.f32.mrf.mxu0
        %v1517 = vadd.f32 %v1459, %v1516
        %1518 = vmatmul.bf16.gmra.mxu0 %v1226
        %v1519 = vpop.f32.mrf.mxu0
        %v1520 = vadd.f32 %v1462, %v1519
        %v1521 = vpop.f32.mrf.mxu0
        %v1522 = vadd.f32 %v1464, %v1521
        %1523 = vmatmul.bf16.gmra.mxu0 %v1228
        %v1524 = vpop.f32.mrf.mxu0
        %v1525 = vadd.f32 %v1467, %v1524
        %v1526 = vpop.f32.mrf.mxu0
        %v1527 = vadd.f32 %v1469, %v1526
        %1528 = vmatmul.bf16.gmra.mxu0 %v1230
        %v1529 = vpop.f32.mrf.mxu0
        %v1530 = vadd.f32 %v1472, %v1529
        %v1531 = vpop.f32.mrf.mxu0
        %v1532 = vadd.f32 %v1474, %v1531
        %1533 = vmatmul.bf16.gmra.mxu0 %v1232
        %v1534 = vpop.f32.mrf.mxu0
        %v1535 = vadd.f32 %v1477, %v1534
        %v1536 = vpop.f32.mrf.mxu0
        %v1537 = vadd.f32 %v1479, %v1536
        %1538 = vmatmul.bf16.gmra.mxu0 %v1234
        %v1539 = vpop.f32.mrf.mxu0
        %v1540 = vadd.f32 %v1482, %v1539
        %v1541 = vpop.f32.mrf.mxu0
        %v1542 = vadd.f32 %v1484, %v1541
        %1543 = vmatmul.bf16.gmra.mxu0 %v1236
        %v1544 = vpop.f32.mrf.mxu0
        %v1545 = vadd.f32 %v1487, %v1544
        %v1546 = vpop.f32.mrf.mxu0
        %v1547 = vadd.f32 %v1489, %v1546
        %1548 = vmatmul.bf16.gmra.mxu0 %v1238
        %v1549 = vpop.f32.mrf.mxu0
        %v1550 = vadd.f32 %v1492, %v1549
        %v1551 = vpop.f32.mrf.mxu0
        %1552 = vdwg.mxu0
        %1553 = vmatpush.bf16.msra.mxu0 %v1388
        %1554 = vmatpush.bf16.msra.mxu0 %v1386
        %1555 = vmatpush.bf16.msra.mxu0 %v1384
        %1556 = vmatpush.bf16.msra.mxu0 %v1382
        %1557 = vmatpush.bf16.msra.mxu0 %v1380
        %1558 = vmatpush.bf16.msra.mxu0 %v1378
        %1559 = vmatpush.bf16.msra.mxu0 %v1376
        %1560 = vmatpush.bf16.msra.mxu0 %v1374
        %1561 = vmatmul.bf16.gmra.mxu0 %v1219
        %v1562 = vpop.f32.mrf.mxu0
        %v1563 = vadd.f32 %v1274, %v1562
        %v1564 = vpop.f32.mrf.mxu0
        %v1565 = vadd.f32 %v1274, %v1564
        %1566 = vmatmul.bf16.gmra.mxu0 %v1221
        %v1567 = vpop.f32.mrf.mxu0
        %v1568 = vadd.f32 %v1274, %v1567
        %v1569 = vpop.f32.mrf.mxu0
        %v1570 = vadd.f32 %v1274, %v1569
        %1571 = vmatmul.bf16.gmra.mxu0 %v1223
        %v1572 = vpop.f32.mrf.mxu0
        %v1573 = vadd.f32 %v1274, %v1572
        %v1574 = vpop.f32.mrf.mxu0
        %v1575 = vadd.f32 %v1274, %v1574
        %1576 = vmatmul.bf16.gmra.mxu0 %v1225
        %v1577 = vpop.f32.mrf.mxu0
        %v1578 = vadd.f32 %v1274, %v1577
        %v1579 = vpop.f32.mrf.mxu0
        %v1580 = vadd.f32 %v1274, %v1579
        %1581 = vmatmul.bf16.gmra.mxu0 %v1227
        %v1582 = vpop.f32.mrf.mxu0
        %v1583 = vadd.f32 %v1274, %v1582
        %v1584 = vpop.f32.mrf.mxu0
        %v1585 = vadd.f32 %v1274, %v1584
        %1586 = vmatmul.bf16.gmra.mxu0 %v1229
        %v1587 = vpop.f32.mrf.mxu0
        %v1588 = vadd.f32 %v1274, %v1587
        %v1589 = vpop.f32.mrf.mxu0
        %v1590 = vadd.f32 %v1274, %v1589
        %1591 = vmatmul.bf16.gmra.mxu0 %v1231
        %v1592 = vpop.f32.mrf.mxu0
        %v1593 = vadd.f32 %v1274, %v1592
        %v1594 = vpop.f32.mrf.mxu0
        %v1595 = vadd.f32 %v1274, %v1594
        %1596 = vmatmul.bf16.gmra.mxu0 %v1233
        %v1597 = vpop.f32.mrf.mxu0
        %v1598 = vadd.f32 %v1274, %v1597
        %v1599 = vpop.f32.mrf.mxu0
        %v1600 = vadd.f32 %v1274, %v1599
        %1601 = vmatmul.bf16.gmra.mxu0 %v1235
        %v1602 = vpop.f32.mrf.mxu0
        %v1603 = vadd.f32 %v1274, %v1602
        %v1604 = vpop.f32.mrf.mxu0
        %v1605 = vadd.f32 %v1274, %v1604
        %1606 = vmatmul.bf16.gmra.mxu0 %v1237
        %v1607 = vpop.f32.mrf.mxu0
        %v1608 = vadd.f32 %v1274, %v1607
        %v1609 = vpop.f32.mrf.mxu0
        %1610 = vdwg.mxu0
        %1611 = vmatpush.bf16.msra.mxu0 %v1404
        %1612 = vmatpush.bf16.msra.mxu0 %v1402
        %1613 = vmatpush.bf16.msra.mxu0 %v1400
        %1614 = vmatpush.bf16.msra.mxu0 %v1398
        %1615 = vmatpush.bf16.msra.mxu0 %v1396
        %1616 = vmatpush.bf16.msra.mxu0 %v1394
        %1617 = vmatpush.bf16.msra.mxu0 %v1392
        %1618 = vmatpush.bf16.msra.mxu0 %v1390
        %1619 = vmatmul.bf16.gmra.mxu0 %v1220
        %v1620 = vpop.f32.mrf.mxu0
        %v1621 = vadd.f32 %v1563, %v1620
        %v1622 = vpop.f32.mrf.mxu0
        %v1623 = vadd.f32 %v1565, %v1622
        %1624 = vmatmul.bf16.gmra.mxu0 %v1222
        %v1625 = vpop.f32.mrf.mxu0
        %v1626 = vadd.f32 %v1568, %v1625
        %v1627 = vpop.f32.mrf.mxu0
        %v1628 = vadd.f32 %v1570, %v1627
        %1629 = vmatmul.bf16.gmra.mxu0 %v1224
        %v1630 = vpop.f32.mrf.mxu0
        %v1631 = vadd.f32 %v1573, %v1630
        %v1632 = vpop.f32.mrf.mxu0
        %v1633 = vadd.f32 %v1575, %v1632
        %1634 = vmatmul.bf16.gmra.mxu0 %v1226
        %v1635 = vpop.f32.mrf.mxu0
        %v1636 = vadd.f32 %v1578, %v1635
        %v1637 = vpop.f32.mrf.mxu0
        %v1638 = vadd.f32 %v1580, %v1637
        %1639 = vmatmul.bf16.gmra.mxu0 %v1228
        %v1640 = vpop.f32.mrf.mxu0
        %v1641 = vadd.f32 %v1583, %v1640
        %v1642 = vpop.f32.mrf.mxu0
        %v1643 = vadd.f32 %v1585, %v1642
        %1644 = vmatmul.bf16.gmra.mxu0 %v1230
        %v1645 = vpop.f32.mrf.mxu0
        %v1646 = vadd.f32 %v1588, %v1645
        %v1647 = vpop.f32.mrf.mxu0
        %v1648 = vadd.f32 %v1590, %v1647
        %1649 = vmatmul.bf16.gmra.mxu0 %v1232
        %v1650 = vpop.f32.mrf.mxu0
        %v1651 = vadd.f32 %v1593, %v1650
        %v1652 = vpop.f32.mrf.mxu0
        %v1653 = vadd.f32 %v1595, %v1652
        %1654 = vmatmul.bf16.gmra.mxu0 %v1234
        %v1655 = vpop.f32.mrf.mxu0
        %v1656 = vadd.f32 %v1598, %v1655
        %v1657 = vpop.f32.mrf.mxu0
        %v1658 = vadd.f32 %v1600, %v1657
        %1659 = vmatmul.bf16.gmra.mxu0 %v1236
        %v1660 = vpop.f32.mrf.mxu0
        %v1661 = vadd.f32 %v1603, %v1660
        %v1662 = vpop.f32.mrf.mxu0
        %v1663 = vadd.f32 %v1605, %v1662
        %1664 = vmatmul.bf16.gmra.mxu0 %v1238
        %v1665 = vpop.f32.mrf.mxu0
        %v1666 = vadd.f32 %v1608, %v1665
        %v1667 = vpop.f32.mrf.mxu0
        %1668 = vdwg.mxu0
        %v1669 = vmax.f32 %v1505, 0.0
        %v1670 = vmax.f32 %v1621, 0.0
        %v1671 = vmax.f32 %v1507, 0.0
        %v1672 = vmax.f32 %v1623, 0.0
        %v1673 = vmax.f32 %v1510, 0.0
        %v1674 = vmax.f32 %v1626, 0.0
        %v1675 = vmax.f32 %v1512, 0.0
        %v1676 = vmax.f32 %v1628, 0.0
        %v1677 = vmax.f32 %v1515, 0.0
        %v1678 = vmax.f32 %v1631, 0.0
        %v1679 = vmax.f32 %v1517, 0.0
        %v1680 = vmax.f32 %v1633, 0.0
        %v1681 = vmax.f32 %v1520, 0.0
        %v1682 = vmax.f32 %v1636, 0.0
        %v1683 = vmax.f32 %v1522, 0.0
        %v1684 = vmax.f32 %v1638, 0.0
        %v1685 = vmax.f32 %v1525, 0.0
        %v1686 = vmax.f32 %v1641, 0.0
        %v1687 = vmax.f32 %v1527, 0.0
        %v1688 = vmax.f32 %v1643, 0.0
        %v1689 = vmax.f32 %v1530, 0.0
        %v1690 = vmax.f32 %v1646, 0.0
        %v1691 = vmax.f32 %v1532, 0.0
        %v1692 = vmax.f32 %v1648, 0.0
        %v1693 = vmax.f32 %v1535, 0.0
        %v1694 = vmax.f32 %v1651, 0.0
        %v1695 = vmax.f32 %v1537, 0.0
        %v1696 = vmax.f32 %v1653, 0.0
        %v1697 = vmax.f32 %v1540, 0.0
        %v1698 = vmax.f32 %v1656, 0.0
        %v1699 = vmax.f32 %v1542, 0.0
        %v1700 = vmax.f32 %v1658, 0.0
        %v1701 = vmax.f32 %v1545, 0.0
        %v1702 = vmax.f32 %v1661, 0.0
        %v1703 = vmax.f32 %v1547, 0.0
        %v1704 = vmax.f32 %v1663, 0.0
        %v1705 = vmax.f32 %v1550, 0.0
        %v1706 = vmax.f32 %v1666, 0.0
        %v1707 = vpack.c.bf16 %v1671, %v1669
        %v1708 = vpack.c.bf16 %v1672, %v1670
        %v1709 = vpack.c.bf16 %v1675, %v1673
        %v1710 = vpack.c.bf16 %v1676, %v1674
        %v1711 = vpack.c.bf16 %v1679, %v1677
        %v1712 = vpack.c.bf16 %v1680, %v1678
        %v1713 = vpack.c.bf16 %v1683, %v1681
        %v1714 = vpack.c.bf16 %v1684, %v1682
        %v1715 = vpack.c.bf16 %v1687, %v1685
        %v1716 = vpack.c.bf16 %v1688, %v1686
        %v1717 = vpack.c.bf16 %v1691, %v1689
        %v1718 = vpack.c.bf16 %v1692, %v1690
        %v1719 = vpack.c.bf16 %v1695, %v1693
        %v1720 = vpack.c.bf16 %v1696, %v1694
        %v1721 = vpack.c.bf16 %v1699, %v1697
        %v1722 = vpack.c.bf16 %v1700, %v1698
        %v1723 = vpack.c.bf16 %v1703, %v1701
        %v1724 = vpack.c.bf16 %v1704, %v1702
        %v1725 = vpack.c.bf16 %v1705, %v1705
        %v1726 = vpack.c.bf16 %v1706, %v1706
        %v1727 = vld [vmem:[#allocation5] sm:$0xff]
        %v1728 = vld [vmem:[#allocation5 + $0x8] sm:$0xff]
        %v1729 = vld [vmem:[#allocation5 + $0x10] sm:$0xff]
        %v1730 = vld [vmem:[#allocation5 + $0x18] sm:$0xff]
        %v1731 = vld [vmem:[#allocation5 + $0x20] sm:$0xff]
        %v1732 = vld [vmem:[#allocation5 + $0x28] sm:$0xff]
        %v1733 = vld [vmem:[#allocation5 + $0x30] sm:$0xff]
        %v1734 = vld [vmem:[#allocation5 + $0x38] sm:$0xff]
        %v1735 = vld [vmem:[#allocation5 + $0x40] sm:$0xff]
        %v1736 = vld [vmem:[#allocation5 + $0x48] sm:$0xff]
        %v1737 = vld [vmem:[#allocation5 + $0x50] sm:$0xff]
        %v1738 = vld [vmem:[#allocation5 + $0x58] sm:$0xff]
        %v1739 = vld [vmem:[#allocation5 + $0x60] sm:$0xff]
        %v1740 = vld [vmem:[#allocation5 + $0x68] sm:$0xff]
        %v1741 = vld [vmem:[#allocation5 + $0x70] sm:$0xff]
        %v1742 = vld [vmem:[#allocation5 + $0x78] sm:$0xff]
        %v1743 = vld [vmem:[#allocation5 + $0x80] sm:$0xff]
        %v1744 = vld [vmem:[#allocation5 + $0x88] sm:$0xff]
        %v1745 = vld [vmem:[#allocation5 + $0x90] sm:$0xff]
        %v1746 = vld [vmem:[#allocation5 + $0x98] sm:$0xff]
        %v1747 = vld [vmem:[#allocation5 + $0xa0] sm:$0xff]
        %v1748 = vld [vmem:[#allocation5 + $0xa8] sm:$0xff]
        %v1749 = vld [vmem:[#allocation5 + $0xb0] sm:$0xff]
        %v1750 = vld [vmem:[#allocation5 + $0xb8] sm:$0xff]
        %v1751 = vld [vmem:[#allocation5 + $0xc0] sm:$0xff]
        %v1752 = vld [vmem:[#allocation5 + $0xc8] sm:$0xff]
        %v1753 = vld [vmem:[#allocation5 + $0xd0] sm:$0xff]
        %v1754 = vld [vmem:[#allocation5 + $0xd8] sm:$0xff]
        %v1755 = vld [vmem:[#allocation5 + $0xe0] sm:$0xff]
        %v1756 = vld [vmem:[#allocation5 + $0xe8] sm:$0xff]
        %v1757 = vld [vmem:[#allocation5 + $0xf0] sm:$0xff]
        %v1758 = vld [vmem:[#allocation5 + $0xf8] sm:$0xff]
        %v1759 = vld [vmem:[%s8] sm:$0x3]
        %v1761 = vperm.slane %v1759, 0
        %v1762 = vperm.slane %v1759, 1
        %v1797 = vunpack.c.l.b16 %v1727
        %v1798 = vunpack.c.h.b16 %v1727
        %v1799 = vunpack.c.l.b16 %v1728
        %v1800 = vunpack.c.h.b16 %v1728
        %v1801 = vunpack.c.l.b16 %v1729
        %v1802 = vunpack.c.h.b16 %v1729
        %v1803 = vunpack.c.l.b16 %v1730
        %v1804 = vunpack.c.h.b16 %v1730
        %v1805 = vunpack.c.l.b16 %v1731
        %v1806 = vunpack.c.h.b16 %v1731
        %v1807 = vunpack.c.l.b16 %v1732
        %v1808 = vunpack.c.h.b16 %v1732
        %v1809 = vunpack.c.l.b16 %v1733
        %v1810 = vunpack.c.h.b16 %v1733
        %v1811 = vunpack.c.l.b16 %v1734
        %v1812 = vunpack.c.h.b16 %v1734
        %v1813 = vunpack.c.l.b16 %v1735
        %v1814 = vunpack.c.h.b16 %v1735
        %v1815 = vunpack.c.l.b16 %v1736
        %v1816 = vunpack.c.h.b16 %v1736
        %v1817 = vunpack.c.l.b16 %v1737
        %v1818 = vunpack.c.h.b16 %v1737
        %v1819 = vunpack.c.l.b16 %v1738
        %v1820 = vunpack.c.h.b16 %v1738
        %v1821 = vunpack.c.l.b16 %v1739
        %v1822 = vunpack.c.h.b16 %v1739
        %v1823 = vunpack.c.l.b16 %v1740
        %v1824 = vunpack.c.h.b16 %v1740
        %v1825 = vunpack.c.l.b16 %v1741
        %v1826 = vunpack.c.h.b16 %v1741
        %v1827 = vunpack.c.l.b16 %v1742
        %v1828 = vunpack.c.h.b16 %v1742
        %v1829 = vunpack.c.l.b16 %v1743
        %v1830 = vunpack.c.h.b16 %v1743
        %v1831 = vunpack.c.l.b16 %v1744
        %v1832 = vunpack.c.h.b16 %v1744
        %v1833 = vunpack.c.l.b16 %v1745
        %v1834 = vunpack.c.h.b16 %v1745
        %v1835 = vunpack.c.l.b16 %v1746
        %v1836 = vunpack.c.h.b16 %v1746
        %v1837 = vunpack.c.l.b16 %v1747
        %v1838 = vunpack.c.h.b16 %v1747
        %v1839 = vunpack.c.l.b16 %v1748
        %v1840 = vunpack.c.h.b16 %v1748
        %v1841 = vunpack.c.l.b16 %v1749
        %v1842 = vunpack.c.h.b16 %v1749
        %v1843 = vunpack.c.l.b16 %v1750
        %v1844 = vunpack.c.h.b16 %v1750
        %v1845 = vunpack.c.l.b16 %v1751
        %v1846 = vunpack.c.h.b16 %v1751
        %v1847 = vunpack.c.l.b16 %v1752
        %v1848 = vunpack.c.h.b16 %v1752
        %v1849 = vunpack.c.l.b16 %v1753
        %v1850 = vunpack.c.h.b16 %v1753
        %v1851 = vunpack.c.l.b16 %v1754
        %v1852 = vunpack.c.h.b16 %v1754
        %v1853 = vunpack.c.l.b16 %v1755
        %v1854 = vunpack.c.h.b16 %v1755
        %v1855 = vunpack.c.l.b16 %v1756
        %v1856 = vunpack.c.h.b16 %v1756
        %v1857 = vunpack.c.l.b16 %v1757
        %v1858 = vunpack.c.h.b16 %v1757
        %v1859 = vunpack.c.l.b16 %v1758
        %v1860 = vunpack.c.h.b16 %v1758
        %v1861 = vpack.c.b16 %v1799, %v1797
        %v1862 = vpack.c.b16 %v1800, %v1798
        %v1863 = vpack.c.b16 %v1803, %v1801
        %v1864 = vpack.c.b16 %v1804, %v1802
        %v1865 = vpack.c.b16 %v1807, %v1805
        %v1866 = vpack.c.b16 %v1808, %v1806
        %v1867 = vpack.c.b16 %v1811, %v1809
        %v1868 = vpack.c.b16 %v1812, %v1810
        %v1869 = vpack.c.b16 %v1815, %v1813
        %v1870 = vpack.c.b16 %v1816, %v1814
        %v1871 = vpack.c.b16 %v1819, %v1817
        %v1872 = vpack.c.b16 %v1820, %v1818
        %v1873 = vpack.c.b16 %v1823, %v1821
        %v1874 = vpack.c.b16 %v1824, %v1822
        %v1875 = vpack.c.b16 %v1827, %v1825
        %v1876 = vpack.c.b16 %v1828, %v1826
        %v1877 = vpack.c.b16 %v1831, %v1829
        %v1878 = vpack.c.b16 %v1832, %v1830
        %v1879 = vpack.c.b16 %v1835, %v1833
        %v1880 = vpack.c.b16 %v1836, %v1834
        %v1881 = vpack.c.b16 %v1839, %v1837
        %v1882 = vpack.c.b16 %v1840, %v1838
        %v1883 = vpack.c.b16 %v1843, %v1841
        %v1884 = vpack.c.b16 %v1844, %v1842
        %v1885 = vpack.c.b16 %v1847, %v1845
        %v1886 = vpack.c.b16 %v1848, %v1846
        %v1887 = vpack.c.b16 %v1851, %v1849
        %v1888 = vpack.c.b16 %v1852, %v1850
        %v1889 = vpack.c.b16 %v1855, %v1853
        %v1890 = vpack.c.b16 %v1856, %v1854
        %v1891 = vpack.c.b16 %v1859, %v1857
        %v1892 = vpack.c.b16 %v1860, %v1858
        %1925 = vmatpush.bf16.msra.mxu0 %v1875
        %1926 = vmatpush.bf16.msra.mxu0 %v1873
        %1927 = vmatpush.bf16.msra.mxu0 %v1871
        %1928 = vmatpush.bf16.msra.mxu0 %v1869
        %1929 = vmatpush.bf16.msra.mxu0 %v1867
        %1930 = vmatpush.bf16.msra.mxu0 %v1865
        %1931 = vmatpush.bf16.msra.mxu0 %v1863
        %1932 = vmatpush.bf16.msra.mxu0 %v1861
        %1933 = vmatmul.bf16.gmra.mxu0 %v1707
        %v1934 = vpop.f32.mrf.mxu0
        %v1935 = vadd.f32 %v1761, %v1934
        %v1936 = vpop.f32.mrf.mxu0
        %v1937 = vadd.f32 %v1761, %v1936
        %1938 = vmatmul.bf16.gmra.mxu0 %v1709
        %v1939 = vpop.f32.mrf.mxu0
        %v1940 = vadd.f32 %v1761, %v1939
        %v1941 = vpop.f32.mrf.mxu0
        %v1942 = vadd.f32 %v1761, %v1941
        %1943 = vmatmul.bf16.gmra.mxu0 %v1711
        %v1944 = vpop.f32.mrf.mxu0
        %v1945 = vadd.f32 %v1761, %v1944
        %v1946 = vpop.f32.mrf.mxu0
        %v1947 = vadd.f32 %v1761, %v1946
        %1948 = vmatmul.bf16.gmra.mxu0 %v1713
        %v1949 = vpop.f32.mrf.mxu0
        %v1950 = vadd.f32 %v1761, %v1949
        %v1951 = vpop.f32.mrf.mxu0
        %v1952 = vadd.f32 %v1761, %v1951
        %1953 = vmatmul.bf16.gmra.mxu0 %v1715
        %v1954 = vpop.f32.mrf.mxu0
        %v1955 = vadd.f32 %v1761, %v1954
        %v1956 = vpop.f32.mrf.mxu0
        %v1957 = vadd.f32 %v1761, %v1956
        %1958 = vmatmul.bf16.gmra.mxu0 %v1717
        %v1959 = vpop.f32.mrf.mxu0
        %v1960 = vadd.f32 %v1761, %v1959
        %v1961 = vpop.f32.mrf.mxu0
        %v1962 = vadd.f32 %v1761, %v1961
        %1963 = vmatmul.bf16.gmra.mxu0 %v1719
        %v1964 = vpop.f32.mrf.mxu0
        %v1965 = vadd.f32 %v1761, %v1964
        %v1966 = vpop.f32.mrf.mxu0
        %v1967 = vadd.f32 %v1761, %v1966
        %1968 = vmatmul.bf16.gmra.mxu0 %v1721
        %v1969 = vpop.f32.mrf.mxu0
        %v1970 = vadd.f32 %v1761, %v1969
        %v1971 = vpop.f32.mrf.mxu0
        %v1972 = vadd.f32 %v1761, %v1971
        %1973 = vmatmul.bf16.gmra.mxu0 %v1723
        %v1974 = vpop.f32.mrf.mxu0
        %v1975 = vadd.f32 %v1761, %v1974
        %v1976 = vpop.f32.mrf.mxu0
        %v1977 = vadd.f32 %v1761, %v1976
        %1978 = vmatmul.bf16.gmra.mxu0 %v1725
        %v1979 = vpop.f32.mrf.mxu0
        %v1980 = vadd.f32 %v1761, %v1979
        %v1981 = vpop.f32.mrf.mxu0
        %1982 = vdwg.mxu0
        %1983 = vmatpush.bf16.msra.mxu0 %v1891
        %1984 = vmatpush.bf16.msra.mxu0 %v1889
        %1985 = vmatpush.bf16.msra.mxu0 %v1887
        %1986 = vmatpush.bf16.msra.mxu0 %v1885
        %1987 = vmatpush.bf16.msra.mxu0 %v1883
        %1988 = vmatpush.bf16.msra.mxu0 %v1881
        %1989 = vmatpush.bf16.msra.mxu0 %v1879
        %1990 = vmatpush.bf16.msra.mxu0 %v1877
        %1991 = vmatmul.bf16.gmra.mxu0 %v1708
        %v1992 = vpop.f32.mrf.mxu0
        %v1993 = vadd.f32 %v1935, %v1992
        %v1994 = vpop.f32.mrf.mxu0
        %v1995 = vadd.f32 %v1937, %v1994
        %1996 = vmatmul.bf16.gmra.mxu0 %v1710
        %v1997 = vpop.f32.mrf.mxu0
        %v1998 = vadd.f32 %v1940, %v1997
        %v1999 = vpop.f32.mrf.mxu0
        %v2000 = vadd.f32 %v1942, %v1999
        %2001 = vmatmul.bf16.gmra.mxu0 %v1712
        %v2002 = vpop.f32.mrf.mxu0
        %v2003 = vadd.f32 %v1945, %v2002
        %v2004 = vpop.f32.mrf.mxu0
        %v2005 = vadd.f32 %v1947, %v2004
        %2006 = vmatmul.bf16.gmra.mxu0 %v1714
        %v2007 = vpop.f32.mrf.mxu0
        %v2008 = vadd.f32 %v1950, %v2007
        %v2009 = vpop.f32.mrf.mxu0
        %v2010 = vadd.f32 %v1952, %v2009
        %2011 = vmatmul.bf16.gmra.mxu0 %v1716
        %v2012 = vpop.f32.mrf.mxu0
        %v2013 = vadd.f32 %v1955, %v2012
        %v2014 = vpop.f32.mrf.mxu0
        %v2015 = vadd.f32 %v1957, %v2014
        %2016 = vmatmul.bf16.gmra.mxu0 %v1718
        %v2017 = vpop.f32.mrf.mxu0
        %v2018 = vadd.f32 %v1960, %v2017
        %v2019 = vpop.f32.mrf.mxu0
        %v2020 = vadd.f32 %v1962, %v2019
        %2021 = vmatmul.bf16.gmra.mxu0 %v1720
        %v2022 = vpop.f32.mrf.mxu0
        %v2023 = vadd.f32 %v1965, %v2022
        %v2024 = vpop.f32.mrf.mxu0
        %v2025 = vadd.f32 %v1967, %v2024
        %2026 = vmatmul.bf16.gmra.mxu0 %v1722
        %v2027 = vpop.f32.mrf.mxu0
        %v2028 = vadd.f32 %v1970, %v2027
        %v2029 = vpop.f32.mrf.mxu0
        %v2030 = vadd.f32 %v1972, %v2029
        %2031 = vmatmul.bf16.gmra.mxu0 %v1724
        %v2032 = vpop.f32.mrf.mxu0
        %v2033 = vadd.f32 %v1975, %v2032
        %v2034 = vpop.f32.mrf.mxu0
        %v2035 = vadd.f32 %v1977, %v2034
        %2036 = vmatmul.bf16.gmra.mxu0 %v1726
        %v2037 = vpop.f32.mrf.mxu0
        %v2038 = vadd.f32 %v1980, %v2037
        %v2039 = vpop.f32.mrf.mxu0
        %2040 = vdwg.mxu0
        %2041 = vmatpush.bf16.msra.mxu0 %v1876
        %2042 = vmatpush.bf16.msra.mxu0 %v1874
        %2043 = vmatpush.bf16.msra.mxu0 %v1872
        %2044 = vmatpush.bf16.msra.mxu0 %v1870
        %2045 = vmatpush.bf16.msra.mxu0 %v1868
        %2046 = vmatpush.bf16.msra.mxu0 %v1866
        %2047 = vmatpush.bf16.msra.mxu0 %v1864
        %2048 = vmatpush.bf16.msra.mxu0 %v1862
        %2049 = vmatmul.bf16.gmra.mxu0 %v1707
        %v2050 = vpop.f32.mrf.mxu0
        %v2051 = vadd.f32 %v1762, %v2050
        %v2052 = vpop.f32.mrf.mxu0
        %v2053 = vadd.f32 %v1762, %v2052
        %2054 = vmatmul.bf16.gmra.mxu0 %v1709
        %v2055 = vpop.f32.mrf.mxu0
        %v2056 = vadd.f32 %v1762, %v2055
        %v2057 = vpop.f32.mrf.mxu0
        %v2058 = vadd.f32 %v1762, %v2057
        %2059 = vmatmul.bf16.gmra.mxu0 %v1711
        %v2060 = vpop.f32.mrf.mxu0
        %v2061 = vadd.f32 %v1762, %v2060
        %v2062 = vpop.f32.mrf.mxu0
        %v2063 = vadd.f32 %v1762, %v2062
        %2064 = vmatmul.bf16.gmra.mxu0 %v1713
        %v2065 = vpop.f32.mrf.mxu0
        %v2066 = vadd.f32 %v1762, %v2065
        %v2067 = vpop.f32.mrf.mxu0
        %v2068 = vadd.f32 %v1762, %v2067
        %2069 = vmatmul.bf16.gmra.mxu0 %v1715
        %v2070 = vpop.f32.mrf.mxu0
        %v2071 = vadd.f32 %v1762, %v2070
        %v2072 = vpop.f32.mrf.mxu0
        %v2073 = vadd.f32 %v1762, %v2072
        %2074 = vmatmul.bf16.gmra.mxu0 %v1717
        %v2075 = vpop.f32.mrf.mxu0
        %v2076 = vadd.f32 %v1762, %v2075
        %v2077 = vpop.f32.mrf.mxu0
        %v2078 = vadd.f32 %v1762, %v2077
        %2079 = vmatmul.bf16.gmra.mxu0 %v1719
        %v2080 = vpop.f32.mrf.mxu0
        %v2081 = vadd.f32 %v1762, %v2080
        %v2082 = vpop.f32.mrf.mxu0
        %v2083 = vadd.f32 %v1762, %v2082
        %2084 = vmatmul.bf16.gmra.mxu0 %v1721
        %v2085 = vpop.f32.mrf.mxu0
        %v2086 = vadd.f32 %v1762, %v2085
        %v2087 = vpop.f32.mrf.mxu0
        %v2088 = vadd.f32 %v1762, %v2087
        %2089 = vmatmul.bf16.gmra.mxu0 %v1723
        %v2090 = vpop.f32.mrf.mxu0
        %v2091 = vadd.f32 %v1762, %v2090
        %v2092 = vpop.f32.mrf.mxu0
        %v2093 = vadd.f32 %v1762, %v2092
        %2094 = vmatmul.bf16.gmra.mxu0 %v1725
        %v2095 = vpop.f32.mrf.mxu0
        %v2096 = vadd.f32 %v1762, %v2095
        %v2097 = vpop.f32.mrf.mxu0
        %2098 = vdwg.mxu0
        %2099 = vmatpush.bf16.msra.mxu0 %v1892
        %2100 = vmatpush.bf16.msra.mxu0 %v1890
        %2101 = vmatpush.bf16.msra.mxu0 %v1888
        %2102 = vmatpush.bf16.msra.mxu0 %v1886
        %2103 = vmatpush.bf16.msra.mxu0 %v1884
        %2104 = vmatpush.bf16.msra.mxu0 %v1882
        %2105 = vmatpush.bf16.msra.mxu0 %v1880
        %2106 = vmatpush.bf16.msra.mxu0 %v1878
        %2107 = vmatmul.bf16.gmra.mxu0 %v1708
        %v2108 = vpop.f32.mrf.mxu0
        %v2109 = vadd.f32 %v2051, %v2108
        %v2110 = vpop.f32.mrf.mxu0
        %v2111 = vadd.f32 %v2053, %v2110
        %2112 = vmatmul.bf16.gmra.mxu0 %v1710
        %v2113 = vpop.f32.mrf.mxu0
        %v2114 = vadd.f32 %v2056, %v2113
        %v2115 = vpop.f32.mrf.mxu0
        %v2116 = vadd.f32 %v2058, %v2115
        %2117 = vmatmul.bf16.gmra.mxu0 %v1712
        %v2118 = vpop.f32.mrf.mxu0
        %v2119 = vadd.f32 %v2061, %v2118
        %v2120 = vpop.f32.mrf.mxu0
        %v2121 = vadd.f32 %v2063, %v2120
        %2122 = vmatmul.bf16.gmra.mxu0 %v1714
        %v2123 = vpop.f32.mrf.mxu0
        %v2124 = vadd.f32 %v2066, %v2123
        %v2125 = vpop.f32.mrf.mxu0
        %v2126 = vadd.f32 %v2068, %v2125
        %2127 = vmatmul.bf16.gmra.mxu0 %v1716
        %v2128 = vpop.f32.mrf.mxu0
        %v2129 = vadd.f32 %v2071, %v2128
        %v2130 = vpop.f32.mrf.mxu0
        %v2131 = vadd.f32 %v2073, %v2130
        %2132 = vmatmul.bf16.gmra.mxu0 %v1718
        %v2133 = vpop.f32.mrf.mxu0
        %v2134 = vadd.f32 %v2076, %v2133
        %v2135 = vpop.f32.mrf.mxu0
        %v2136 = vadd.f32 %v2078, %v2135
        %2137 = vmatmul.bf16.gmra.mxu0 %v1720
        %v2138 = vpop.f32.mrf.mxu0
        %v2139 = vadd.f32 %v2081, %v2138
        %v2140 = vpop.f32.mrf.mxu0
        %v2141 = vadd.f32 %v2083, %v2140
        %2142 = vmatmul.bf16.gmra.mxu0 %v1722
        %v2143 = vpop.f32.mrf.mxu0
        %v2144 = vadd.f32 %v2086, %v2143
        %v2145 = vpop.f32.mrf.mxu0
        %v2146 = vadd.f32 %v2088, %v2145
        %2147 = vmatmul.bf16.gmra.mxu0 %v1724
        %v2148 = vpop.f32.mrf.mxu0
        %v2149 = vadd.f32 %v2091, %v2148
        %v2150 = vpop.f32.mrf.mxu0
        %v2151 = vadd.f32 %v2093, %v2150
        %2152 = vmatmul.bf16.gmra.mxu0 %v1726
        %v2153 = vpop.f32.mrf.mxu0
        %v2154 = vadd.f32 %v2096, %v2153
        %v2155 = vpop.f32.mrf.mxu0
        %2156 = vdwg.mxu0
        %v2157 = vmax.f32 %v1993, 0.0
        %v2158 = vmax.f32 %v2109, 0.0
        %v2159 = vmax.f32 %v1995, 0.0
        %v2160 = vmax.f32 %v2111, 0.0
        %v2161 = vmax.f32 %v1998, 0.0
        %v2162 = vmax.f32 %v2114, 0.0
        %v2163 = vmax.f32 %v2000, 0.0
        %v2164 = vmax.f32 %v2116, 0.0
        %v2165 = vmax.f32 %v2003, 0.0
        %v2166 = vmax.f32 %v2119, 0.0
        %v2167 = vmax.f32 %v2005, 0.0
        %v2168 = vmax.f32 %v2121, 0.0
        %v2169 = vmax.f32 %v2008, 0.0
        %v2170 = vmax.f32 %v2124, 0.0
        %v2171 = vmax.f32 %v2010, 0.0
        %v2172 = vmax.f32 %v2126, 0.0
        %v2173 = vmax.f32 %v2013, 0.0
        %v2174 = vmax.f32 %v2129, 0.0
        %v2175 = vmax.f32 %v2015, 0.0
        %v2176 = vmax.f32 %v2131, 0.0
        %v2177 = vmax.f32 %v2018, 0.0
        %v2178 = vmax.f32 %v2134, 0.0
        %v2179 = vmax.f32 %v2020, 0.0
        %v2180 = vmax.f32 %v2136, 0.0
        %v2181 = vmax.f32 %v2023, 0.0
        %v2182 = vmax.f32 %v2139, 0.0
        %v2183 = vmax.f32 %v2025, 0.0
        %v2184 = vmax.f32 %v2141, 0.0
        %v2185 = vmax.f32 %v2028, 0.0
        %v2186 = vmax.f32 %v2144, 0.0
        %v2187 = vmax.f32 %v2030, 0.0
        %v2188 = vmax.f32 %v2146, 0.0
        %v2189 = vmax.f32 %v2033, 0.0
        %v2190 = vmax.f32 %v2149, 0.0
        %v2191 = vmax.f32 %v2035, 0.0
        %v2192 = vmax.f32 %v2151, 0.0
        %v2193 = vmax.f32 %v2038, 0.0
        %v2194 = vmax.f32 %v2154, 0.0
        %v2195 = vpack.c.bf16 %v2159, %v2157
        %v2196 = vpack.c.bf16 %v2160, %v2158
        %v2197 = vpack.c.bf16 %v2163, %v2161
        %v2198 = vpack.c.bf16 %v2164, %v2162
        %v2199 = vpack.c.bf16 %v2167, %v2165
        %v2200 = vpack.c.bf16 %v2168, %v2166
        %v2201 = vpack.c.bf16 %v2171, %v2169
        %v2202 = vpack.c.bf16 %v2172, %v2170
        %v2203 = vpack.c.bf16 %v2175, %v2173
        %v2204 = vpack.c.bf16 %v2176, %v2174
        %v2205 = vpack.c.bf16 %v2179, %v2177
        %v2206 = vpack.c.bf16 %v2180, %v2178
        %v2207 = vpack.c.bf16 %v2183, %v2181
        %v2208 = vpack.c.bf16 %v2184, %v2182
        %v2209 = vpack.c.bf16 %v2187, %v2185
        %v2210 = vpack.c.bf16 %v2188, %v2186
        %v2211 = vpack.c.bf16 %v2191, %v2189
        %v2212 = vpack.c.bf16 %v2192, %v2190
        %v2213 = vpack.c.bf16 %v2193, %v2193
        %v2214 = vpack.c.bf16 %v2194, %v2194
        %v2215 = vld [vmem:[#allocation7] sm:$0xf]
        %v2216 = vld [vmem:[#allocation7 + $0x4] sm:$0xf]
        %v2217 = vld [vmem:[#allocation7 + $0x8] sm:$0xf]
        %v2218 = vld [vmem:[#allocation7 + $0xc] sm:$0xf]
        %v2219 = vld [vmem:[#allocation7 + $0x10] sm:$0xf]
        %v2220 = vld [vmem:[#allocation7 + $0x14] sm:$0xf]
        %v2221 = vld [vmem:[#allocation7 + $0x18] sm:$0xf]
        %v2222 = vld [vmem:[#allocation7 + $0x1c] sm:$0xf]
        %v2223 = vld [vmem:[#allocation7 + $0x20] sm:$0xf]
        %v2224 = vld [vmem:[#allocation7 + $0x24] sm:$0xf]
        %v2225 = vld [vmem:[#allocation7 + $0x28] sm:$0xf]
        %v2226 = vld [vmem:[#allocation7 + $0x2c] sm:$0xf]
        %v2227 = vld [vmem:[#allocation7 + $0x30] sm:$0xf]
        %v2228 = vld [vmem:[#allocation7 + $0x34] sm:$0xf]
        %v2229 = vld [vmem:[#allocation7 + $0x38] sm:$0xf]
        %v2230 = vld [vmem:[#allocation7 + $0x3c] sm:$0xf]
        %v2231 = vld [vmem:[#allocation7 + $0x40] sm:$0xf]
        %v2232 = vld [vmem:[#allocation7 + $0x44] sm:$0xf]
        %v2233 = vld [vmem:[#allocation7 + $0x48] sm:$0xf]
        %v2234 = vld [vmem:[#allocation7 + $0x4c] sm:$0xf]
        %v2235 = vld [vmem:[#allocation7 + $0x50] sm:$0xf]
        %v2236 = vld [vmem:[#allocation7 + $0x54] sm:$0xf]
        %v2237 = vld [vmem:[#allocation7 + $0x58] sm:$0xf]
        %v2238 = vld [vmem:[#allocation7 + $0x5c] sm:$0xf]
        %v2239 = vld [vmem:[#allocation7 + $0x60] sm:$0xf]
        %v2240 = vld [vmem:[#allocation7 + $0x64] sm:$0xf]
        %v2241 = vld [vmem:[#allocation7 + $0x68] sm:$0xf]
        %v2242 = vld [vmem:[#allocation7 + $0x6c] sm:$0xf]
        %v2243 = vld [vmem:[#allocation7 + $0x70] sm:$0xf]
        %v2244 = vld [vmem:[#allocation7 + $0x74] sm:$0xf]
        %v2245 = vld [vmem:[#allocation7 + $0x78] sm:$0xf]
        %v2246 = vld [vmem:[#allocation7 + $0x7c] sm:$0xf]
        %v2247 = vld [vmem:[%s10] sm:$0x1]
        %v2249 = vperm.slane %v2247, 0
        %v2283 = vunpack.c.l.b16 %v2215
        %v2284 = vunpack.c.l.b16 %v2216
        %v2285 = vunpack.c.l.b16 %v2217
        %v2286 = vunpack.c.l.b16 %v2218
        %v2287 = vunpack.c.l.b16 %v2219
        %v2288 = vunpack.c.l.b16 %v2220
        %v2289 = vunpack.c.l.b16 %v2221
        %v2290 = vunpack.c.l.b16 %v2222
        %v2291 = vunpack.c.l.b16 %v2223
        %v2292 = vunpack.c.l.b16 %v2224
        %v2293 = vunpack.c.l.b16 %v2225
        %v2294 = vunpack.c.l.b16 %v2226
        %v2295 = vunpack.c.l.b16 %v2227
        %v2296 = vunpack.c.l.b16 %v2228
        %v2297 = vunpack.c.l.b16 %v2229
        %v2298 = vunpack.c.l.b16 %v2230
        %v2299 = vunpack.c.l.b16 %v2231
        %v2300 = vunpack.c.l.b16 %v2232
        %v2301 = vunpack.c.l.b16 %v2233
        %v2302 = vunpack.c.l.b16 %v2234
        %v2303 = vunpack.c.l.b16 %v2235
        %v2304 = vunpack.c.l.b16 %v2236
        %v2305 = vunpack.c.l.b16 %v2237
        %v2306 = vunpack.c.l.b16 %v2238
        %v2307 = vunpack.c.l.b16 %v2239
        %v2308 = vunpack.c.l.b16 %v2240
        %v2309 = vunpack.c.l.b16 %v2241
        %v2310 = vunpack.c.l.b16 %v2242
        %v2311 = vunpack.c.l.b16 %v2243
        %v2312 = vunpack.c.l.b16 %v2244
        %v2313 = vunpack.c.l.b16 %v2245
        %v2314 = vunpack.c.l.b16 %v2246
        %v2315 = vpack.c.b16 %v2284, %v2283
        %v2316 = vpack.c.b16 %v2286, %v2285
        %v2317 = vpack.c.b16 %v2288, %v2287
        %v2318 = vpack.c.b16 %v2290, %v2289
        %v2319 = vpack.c.b16 %v2292, %v2291
        %v2320 = vpack.c.b16 %v2294, %v2293
        %v2321 = vpack.c.b16 %v2296, %v2295
        %v2322 = vpack.c.b16 %v2298, %v2297
        %v2323 = vpack.c.b16 %v2300, %v2299
        %v2324 = vpack.c.b16 %v2302, %v2301
        %v2325 = vpack.c.b16 %v2304, %v2303
        %v2326 = vpack.c.b16 %v2306, %v2305
        %v2327 = vpack.c.b16 %v2308, %v2307
        %v2328 = vpack.c.b16 %v2310, %v2309
        %v2329 = vpack.c.b16 %v2312, %v2311
        %v2330 = vpack.c.b16 %v2314, %v2313
        %2347 = vmatpush.bf16.msra.mxu0 %v2322
        %2348 = vmatpush.bf16.msra.mxu0 %v2321
        %2349 = vmatpush.bf16.msra.mxu0 %v2320
        %2350 = vmatpush.bf16.msra.mxu0 %v2319
        %2351 = vmatpush.bf16.msra.mxu0 %v2318
        %2352 = vmatpush.bf16.msra.mxu0 %v2317
        %2353 = vmatpush.bf16.msra.mxu0 %v2316
        %2354 = vmatpush.bf16.msra.mxu0 %v2315
        %2355 = vmatmul.bf16.gmra.mxu0 %v2195
        %v2356 = vpop.f32.mrf.mxu0
        %v2357 = vadd.f32 %v2249, %v2356
        %v2358 = vpop.f32.mrf.mxu0
        %v2359 = vadd.f32 %v2249, %v2358
        %2360 = vmatmul.bf16.gmra.mxu0 %v2197
        %v2361 = vpop.f32.mrf.mxu0
        %v2362 = vadd.f32 %v2249, %v2361
        %v2363 = vpop.f32.mrf.mxu0
        %v2364 = vadd.f32 %v2249, %v2363
        %2365 = vmatmul.bf16.gmra.mxu0 %v2199
        %v2366 = vpop.f32.mrf.mxu0
        %v2367 = vadd.f32 %v2249, %v2366
        %v2368 = vpop.f32.mrf.mxu0
        %v2369 = vadd.f32 %v2249, %v2368
        %2370 = vmatmul.bf16.gmra.mxu0 %v2201
        %v2371 = vpop.f32.mrf.mxu0
        %v2372 = vadd.f32 %v2249, %v2371
        %v2373 = vpop.f32.mrf.mxu0
        %v2374 = vadd.f32 %v2249, %v2373
        %2375 = vmatmul.bf16.gmra.mxu0 %v2203
        %v2376 = vpop.f32.mrf.mxu0
        %v2377 = vadd.f32 %v2249, %v2376
        %v2378 = vpop.f32.mrf.mxu0
        %v2379 = vadd.f32 %v2249, %v2378
        %2380 = vmatmul.bf16.gmra.mxu0 %v2205
        %v2381 = vpop.f32.mrf.mxu0
        %v2382 = vadd.f32 %v2249, %v2381
        %v2383 = vpop.f32.mrf.mxu0
        %v2384 = vadd.f32 %v2249, %v2383
        %2385 = vmatmul.bf16.gmra.mxu0 %v2207
        %v2386 = vpop.f32.mrf.mxu0
        %v2387 = vadd.f32 %v2249, %v2386
        %v2388 = vpop.f32.mrf.mxu0
        %v2389 = vadd.f32 %v2249, %v2388
        %2390 = vmatmul.bf16.gmra.mxu0 %v2209
        %v2391 = vpop.f32.mrf.mxu0
        %v2392 = vadd.f32 %v2249, %v2391
        %v2393 = vpop.f32.mrf.mxu0
        %v2394 = vadd.f32 %v2249, %v2393
        %2395 = vmatmul.bf16.gmra.mxu0 %v2211
        %v2396 = vpop.f32.mrf.mxu0
        %v2397 = vadd.f32 %v2249, %v2396
        %v2398 = vpop.f32.mrf.mxu0
        %v2399 = vadd.f32 %v2249, %v2398
        %2400 = vmatmul.bf16.gmra.mxu0 %v2213
        %v2401 = vpop.f32.mrf.mxu0
        %v2402 = vadd.f32 %v2249, %v2401
        %v2403 = vpop.f32.mrf.mxu0
        %2404 = vdwg.mxu0
        %2405 = vmatpush.bf16.msra.mxu0 %v2330
        %2406 = vmatpush.bf16.msra.mxu0 %v2329
        %2407 = vmatpush.bf16.msra.mxu0 %v2328
        %2408 = vmatpush.bf16.msra.mxu0 %v2327
        %2409 = vmatpush.bf16.msra.mxu0 %v2326
        %2410 = vmatpush.bf16.msra.mxu0 %v2325
        %2411 = vmatpush.bf16.msra.mxu0 %v2324
        %2412 = vmatpush.bf16.msra.mxu0 %v2323
        %2413 = vmatmul.bf16.gmra.mxu0 %v2196
        %v2414 = vpop.f32.mrf.mxu0
        %v2415 = vadd.f32 %v2357, %v2414
        %v2416 = vpop.f32.mrf.mxu0
        %v2417 = vadd.f32 %v2359, %v2416
        %2418 = vmatmul.bf16.gmra.mxu0 %v2198
        %v2419 = vpop.f32.mrf.mxu0
        %v2420 = vadd.f32 %v2362, %v2419
        %v2421 = vpop.f32.mrf.mxu0
        %v2422 = vadd.f32 %v2364, %v2421
        %2423 = vmatmul.bf16.gmra.mxu0 %v2200
        %v2424 = vpop.f32.mrf.mxu0
        %v2425 = vadd.f32 %v2367, %v2424
        %v2426 = vpop.f32.mrf.mxu0
        %v2427 = vadd.f32 %v2369, %v2426
        %2428 = vmatmul.bf16.gmra.mxu0 %v2202
        %v2429 = vpop.f32.mrf.mxu0
        %v2430 = vadd.f32 %v2372, %v2429
        %v2431 = vpop.f32.mrf.mxu0
        %v2432 = vadd.f32 %v2374, %v2431
        %2433 = vmatmul.bf16.gmra.mxu0 %v2204
        %v2434 = vpop.f32.mrf.mxu0
        %v2435 = vadd.f32 %v2377, %v2434
        %v2436 = vpop.f32.mrf.mxu0
        %v2437 = vadd.f32 %v2379, %v2436
        %2438 = vmatmul.bf16.gmra.mxu0 %v2206
        %v2439 = vpop.f32.mrf.mxu0
        %v2440 = vadd.f32 %v2382, %v2439
        %v2441 = vpop.f32.mrf.mxu0
        %v2442 = vadd.f32 %v2384, %v2441
        %2443 = vmatmul.bf16.gmra.mxu0 %v2208
        %v2444 = vpop.f32.mrf.mxu0
        %v2445 = vadd.f32 %v2387, %v2444
        %v2446 = vpop.f32.mrf.mxu0
        %v2447 = vadd.f32 %v2389, %v2446
        %2448 = vmatmul.bf16.gmra.mxu0 %v2210
        %v2449 = vpop.f32.mrf.mxu0
        %v2450 = vadd.f32 %v2392, %v2449
        %v2451 = vpop.f32.mrf.mxu0
        %v2452 = vadd.f32 %v2394, %v2451
        %2453 = vmatmul.bf16.gmra.mxu0 %v2212
        %v2454 = vpop.f32.mrf.mxu0
        %v2455 = vadd.f32 %v2397, %v2454
        %v2456 = vpop.f32.mrf.mxu0
        %v2457 = vadd.f32 %v2399, %v2456
        %2458 = vmatmul.bf16.gmra.mxu0 %v2214
        %v2459 = vpop.f32.mrf.mxu0
        %v2460 = vadd.f32 %v2402, %v2459
        %v2461 = vpop.f32.mrf.mxu0
        %2462 = vdwg.mxu0
        %2463 = vst [vmem:[%s430] sm:$0xff] %v2415
        %2464 = vst [vmem:[%s430 + $0x8] sm:$0xff] %v2417
        %2465 = vst [vmem:[%s430 + $0x10] sm:$0xff] %v2420
        %2466 = vst [vmem:[%s430 + $0x18] sm:$0xff] %v2422
        %2467 = vst [vmem:[%s430 + $0x20] sm:$0xff] %v2425
        %2468 = vst [vmem:[%s430 + $0x28] sm:$0xff] %v2427
        %2469 = vst [vmem:[%s430 + $0x30] sm:$0xff] %v2430
        %2470 = vst [vmem:[%s430 + $0x38] sm:$0xff] %v2432
        %2471 = vst [vmem:[%s430 + $0x40] sm:$0xff] %v2435
        %2472 = vst [vmem:[%s430 + $0x48] sm:$0xff] %v2437
        %2473 = vst [vmem:[%s430 + $0x50] sm:$0xff] %v2440
        %2474 = vst [vmem:[%s430 + $0x58] sm:$0xff] %v2442
        %2475 = vst [vmem:[%s430 + $0x60] sm:$0xff] %v2445
        %2476 = vst [vmem:[%s430 + $0x68] sm:$0xff] %v2447
        %2477 = vst [vmem:[%s430 + $0x70] sm:$0xff] %v2450
        %2478 = vst [vmem:[%s430 + $0x78] sm:$0xff] %v2452
        %2479 = vst [vmem:[%s430 + $0x80] sm:$0xff] %v2455
        %2480 = vst [vmem:[%s430 + $0x88] sm:$0xff] %v2457
        %2481 = vst [vmem:[%s430 + $0x90] sm:$0xff] %v2460
        %s2482 = sand.u32 %s271, 1
        %s2483 = scalar_lea.sflag [#allocation4], %s2482
        %s2484 = sand.u32 %s271, 1
        %s2485 = smul.addr %s2484, 152
        %s2486 = scalar_lea.vmem [#allocation8], %s2485
        // Predicated region
        $region77: #{tpu_custom_call.1} parent=63 // pred_check
          %p2487 = pneg %p281
        $region78: #{tpu_custom_call.1} parent=63 // pred_check_branch
          %2489 = sbr.rel (%p2487) target = $region80
        $region79: #{tpu_custom_call.1} parent=63 // pred_region
          %s2490 = smul.u32 19, %s27
          %2492 = vsyncadd %s2483, 0
          %s2493 = smul.addr %s2490, 8
          %s2494 = scalar_lea.hbm %s11, %s2493
          %s2495 = sshll.u32 %s2486, 4
          %s2496 = int_to_ptr.vmem [resolvable:$true] %s2495
          %s2497 = sshll.u32 %s2494, 4
          %s2498 = int_to_ptr.hbm [resolvable:$true] %s2497
          %2503 = dma.vmem_to_hbm [thread:$0]  %s2496, 2432, %s2498, %s2483, 128, 128, 8
        $region80: #{tpu_custom_call.1} parent=63 // pred_fallthru
          _
      $region64: #{tpu_custom_call.1} parent=5 // pred_fallthru
        _
      %p2504 = scmp.le.s32.totalorder 2, %s22
      // Predicated region
      $region81: #{tpu_custom_call.1} parent=5 // pred_check
        %p2505 = pneg %p2504
      $region82: #{tpu_custom_call.1} parent=5 // pred_check_branch
        %2507 = sbr.rel (%p2505) target = $region84
      $region83: #{tpu_custom_call.1} parent=5 // pred_region
        %s2508 = ssub.s32 %s22, 2
        // Predicated region
        $region85: #{tpu_custom_call.1} parent=83 // pred_check
          %p2509 = pneg %p287
        $region86: #{tpu_custom_call.1} parent=83 // pred_check_branch
          %2511 = sbr.rel (%p2509) target = $region88
        $region87: #{tpu_custom_call.1} parent=83 // pred_region
          %s2512 = sand.u32 %s272, 1
          %s2513 = scalar_lea.sflag [#allocation4], %s2512
          %s2514 = sand.u32 %s272, 1
          %s2515 = smul.addr %s2514, 152
          %s2516 = scalar_lea.vmem [#allocation8], %s2515
          %2518 = dma.done %s2513, 2432
        $region88: #{tpu_custom_call.1} parent=83 // pred_fallthru
          _
      $region84: #{tpu_custom_call.1} parent=5 // pred_fallthru
        _
    $region6: #{tpu_custom_call.1} parent=1 // loop_footer
      %s26 = sadd.s32 1, %s22
    $region7: #{tpu_custom_call.1} parent=1 // loop_footer_branch
      %21 = sbr.rel target = $region3
    $region8: #{tpu_custom_call.1} parent=1 // loop_exit
      _
    %2519 = vsyncpa [#allocation3], 1
    %s2520 = scalar_lea.sflag [#allocation3], 1
    %2521 = vsyncpa %s2520, 1
    %2522 = vsyncpa [#allocation6], 1
    %2523 = vsyncpa [#allocation4], 1
    %s2524 = scalar_lea.sflag [#allocation4], 1
    %2525 = vsyncpa %s2524, 1

// kernel: tpu_custom_call.1
$region0: #{tpu_custom_call.1}
  #allocation0 [shape = 'u32[]', space=smem, size = 0x4, offset = 0x4, fixed_abs, tag = 'smem constant byte address 0x4 - core index']
  #allocation1 [shape = 'u32[72,128]{1,0:T(1,128)}', space=vmem, size = 0x9000, scoped, tag = 'internal scratch']
  %s0 = inlined_call_operand.vmem [shape: f32[300,96], index: 0, kind: input, shape index: {}]
  %s1 = inlined_call_operand.hbm [shape: bf16[96,256], index: 1, kind: input, shape index: {}]
  %s2 = inlined_call_operand.vmem [shape: f32[1,256], index: 2, kind: input, shape index: {}]
  %s3 = inlined_call_operand.vmem [shape: bf16[256,256], index: 3, kind: input, shape index: {}]
  %s4 = inlined_call_operand.vmem [shape: f32[1,256], index: 4, kind: input, shape index: {}]
  %s5 = inlined_call_operand.vmem [shape: bf16[256,256], index: 5, kind: input, shape index: {}]
  %s6 = inlined_call_operand.vmem [shape: f32[1,256], index: 6, kind: input, shape index: {}]
  %s7 = inlined_call_operand.hbm [shape: bf16[256,256], index: 7, kind: input, shape index: {}]
  %s8 = inlined_call_operand.vmem [shape: f32[1,256], index: 8, kind: input, shape index: {}]
  %s9 = inlined_call_operand.hbm [shape: bf16[256,128], index: 9, kind: input, shape index: {}]
  %s10 = inlined_call_operand.vmem [shape: f32[1,128], index: 10, kind: input, shape index: {}]
  %s11 = inlined_call_operand.hbm [shape: f32[300,128], index: 11, kind: output, shape index: {}]
  %s12 = sld [smem:[#allocation0]]
  $region89: #{tpu_custom_call.1} parent=0
    _
  %s14 = ssub.s32 1, %s12
  %s15 = scalar_select 0, %s14, %s12
  $region1: #{tpu_custom_call.1} parent=0
    #allocation2 [shape = 'u8[49152]{0}', space=vmem, size = 0xc000, scoped, tag = 'input window, operand 1, single buffered']
    #allocation3 [shape = 's32[2]{0}', space=sflag, size = 0x8, scoped, tag = 'scoped memory for tpu_custom_call.1']
    #allocation4 [shape = 's32[2]{0}', space=sflag, size = 0x8, scoped, tag = 'scoped memory for tpu_custom_call.1']
    #allocation5 [shape = 'u8[131072]{0}', space=vmem, size = 0x20000, scoped, tag = 'input window, operand 7, single buffered']
    #allocation6 [shape = 's32[1]{0}', space=sflag, size = 0x4, scoped, tag = 'scoped memory for tpu_custom_call.1']
    #allocation7 [shape = 'u8[65536]{0}', space=vmem, size = 0x10000, scoped, tag = 'input window, operand 9, single buffered']
    #allocation8 [shape = 'u8[155648]{0}', space=vmem, size = 0x26000, scoped, tag = 'output window, operand 0']
    %16 = vsyncpa [#allocation3], 0
    %17 = vsyncpa [#allocation6], 0
    %18 = vsyncpa [#allocation4], 0
    %s19 = scalar_lea.sflag [#allocation4], 1
    %20 = vsyncpa %s19, 0
    loop: start=0, step=1, limit=4
    $region2: #{tpu_custom_call.1} parent=1 // loop_pre_header
      _
    $region3: #{tpu_custom_call.1} parent=1 // loop_header
      %s22 = sphi 0, %s26
      %p23 = scmp.ge.s32.totalorder %s22, 4
      %s32 = sphi 0, %s34
      %s35 = sphi 0, %s32
      %s36 = sphi 0, %s35
      %s52 = sphi 0, %s36
      %s56 = sphi 0, %s56
      %s58 = sphi 0, %s56
      %s59 = sphi 0, %s58
      %s73 = sphi 0, %s59
      %s77 = sphi 0, %s77
      %s79 = sphi 0, %s77
      %s80 = sphi 0, %s79
      %s94 = sphi 0, %s80
      %s98 = sphi 0, %s98
      %s100 = sphi 0, %s98
      %s101 = sphi 0, %s100
      %s115 = sphi 0, %s101
      %s119 = sphi 0, %s119
      %s121 = sphi 0, %s119
      %s122 = sphi 0, %s121
      %s136 = sphi 0, %s122
      %s140 = sphi 0, %s140
      %s142 = sphi 0, %s140
      %s143 = sphi 0, %s142
      %s157 = sphi 0, %s143
      %s161 = sphi 0, %s161
      %s163 = sphi 0, %s161
      %s164 = sphi 0, %s163
      %s178 = sphi 0, %s164
      %s182 = sphi 0, %s182
      %s184 = sphi 0, %s182
      %s185 = sphi 0, %s184
      %s199 = sphi 0, %s185
      %s203 = sphi 0, %s203
      %s205 = sphi 0, %s203
      %s206 = sphi 0, %s205
      %s220 = sphi 0, %s206
      %s224 = sphi 0, %s224
      %s226 = sphi 0, %s224
      %s227 = sphi 0, %s226
      %s241 = sphi 0, %s227
      %s245 = sphi 0, %s245
      %s247 = sphi 0, %s245
      %s248 = sphi 0, %s247
      %s262 = sphi 0, %s248
      %s268 = sphi 0, %s270
      %s271 = sphi 0, %s268
      %s272 = sphi 0, %s271
      %s288 = sphi 0, %s272
    $region4: #{tpu_custom_call.1} parent=1 // loop_header_branch
      %25 = sbr.rel (%p23) target = $region8
    $region5: #{tpu_custom_call.1} parent=1 // loop_body
      %s27 = ssub.s32 %s22, 1
      %s28 = ssub.s32 %s22, 2
      %s29 = sadd.s32 %s22, 1
      %s30 = ssub.s32 %s22, %s29
      %p31 = scmp.eq.s32.totalorder %s30, 0
      %s33 = sadd.s32 %s32, 1
      %s34 = scalar_select %p31, %s32, %s33
      %p37 = pneg %p31
      %p38 = scmp.eq.s32.totalorder %s22, 1
      %p39 = por %p37, %p38
      %p40 = scmp.ne.s32.totalorder %s32, %s35
      %p41 = scmp.eq.s32.totalorder %s22, 0
      %p42 = por %p40, %p41
      %p43 = scmp.ne.s32.totalorder %s32, %s35
      %p44 = scmp.eq.s32.totalorder %s27, 1
      %p45 = por %p43, %p44
      %p46 = scmp.ne.s32.totalorder %s35, %s36
      %p47 = scmp.eq.s32.totalorder %s27, 0
      %p48 = por %p46, %p47
      %p49 = scmp.ne.s32.totalorder %s35, %s36
      %p50 = scmp.eq.s32.totalorder %s28, 1
      %p51 = por %p49, %p50
      %p53 = scmp.ne.s32.totalorder %s36, %s52
      %p54 = scmp.eq.s32.totalorder %s28, 0
      %p55 = por %p53, %p54
      %s57 = sadd.s32 %s56, 1
      %p60 = scmp.eq.s32.totalorder %s22, 1
      %p61 = scmp.ne.s32.totalorder %s56, %s58
      %p62 = scmp.eq.s32.totalorder %s22, 0
      %p63 = por %p61, %p62
      %p64 = scmp.ne.s32.totalorder %s56, %s58
      %p65 = scmp.eq.s32.totalorder %s27, 1
      %p66 = por %p64, %p65
      %p67 = scmp.ne.s32.totalorder %s58, %s59
      %p68 = scmp.eq.s32.totalorder %s27, 0
      %p69 = por %p67, %p68
      %p70 = scmp.ne.s32.totalorder %s58, %s59
      %p71 = scmp.eq.s32.totalorder %s28, 1
      %p72 = por %p70, %p71
      %p74 = scmp.ne.s32.totalorder %s59, %s73
      %p75 = scmp.eq.s32.totalorder %s28, 0
      %p76 = por %p74, %p75
      %s78 = sadd.s32 %s77, 1
      %p81 = scmp.eq.s32.totalorder %s22, 1
      %p82 = scmp.ne.s32.totalorder %s77, %s79
      %p83 = scmp.eq.s32.totalorder %s22, 0
      %p84 = por %p82, %p83
      %p85 = scmp.ne.s32.totalorder %s77, %s79
      %p86 = scmp.eq.s32.totalorder %s27, 1
      %p87 = por %p85, %p86
      %p88 = scmp.ne.s32.totalorder %s79, %s80
      %p89 = scmp.eq.s32.totalorder %s27, 0
      %p90 = por %p88, %p89
      %p91 = scmp.ne.s32.totalorder %s79, %s80
      %p92 = scmp.eq.s32.totalorder %s28, 1
      %p93 = por %p91, %p92
      %p95 = scmp.ne.s32.totalorder %s80, %s94
      %p96 = scmp.eq.s32.totalorder %s28, 0
      %p97 = por %p95, %p96
      %s99 = sadd.s32 %s98, 1
      %p102 = scmp.eq.s32.totalorder %s22, 1
      %p103 = scmp.ne.s32.totalorder %s98, %s100
      %p104 = scmp.eq.s32.totalorder %s22, 0
      %p105 = por %p103, %p104
      %p106 = scmp.ne.s32.totalorder %s98, %s100
      %p107 = scmp.eq.s32.totalorder %s27, 1
      %p108 = por %p106, %p107
      %p109 = scmp.ne.s32.totalorder %s100, %s101
      %p110 = scmp.eq.s32.totalorder %s27, 0
      %p111 = por %p109, %p110
      %p112 = scmp.ne.s32.totalorder %s100, %s101
      %p113 = scmp.eq.s32.totalorder %s28, 1
      %p114 = por %p112, %p113
      %p116 = scmp.ne.s32.totalorder %s101, %s115
      %p117 = scmp.eq.s32.totalorder %s28, 0
      %p118 = por %p116, %p117
      %s120 = sadd.s32 %s119, 1
      %p123 = scmp.eq.s32.totalorder %s22, 1
      %p124 = scmp.ne.s32.totalorder %s119, %s121
      %p125 = scmp.eq.s32.totalorder %s22, 0
      %p126 = por %p124, %p125
      %p127 = scmp.ne.s32.totalorder %s119, %s121
      %p128 = scmp.eq.s32.totalorder %s27, 1
      %p129 = por %p127, %p128
      %p130 = scmp.ne.s32.totalorder %s121, %s122
      %p131 = scmp.eq.s32.totalorder %s27, 0
      %p132 = por %p130, %p131
      %p133 = scmp.ne.s32.totalorder %s121, %s122
      %p134 = scmp.eq.s32.totalorder %s28, 1
      %p135 = por %p133, %p134
      %p137 = scmp.ne.s32.totalorder %s122, %s136
      %p138 = scmp.eq.s32.totalorder %s28, 0
      %p139 = por %p137, %p138
      %s141 = sadd.s32 %s140, 1
      %p144 = scmp.eq.s32.totalorder %s22, 1
      %p145 = scmp.ne.s32.totalorder %s140, %s142
      %p146 = scmp.eq.s32.totalorder %s22, 0
      %p147 = por %p145, %p146
      %p148 = scmp.ne.s32.totalorder %s140, %s142
      %p149 = scmp.eq.s32.totalorder %s27, 1
      %p150 = por %p148, %p149
      %p151 = scmp.ne.s32.totalorder %s142, %s143
      %p152 = scmp.eq.s32.totalorder %s27, 0
      %p153 = por %p151, %p152
      %p154 = scmp.ne.s32.totalorder %s142, %s143
      %p155 = scmp.eq.s32.totalorder %s28, 1
      %p156 = por %p154, %p155
      %p158 = scmp.ne.s32.totalorder %s143, %s157
      %p159 = scmp.eq.s32.totalorder %s28, 0
      %p160 = por %p158, %p159
      %s162 = sadd.s32 %s161, 1
      %p165 = scmp.eq.s32.totalorder %s22, 1
      %p166 = scmp.ne.s32.totalorder %s161, %s163
      %p167 = scmp.eq.s32.totalorder %s22, 0
      %p168 = por %p166, %p167
      %p169 = scmp.ne.s32.totalorder %s161, %s163
      %p170 = scmp.eq.s32.totalorder %s27, 1
      %p171 = por %p169, %p170
      %p172 = scmp.ne.s32.totalorder %s163, %s164
      %p173 = scmp.eq.s32.totalorder %s27, 0
      %p174 = por %p172, %p173
      %p175 = scmp.ne.s32.totalorder %s163, %s164
      %p176 = scmp.eq.s32.totalorder %s28, 1
      %p177 = por %p175, %p176
      %p179 = scmp.ne.s32.totalorder %s164, %s178
      %p180 = scmp.eq.s32.totalorder %s28, 0
      %p181 = por %p179, %p180
      %s183 = sadd.s32 %s182, 1
      %p186 = scmp.eq.s32.totalorder %s22, 1
      %p187 = scmp.ne.s32.totalorder %s182, %s184
      %p188 = scmp.eq.s32.totalorder %s22, 0
      %p189 = por %p187, %p188
      %p190 = scmp.ne.s32.totalorder %s182, %s184
      %p191 = scmp.eq.s32.totalorder %s27, 1
      %p192 = por %p190, %p191
      %p193 = scmp.ne.s32.totalorder %s184, %s185
      %p194 = scmp.eq.s32.totalorder %s27, 0
      %p195 = por %p193, %p194
      %p196 = scmp.ne.s32.totalorder %s184, %s185
      %p197 = scmp.eq.s32.totalorder %s28, 1
      %p198 = por %p196, %p197
      %p200 = scmp.ne.s32.totalorder %s185, %s199
      %p201 = scmp.eq.s32.totalorder %s28, 0
      %p202 = por %p200, %p201
      %s204 = sadd.s32 %s203, 1
      %p207 = scmp.eq.s32.totalorder %s22, 1
      %p208 = scmp.ne.s32.totalorder %s203, %s205
      %p209 = scmp.eq.s32.totalorder %s22, 0
      %p210 = por %p208, %p209
      %p211 = scmp.ne.s32.totalorder %s203, %s205
      %p212 = scmp.eq.s32.totalorder %s27, 1
      %p213 = por %p211, %p212
      %p214 = scmp.ne.s32.totalorder %s205, %s206
      %p215 = scmp.eq.s32.totalorder %s27, 0
      %p216 = por %p214, %p215
      %p217 = scmp.ne.s32.totalorder %s205, %s206
      %p218 = scmp.eq.s32.totalorder %s28, 1
      %p219 = por %p217, %p218
      %p221 = scmp.ne.s32.totalorder %s206, %s220
      %p222 = scmp.eq.s32.totalorder %s28, 0
      %p223 = por %p221, %p222
      %s225 = sadd.s32 %s224, 1
      %p228 = scmp.eq.s32.totalorder %s22, 1
      %p229 = scmp.ne.s32.totalorder %s224, %s226
      %p230 = scmp.eq.s32.totalorder %s22, 0
      %p231 = por %p229, %p230
      %p232 = scmp.ne.s32.totalorder %s224, %s226
      %p233 = scmp.eq.s32.totalorder %s27, 1
      %p234 = por %p232, %p233
      %p235 = scmp.ne.s32.totalorder %s226, %s227
      %p236 = scmp.eq.s32.totalorder %s27, 0
      %p237 = por %p235, %p236
      %p238 = scmp.ne.s32.totalorder %s226, %s227
      %p239 = scmp.eq.s32.totalorder %s28, 1
      %p240 = por %p238, %p239
      %p242 = scmp.ne.s32.totalorder %s227, %s241
      %p243 = scmp.eq.s32.totalorder %s28, 0
      %p244 = por %p242, %p243
      %s246 = sadd.s32 %s245, 1
      %p249 = scmp.eq.s32.totalorder %s22, 1
      %p250 = scmp.ne.s32.totalorder %s245, %s247
      %p251 = scmp.eq.s32.totalorder %s22, 0
      %p252 = por %p250, %p251
      %p253 = scmp.ne.s32.totalorder %s245, %s247
      %p254 = scmp.eq.s32.totalorder %s27, 1
      %p255 = por %p253, %p254
      %p256 = scmp.ne.s32.totalorder %s247, %s248
      %p257 = scmp.eq.s32.totalorder %s27, 0
      %p258 = por %p256, %p257
      %p259 = scmp.ne.s32.totalorder %s247, %s248
      %p260 = scmp.eq.s32.totalorder %s28, 1
      %p261 = por %p259, %p260
      %p263 = scmp.ne.s32.totalorder %s248, %s262
      %p264 = scmp.eq.s32.totalorder %s28, 0
      %p265 = por %p263, %p264
      %s266 = ssub.s32 %s22, %s29
      %p267 = scmp.eq.s32.totalorder %s266, 0
      %s269 = sadd.s32 %s268, 1
      %s270 = scalar_select %p267, %s268, %s269
      %p273 = pneg %p267
      %p274 = scmp.eq.s32.totalorder %s22, 1
      %p275 = por %p273, %p274
      %p276 = scmp.ne.s32.totalorder %s268, %s271
      %p277 = scmp.eq.s32.totalorder %s22, 0
      %p278 = por %p276, %p277
      %p279 = scmp.ne.s32.totalorder %s268, %s271
      %p280 = scmp.eq.s32.totalorder %s27, 1
      %p281 = por %p279, %p280
      %p282 = scmp.ne.s32.totalorder %s271, %s272
      %p283 = scmp.eq.s32.totalorder %s27, 0
      %p284 = por %p282, %p283
      %p285 = scmp.ne.s32.totalorder %s271, %s272
      %p286 = scmp.eq.s32.totalorder %s28, 1
      %p287 = por %p285, %p286
      %p289 = scmp.ne.s32.totalorder %s272, %s288
      %p290 = scmp.eq.s32.totalorder %s28, 0
      %p291 = por %p289, %p290
      %p292 = scmp.le.s32.totalorder 1, %s22
      %p293 = scmp.lt.s32.totalorder %s22, 3
      %p294 = pnand %p292, %p293
      %p295 = pneg %p294
      // Predicated region
      $region9: #{tpu_custom_call.1} parent=5 // pred_check
        _
      $region10: #{tpu_custom_call.1} parent=5 // pred_check_branch
        %297 = sbr.rel (%p294) target = $region12
      $region11: #{tpu_custom_call.1} parent=5 // pred_region
        %s298 = ssub.s32 %s22, 1
        // Predicated region
        $region13: #{tpu_custom_call.1} parent=11 // pred_check
          %p299 = pneg %p69
        $region14: #{tpu_custom_call.1} parent=11 // pred_check_branch
          %301 = sbr.rel (%p299) target = $region16
        $region15: #{tpu_custom_call.1} parent=11 // pred_region
          %303 = vsyncadd [#allocation3], 0
          %s304 = sshll.u32 %s1, 4
          %s305 = int_to_ptr.hbm [resolvable:$true] %s304
          %s306 = sshll.u32 [#allocation2], 4
          %s307 = int_to_ptr.vmem [resolvable:$true] %s306
          %312 = dma.hbm_to_vmem [thread:$0]  %s305, 1536, %s307, [#allocation3], 128, 128, 8
        $region16: #{tpu_custom_call.1} parent=11 // pred_fallthru
          _
        // Predicated region
        $region17: #{tpu_custom_call.1} parent=11 // pred_check
          %p313 = pneg %p90
        $region18: #{tpu_custom_call.1} parent=11 // pred_check_branch
          %315 = sbr.rel (%p313) target = $region20
        $region19: #{tpu_custom_call.1} parent=11 // pred_region
          _
        $region20: #{tpu_custom_call.1} parent=11 // pred_fallthru
          _
        // Predicated region
        $region21: #{tpu_custom_call.1} parent=11 // pred_check
          %p316 = pneg %p111
        $region22: #{tpu_custom_call.1} parent=11 // pred_check_branch
          %318 = sbr.rel (%p316) target = $region24
        $region23: #{tpu_custom_call.1} parent=11 // pred_region
          _
        $region24: #{tpu_custom_call.1} parent=11 // pred_fallthru
          _
        // Predicated region
        $region25: #{tpu_custom_call.1} parent=11 // pred_check
          %p319 = pneg %p132
        $region26: #{tpu_custom_call.1} parent=11 // pred_check_branch
          %321 = sbr.rel (%p319) target = $region28
        $region27: #{tpu_custom_call.1} parent=11 // pred_region
          _
        $region28: #{tpu_custom_call.1} parent=11 // pred_fallthru
          _
        // Predicated region
        $region29: #{tpu_custom_call.1} parent=11 // pred_check
          %p322 = pneg %p153
        $region30: #{tpu_custom_call.1} parent=11 // pred_check_branch
          %324 = sbr.rel (%p322) target = $region32
        $region31: #{tpu_custom_call.1} parent=11 // pred_region
          _
        $region32: #{tpu_custom_call.1} parent=11 // pred_fallthru
          _
        // Predicated region
        $region33: #{tpu_custom_call.1} parent=11 // pred_check
          %p325 = pneg %p174
        $region34: #{tpu_custom_call.1} parent=11 // pred_check_branch
          %327 = sbr.rel (%p325) target = $region36
        $region35: #{tpu_custom_call.1} parent=11 // pred_region
          _
        $region36: #{tpu_custom_call.1} parent=11 // pred_fallthru
          _
        // Predicated region
        $region37: #{tpu_custom_call.1} parent=11 // pred_check
          %p328 = pneg %p195
        $region38: #{tpu_custom_call.1} parent=11 // pred_check_branch
          %330 = sbr.rel (%p328) target = $region40
        $region39: #{tpu_custom_call.1} parent=11 // pred_region
          %332 = vsyncadd [#allocation6], 0
          %s333 = sshll.u32 %s7, 4
          %s334 = int_to_ptr.hbm [resolvable:$true] %s333
          %s335 = sshll.u32 [#allocation5], 4
          %s336 = int_to_ptr.vmem [resolvable:$true] %s335
          %341 = dma.hbm_to_vmem [thread:$0]  %s334, 4096, %s336, [#allocation6], 128, 128, 8
        $region40: #{tpu_custom_call.1} parent=11 // pred_fallthru
          _
        // Predicated region
        $region41: #{tpu_custom_call.1} parent=11 // pred_check
          %p342 = pneg %p216
        $region42: #{tpu_custom_call.1} parent=11 // pred_check_branch
          %344 = sbr.rel (%p342) target = $region44
        $region43: #{tpu_custom_call.1} parent=11 // pred_region
          _
        $region44: #{tpu_custom_call.1} parent=11 // pred_fallthru
          _
        // Predicated region
        $region45: #{tpu_custom_call.1} parent=11 // pred_check
          %p345 = pneg %p237
        $region46: #{tpu_custom_call.1} parent=11 // pred_check_branch
          %347 = sbr.rel (%p345) target = $region48
        $region47: #{tpu_custom_call.1} parent=11 // pred_region
          %349 = vsyncadd [#allocation6], 0
          %s350 = sshll.u32 %s9, 4
          %s351 = int_to_ptr.hbm [resolvable:$true] %s350
          %s352 = sshll.u32 [#allocation7], 4
          %s353 = int_to_ptr.vmem [resolvable:$true] %s352
          %358 = dma.hbm_to_vmem [thread:$0]  %s351, 2048, %s353, [#allocation6], 64, 64, 4
        $region48: #{tpu_custom_call.1} parent=11 // pred_fallthru
          _
        // Predicated region
        $region49: #{tpu_custom_call.1} parent=11 // pred_check
          %p359 = pneg %p258
        $region50: #{tpu_custom_call.1} parent=11 // pred_check_branch
          %361 = sbr.rel (%p359) target = $region52
        $region51: #{tpu_custom_call.1} parent=11 // pred_region
          _
        $region52: #{tpu_custom_call.1} parent=11 // pred_fallthru
          _
      $region12: #{tpu_custom_call.1} parent=5 // pred_fallthru
        _
      %p362 = scmp.lt.s32.totalorder %s22, 2
      // Predicated region
      $region53: #{tpu_custom_call.1} parent=5 // pred_check
        %p363 = pneg %p362
      $region54: #{tpu_custom_call.1} parent=5 // pred_check_branch
        %365 = sbr.rel (%p363) target = $region56
      $region55: #{tpu_custom_call.1} parent=5 // pred_region
        // Predicated region
        $region57: #{tpu_custom_call.1} parent=55 // pred_check
          %p366 = pneg %p42
        $region58: #{tpu_custom_call.1} parent=55 // pred_check_branch
          %368 = sbr.rel (%p366) target = $region60
        $region59: #{tpu_custom_call.1} parent=55 // pred_region
          %s369 = smul.u32 19, %s22
          %p370 = scmp.lt.s32.totalorder %s369, 37
          %s371 = scalar_select %p370, %s369, 37
          %s372 = smul.addr %s371, 8
          %s373 = scalar_lea.vmem %s0, %s372
          %s374 = smul.u32 19, %s22
        $region60: #{tpu_custom_call.1} parent=55 // pred_fallthru
          _
      $region56: #{tpu_custom_call.1} parent=5 // pred_fallthru
        _
      %p375 = scmp.le.s32.totalorder 1, %s22
      %p376 = scmp.lt.s32.totalorder %s22, 3
      %p377 = pnand %p375, %p376
      %p378 = pneg %p377
      // Predicated region
      $region61: #{tpu_custom_call.1} parent=5 // pred_check
        _
      $region62: #{tpu_custom_call.1} parent=5 // pred_check_branch
        %380 = sbr.rel (%p377) target = $region64
      $region63: #{tpu_custom_call.1} parent=5 // pred_region
        %s381 = ssub.s32 %s22, 1
        // Predicated region
        $region65: #{tpu_custom_call.1} parent=63 // pred_check
          %p382 = pneg %p69
        $region66: #{tpu_custom_call.1} parent=63 // pred_check_branch
          %384 = sbr.rel (%p382) target = $region68
        $region67: #{tpu_custom_call.1} parent=63 // pred_region
          %386 = dma.done [#allocation3], 1536
        $region68: #{tpu_custom_call.1} parent=63 // pred_fallthru
          _
        // Predicated region
        $region69: #{tpu_custom_call.1} parent=63 // pred_check
          %p387 = pneg %p195
        $region70: #{tpu_custom_call.1} parent=63 // pred_check_branch
          %389 = sbr.rel (%p387) target = $region72
        $region71: #{tpu_custom_call.1} parent=63 // pred_region
          %391 = dma.done [#allocation6], 4096
        $region72: #{tpu_custom_call.1} parent=63 // pred_fallthru
          _
        // Predicated region
        $region73: #{tpu_custom_call.1} parent=63 // pred_check
          %p392 = pneg %p237
        $region74: #{tpu_custom_call.1} parent=63 // pred_check_branch
          %394 = sbr.rel (%p392) target = $region76
        $region75: #{tpu_custom_call.1} parent=63 // pred_region
          %396 = dma.done [#allocation6], 2048
        $region76: #{tpu_custom_call.1} parent=63 // pred_fallthru
          _
        %s397 = smul.u32 19, %s27
        %p398 = scmp.lt.s32.totalorder %s397, 37
        %s399 = scalar_select %p398, %s397, 37
        %s400 = smul.addr %s399, 8
        %s401 = scalar_lea.vmem %s0, %s400
        %p402 = pneg %p48
        %p403 = pneg %p45
        %p404 = pneg %p69
        %p405 = pneg %p66
        %p406 = pneg %p90
        %p407 = pneg %p87
        %p408 = pneg %p111
        %p409 = pneg %p108
        %p410 = pneg %p132
        %p411 = pneg %p129
        %p412 = pneg %p153
        %p413 = pneg %p150
        %p414 = pneg %p174
        %p415 = pneg %p171
        %p416 = pneg %p195
        %p417 = pneg %p192
        %p418 = pneg %p216
        %p419 = pneg %p213
        %p420 = pneg %p237
        %p421 = pneg %p234
        %p422 = pneg %p258
        %p423 = pneg %p255
        %p424 = pneg %p284
        %p425 = pneg %p281
        %s426 = sand.u32 %s271, 1
        %s427 = scalar_lea.sflag [#allocation4], %s426
        %s428 = sand.u32 %s271, 1
        %s429 = smul.addr %s428, 152
        %s430 = scalar_lea.vmem [#allocation8], %s429
        %s431 = smul.u32 19, %s27
        %p432 = scmp.lt.s32.totalorder %s431, 37
        %s433 = scalar_select %p432, %s431, 37
        %s434 = smul.addr %s433, 8
        %s435 = scalar_lea.vmem %s0, %s434
        %s436 = smul.u32 19, %s27
        %s437 = smul.u32 19, %s27
        %v439 = vld [vmem:[%s435] sm:$0xff]
        %v440 = vld [vmem:[%s435 + $0x8] sm:$0xff]
        %v441 = vld [vmem:[%s435 + $0x10] sm:$0xff]
        %v442 = vld [vmem:[%s435 + $0x18] sm:$0xff]
        %v443 = vld [vmem:[%s435 + $0x20] sm:$0xff]
        %v444 = vld [vmem:[%s435 + $0x28] sm:$0xff]
        %v445 = vld [vmem:[%s435 + $0x30] sm:$0xff]
        %v446 = vld [vmem:[%s435 + $0x38] sm:$0xff]
        %v447 = vld [vmem:[%s435 + $0x40] sm:$0xff]
        %v448 = vld [vmem:[%s435 + $0x48] sm:$0xff]
        %v449 = vld [vmem:[%s435 + $0x50] sm:$0xff]
        %v450 = vld [vmem:[%s435 + $0x58] sm:$0xff]
        %v451 = vld [vmem:[%s435 + $0x60] sm:$0xff]
        %v452 = vld [vmem:[%s435 + $0x68] sm:$0xff]
        %v453 = vld [vmem:[%s435 + $0x70] sm:$0xff]
        %v454 = vld [vmem:[%s435 + $0x78] sm:$0xff]
        %v455 = vld [vmem:[%s435 + $0x80] sm:$0xff]
        %v456 = vld [vmem:[%s435 + $0x88] sm:$0xff]
        %v457 = vld [vmem:[%s435 + $0x90] sm:$0xff]
        %v458 = vpack.c.bf16 %v440, %v439
        %v459 = vpack.c.bf16 %v442, %v441
        %v460 = vpack.c.bf16 %v444, %v443
        %v461 = vpack.c.bf16 %v446, %v445
        %v462 = vpack.c.bf16 %v448, %v447
        %v463 = vpack.c.bf16 %v450, %v449
        %v464 = vpack.c.bf16 %v452, %v451
        %v465 = vpack.c.bf16 %v454, %v453
        %v466 = vpack.c.bf16 %v456, %v455
        %v467 = vpack.c.bf16 %v457, %v457
        %v468 = vld [vmem:[#allocation2] sm:$0xff]
        %v469 = vld [vmem:[#allocation2 + $0x8] sm:$0xff]
        %v470 = vld [vmem:[#allocation2 + $0x10] sm:$0xff]
        %v471 = vld [vmem:[#allocation2 + $0x18] sm:$0xff]
        %v472 = vld [vmem:[#allocation2 + $0x20] sm:$0xff]
        %v473 = vld [vmem:[#allocation2 + $0x28] sm:$0xff]
        %v474 = vld [vmem:[#allocation2 + $0x30] sm:$0xff]
        %v475 = vld [vmem:[#allocation2 + $0x38] sm:$0xff]
        %v476 = vld [vmem:[#allocation2 + $0x40] sm:$0xff]
        %v477 = vld [vmem:[#allocation2 + $0x48] sm:$0xff]
        %v478 = vld [vmem:[#allocation2 + $0x50] sm:$0xff]
        %v479 = vld [vmem:[#allocation2 + $0x58] sm:$0xff]
        %v480 = vld [vmem:[%s2] sm:$0x3]
        %v482 = vperm.slane %v480, 0
        %v483 = vperm.slane %v480, 1
        %v498 = vunpack.c.l.b16 %v468
        %v499 = vunpack.c.h.b16 %v468
        %v500 = vunpack.c.l.b16 %v469
        %v501 = vunpack.c.h.b16 %v469
        %v502 = vunpack.c.l.b16 %v470
        %v503 = vunpack.c.h.b16 %v470
        %v504 = vunpack.c.l.b16 %v471
        %v505 = vunpack.c.h.b16 %v471
        %v506 = vunpack.c.l.b16 %v472
        %v507 = vunpack.c.h.b16 %v472
        %v508 = vunpack.c.l.b16 %v473
        %v509 = vunpack.c.h.b16 %v473
        %v510 = vunpack.c.l.b16 %v474
        %v511 = vunpack.c.h.b16 %v474
        %v512 = vunpack.c.l.b16 %v475
        %v513 = vunpack.c.h.b16 %v475
        %v514 = vunpack.c.l.b16 %v476
        %v515 = vunpack.c.h.b16 %v476
        %v516 = vunpack.c.l.b16 %v477
        %v517 = vunpack.c.h.b16 %v477
        %v518 = vunpack.c.l.b16 %v478
        %v519 = vunpack.c.h.b16 %v478
        %v520 = vunpack.c.l.b16 %v479
        %v521 = vunpack.c.h.b16 %v479
        %v522 = vpack.c.b16 %v500, %v498
        %v523 = vpack.c.b16 %v501, %v499
        %v524 = vpack.c.b16 %v504, %v502
        %v525 = vpack.c.b16 %v505, %v503
        %v526 = vpack.c.b16 %v508, %v506
        %v527 = vpack.c.b16 %v509, %v507
        %v528 = vpack.c.b16 %v512, %v510
        %v529 = vpack.c.b16 %v513, %v511
        %v530 = vpack.c.b16 %v516, %v514
        %v531 = vpack.c.b16 %v517, %v515
        %v532 = vpack.c.b16 %v520, %v518
        %v533 = vpack.c.b16 %v521, %v519
        %vm546 = vcmask 785408
        %v548 = vsel %vm546, %v458, 0
        %v551 = vsel %vm546, %v459, 0
        %v554 = vsel %vm546, %v460, 0
        %v557 = vsel %vm546, %v461, 0
        %v560 = vsel %vm546, %v462, 0
        %v563 = vsel %vm546, %v463, 0
        %v566 = vsel %vm546, %v464, 0
        %v569 = vsel %vm546, %v465, 0
        %v572 = vsel %vm546, %v466, 0
        %v575 = vsel %vm546, %v467, 0
        %577 = vmatpush.bf16.msra.mxu0 0
        %578 = vmatpush.bf16.msra.mxu0 0
        %579 = vmatpush.bf16.msra.mxu0 %v532
        %580 = vmatpush.bf16.msra.mxu0 %v530
        %581 = vmatpush.bf16.msra.mxu0 %v528
        %582 = vmatpush.bf16.msra.mxu0 %v526
        %583 = vmatpush.bf16.msra.mxu0 %v524
        %584 = vmatpush.bf16.msra.mxu0 %v522
        %585 = vmatmul.bf16.gmra.mxu0 %v548
        %v586 = vpop.f32.mrf.mxu0
        %v587 = vadd.f32 %v482, %v586
        %v588 = vpop.f32.mrf.mxu0
        %v589 = vadd.f32 %v482, %v588
        %590 = vmatmul.bf16.gmra.mxu0 %v551
        %v591 = vpop.f32.mrf.mxu0
        %v592 = vadd.f32 %v482, %v591
        %v593 = vpop.f32.mrf.mxu0
        %v594 = vadd.f32 %v482, %v593
        %595 = vmatmul.bf16.gmra.mxu0 %v554
        %v596 = vpop.f32.mrf.mxu0
        %v597 = vadd.f32 %v482, %v596
        %v598 = vpop.f32.mrf.mxu0
        %v599 = vadd.f32 %v482, %v598
        %600 = vmatmul.bf16.gmra.mxu0 %v557
        %v601 = vpop.f32.mrf.mxu0
        %v602 = vadd.f32 %v482, %v601
        %v603 = vpop.f32.mrf.mxu0
        %v604 = vadd.f32 %v482, %v603
        %605 = vmatmul.bf16.gmra.mxu0 %v560
        %v606 = vpop.f32.mrf.mxu0
        %v607 = vadd.f32 %v482, %v606
        %v608 = vpop.f32.mrf.mxu0
        %v609 = vadd.f32 %v482, %v608
        %610 = vmatmul.bf16.gmra.mxu0 %v563
        %v611 = vpop.f32.mrf.mxu0
        %v612 = vadd.f32 %v482, %v611
        %v613 = vpop.f32.mrf.mxu0
        %v614 = vadd.f32 %v482, %v613
        %615 = vmatmul.bf16.gmra.mxu0 %v566
        %v616 = vpop.f32.mrf.mxu0
        %v617 = vadd.f32 %v482, %v616
        %v618 = vpop.f32.mrf.mxu0
        %v619 = vadd.f32 %v482, %v618
        %620 = vmatmul.bf16.gmra.mxu0 %v569
        %v621 = vpop.f32.mrf.mxu0
        %v622 = vadd.f32 %v482, %v621
        %v623 = vpop.f32.mrf.mxu0
        %v624 = vadd.f32 %v482, %v623
        %625 = vmatmul.bf16.gmra.mxu0 %v572
        %v626 = vpop.f32.mrf.mxu0
        %v627 = vadd.f32 %v482, %v626
        %v628 = vpop.f32.mrf.mxu0
        %v629 = vadd.f32 %v482, %v628
        %630 = vmatmul.bf16.gmra.mxu0 %v575
        %v631 = vpop.f32.mrf.mxu0
        %v632 = vadd.f32 %v482, %v631
        %v633 = vpop.f32.mrf.mxu0
        %634 = vdwg.mxu0
        %635 = vmatpush.bf16.msra.mxu0 0
        %636 = vmatpush.bf16.msra.mxu0 0
        %637 = vmatpush.bf16.msra.mxu0 %v533
        %638 = vmatpush.bf16.msra.mxu0 %v531
        %639 = vmatpush.bf16.msra.mxu0 %v529
        %640 = vmatpush.bf16.msra.mxu0 %v527
        %641 = vmatpush.bf16.msra.mxu0 %v525
        %642 = vmatpush.bf16.msra.mxu0 %v523
        %643 = vmatmul.bf16.gmra.mxu0 %v548
        %v644 = vpop.f32.mrf.mxu0
        %v645 = vadd.f32 %v483, %v644
        %v646 = vpop.f32.mrf.mxu0
        %v647 = vadd.f32 %v483, %v646
        %648 = vmatmul.bf16.gmra.mxu0 %v551
        %v649 = vpop.f32.mrf.mxu0
        %v650 = vadd.f32 %v483, %v649
        %v651 = vpop.f32.mrf.mxu0
        %v652 = vadd.f32 %v483, %v651
        %653 = vmatmul.bf16.gmra.mxu0 %v554
        %v654 = vpop.f32.mrf.mxu0
        %v655 = vadd.f32 %v483, %v654
        %v656 = vpop.f32.mrf.mxu0
        %v657 = vadd.f32 %v483, %v656
        %658 = vmatmul.bf16.gmra.mxu0 %v557
        %v659 = vpop.f32.mrf.mxu0
        %v660 = vadd.f32 %v483, %v659
        %v661 = vpop.f32.mrf.mxu0
        %v662 = vadd.f32 %v483, %v661
        %663 = vmatmul.bf16.gmra.mxu0 %v560
        %v664 = vpop.f32.mrf.mxu0
        %v665 = vadd.f32 %v483, %v664
        %v666 = vpop.f32.mrf.mxu0
        %v667 = vadd.f32 %v483, %v666
        %668 = vmatmul.bf16.gmra.mxu0 %v563
        %v669 = vpop.f32.mrf.mxu0
        %v670 = vadd.f32 %v483, %v669
        %v671 = vpop.f32.mrf.mxu0
        %v672 = vadd.f32 %v483, %v671
        %673 = vmatmul.bf16.gmra.mxu0 %v566
        %v674 = vpop.f32.mrf.mxu0
        %v675 = vadd.f32 %v483, %v674
        %v676 = vpop.f32.mrf.mxu0
        %v677 = vadd.f32 %v483, %v676
        %678 = vmatmul.bf16.gmra.mxu0 %v569
        %v679 = vpop.f32.mrf.mxu0
        %v680 = vadd.f32 %v483, %v679
        %v681 = vpop.f32.mrf.mxu0
        %v682 = vadd.f32 %v483, %v681
        %683 = vmatmul.bf16.gmra.mxu0 %v572
        %v684 = vpop.f32.mrf.mxu0
        %v685 = vadd.f32 %v483, %v684
        %v686 = vpop.f32.mrf.mxu0
        %v687 = vadd.f32 %v483, %v686
        %688 = vmatmul.bf16.gmra.mxu0 %v575
        %v689 = vpop.f32.mrf.mxu0
        %v690 = vadd.f32 %v483, %v689
        %v691 = vpop.f32.mrf.mxu0
        %692 = vdwg.mxu0
        %v693 = vmax.f32 %v587, 0.0
        %v694 = vmax.f32 %v645, 0.0
        %v695 = vmax.f32 %v589, 0.0
        %v696 = vmax.f32 %v647, 0.0
        %v697 = vmax.f32 %v592, 0.0
        %v698 = vmax.f32 %v650, 0.0
        %v699 = vmax.f32 %v594, 0.0
        %v700 = vmax.f32 %v652, 0.0
        %v701 = vmax.f32 %v597, 0.0
        %v702 = vmax.f32 %v655, 0.0
        %v703 = vmax.f32 %v599, 0.0
        %v704 = vmax.f32 %v657, 0.0
        %v705 = vmax.f32 %v602, 0.0
        %v706 = vmax.f32 %v660, 0.0
        %v707 = vmax.f32 %v604, 0.0
        %v708 = vmax.f32 %v662, 0.0
        %v709 = vmax.f32 %v607, 0.0
        %v710 = vmax.f32 %v665, 0.0
        %v711 = vmax.f32 %v609, 0.0
        %v712 = vmax.f32 %v667, 0.0
        %v713 = vmax.f32 %v612, 0.0
        %v714 = vmax.f32 %v670, 0.0
        %v715 = vmax.f32 %v614, 0.0
        %v716 = vmax.f32 %v672, 0.0
        %v717 = vmax.f32 %v617, 0.0
        %v718 = vmax.f32 %v675, 0.0
        %v719 = vmax.f32 %v619, 0.0
        %v720 = vmax.f32 %v677, 0.0
        %v721 = vmax.f32 %v622, 0.0
        %v722 = vmax.f32 %v680, 0.0
        %v723 = vmax.f32 %v624, 0.0
        %v724 = vmax.f32 %v682, 0.0
        %v725 = vmax.f32 %v627, 0.0
        %v726 = vmax.f32 %v685, 0.0
        %v727 = vmax.f32 %v629, 0.0
        %v728 = vmax.f32 %v687, 0.0
        %v729 = vmax.f32 %v632, 0.0
        %v730 = vmax.f32 %v690, 0.0
        %v731 = vpack.c.bf16 %v695, %v693
        %v732 = vpack.c.bf16 %v696, %v694
        %v733 = vpack.c.bf16 %v699, %v697
        %v734 = vpack.c.bf16 %v700, %v698
        %v735 = vpack.c.bf16 %v703, %v701
        %v736 = vpack.c.bf16 %v704, %v702
        %v737 = vpack.c.bf16 %v707, %v705
        %v738 = vpack.c.bf16 %v708, %v706
        %v739 = vpack.c.bf16 %v711, %v709
        %v740 = vpack.c.bf16 %v712, %v710
        %v741 = vpack.c.bf16 %v715, %v713
        %v742 = vpack.c.bf16 %v716, %v714
        %v743 = vpack.c.bf16 %v719, %v717
        %v744 = vpack.c.bf16 %v720, %v718
        %v745 = vpack.c.bf16 %v723, %v721
        %v746 = vpack.c.bf16 %v724, %v722
        %v747 = vpack.c.bf16 %v727, %v725
        %v748 = vpack.c.bf16 %v728, %v726
        %v749 = vpack.c.bf16 %v729, %v729
        %v750 = vpack.c.bf16 %v730, %v730
        %v751 = vld [vmem:[%s3] sm:$0xff]
        %v752 = vld [vmem:[%s3 + $0x8] sm:$0xff]
        %v753 = vld [vmem:[%s3 + $0x10] sm:$0xff]
        %v754 = vld [vmem:[%s3 + $0x18] sm:$0xff]
        %v755 = vld [vmem:[%s3 + $0x20] sm:$0xff]
        %v756 = vld [vmem:[%s3 + $0x28] sm:$0xff]
        %v757 = vld [vmem:[%s3 + $0x30] sm:$0xff]
        %v758 = vld [vmem:[%s3 + $0x38] sm:$0xff]
        %v759 = vld [vmem:[%s3 + $0x40] sm:$0xff]
        %v760 = vld [vmem:[%s3 + $0x48] sm:$0xff]
        %v761 = vld [vmem:[%s3 + $0x50] sm:$0xff]
        %v762 = vld [vmem:[%s3 + $0x58] sm:$0xff]
        %v763 = vld [vmem:[%s3 + $0x60] sm:$0xff]
        %v764 = vld [vmem:[%s3 + $0x68] sm:$0xff]
        %v765 = vld [vmem:[%s3 + $0x70] sm:$0xff]
        %v766 = vld [vmem:[%s3 + $0x78] sm:$0xff]
        %v767 = vld [vmem:[%s3 + $0x80] sm:$0xff]
        %v768 = vld [vmem:[%s3 + $0x88] sm:$0xff]
        %v769 = vld [vmem:[%s3 + $0x90] sm:$0xff]
        %v770 = vld [vmem:[%s3 + $0x98] sm:$0xff]
        %v771 = vld [vmem:[%s3 + $0xa0] sm:$0xff]
        %v772 = vld [vmem:[%s3 + $0xa8] sm:$0xff]
        %v773 = vld [vmem:[%s3 + $0xb0] sm:$0xff]
        %v774 = vld [vmem:[%s3 + $0xb8] sm:$0xff]
        %v775 = vld [vmem:[%s3 + $0xc0] sm:$0xff]
        %v776 = vld [vmem:[%s3 + $0xc8] sm:$0xff]
        %v777 = vld [vmem:[%s3 + $0xd0] sm:$0xff]
        %v778 = vld [vmem:[%s3 + $0xd8] sm:$0xff]
        %v779 = vld [vmem:[%s3 + $0xe0] sm:$0xff]
        %v780 = vld [vmem:[%s3 + $0xe8] sm:$0xff]
        %v781 = vld [vmem:[%s3 + $0xf0] sm:$0xff]
        %v782 = vld [vmem:[%s3 + $0xf8] sm:$0xff]
        %v783 = vld [vmem:[%s4] sm:$0x3]
        %v785 = vperm.slane %v783, 0
        %v786 = vperm.slane %v783, 1
        %v821 = vunpack.c.l.b16 %v751
        %v822 = vunpack.c.h.b16 %v751
        %v823 = vunpack.c.l.b16 %v752
        %v824 = vunpack.c.h.b16 %v752
        %v825 = vunpack.c.l.b16 %v753
        %v826 = vunpack.c.h.b16 %v753
        %v827 = vunpack.c.l.b16 %v754
        %v828 = vunpack.c.h.b16 %v754
        %v829 = vunpack.c.l.b16 %v755
        %v830 = vunpack.c.h.b16 %v755
        %v831 = vunpack.c.l.b16 %v756
        %v832 = vunpack.c.h.b16 %v756
        %v833 = vunpack.c.l.b16 %v757
        %v834 = vunpack.c.h.b16 %v757
        %v835 = vunpack.c.l.b16 %v758
        %v836 = vunpack.c.h.b16 %v758
        %v837 = vunpack.c.l.b16 %v759
        %v838 = vunpack.c.h.b16 %v759
        %v839 = vunpack.c.l.b16 %v760
        %v840 = vunpack.c.h.b16 %v760
        %v841 = vunpack.c.l.b16 %v761
        %v842 = vunpack.c.h.b16 %v761
        %v843 = vunpack.c.l.b16 %v762
        %v844 = vunpack.c.h.b16 %v762
        %v845 = vunpack.c.l.b16 %v763
        %v846 = vunpack.c.h.b16 %v763
        %v847 = vunpack.c.l.b16 %v764
        %v848 = vunpack.c.h.b16 %v764
        %v849 = vunpack.c.l.b16 %v765
        %v850 = vunpack.c.h.b16 %v765
        %v851 = vunpack.c.l.b16 %v766
        %v852 = vunpack.c.h.b16 %v766
        %v853 = vunpack.c.l.b16 %v767
        %v854 = vunpack.c.h.b16 %v767
        %v855 = vunpack.c.l.b16 %v768
        %v856 = vunpack.c.h.b16 %v768
        %v857 = vunpack.c.l.b16 %v769
        %v858 = vunpack.c.h.b16 %v769
        %v859 = vunpack.c.l.b16 %v770
        %v860 = vunpack.c.h.b16 %v770
        %v861 = vunpack.c.l.b16 %v771
        %v862 = vunpack.c.h.b16 %v771
        %v863 = vunpack.c.l.b16 %v772
        %v864 = vunpack.c.h.b16 %v772
        %v865 = vunpack.c.l.b16 %v773
        %v866 = vunpack.c.h.b16 %v773
        %v867 = vunpack.c.l.b16 %v774
        %v868 = vunpack.c.h.b16 %v774
        %v869 = vunpack.c.l.b16 %v775
        %v870 = vunpack.c.h.b16 %v775
        %v871 = vunpack.c.l.b16 %v776
        %v872 = vunpack.c.h.b16 %v776
        %v873 = vunpack.c.l.b16 %v777
        %v874 = vunpack.c.h.b16 %v777
        %v875 = vunpack.c.l.b16 %v778
        %v876 = vunpack.c.h.b16 %v778
        %v877 = vunpack.c.l.b16 %v779
        %v878 = vunpack.c.h.b16 %v779
        %v879 = vunpack.c.l.b16 %v780
        %v880 = vunpack.c.h.b16 %v780
        %v881 = vunpack.c.l.b16 %v781
        %v882 = vunpack.c.h.b16 %v781
        %v883 = vunpack.c.l.b16 %v782
        %v884 = vunpack.c.h.b16 %v782
        %v885 = vpack.c.b16 %v823, %v821
        %v886 = vpack.c.b16 %v824, %v822
        %v887 = vpack.c.b16 %v827, %v825
        %v888 = vpack.c.b16 %v828, %v826
        %v889 = vpack.c.b16 %v831, %v829
        %v890 = vpack.c.b16 %v832, %v830
        %v891 = vpack.c.b16 %v835, %v833
        %v892 = vpack.c.b16 %v836, %v834
        %v893 = vpack.c.b16 %v839, %v837
        %v894 = vpack.c.b16 %v840, %v838
        %v895 = vpack.c.b16 %v843, %v841
        %v896 = vpack.c.b16 %v844, %v842
        %v897 = vpack.c.b16 %v847, %v845
        %v898 = vpack.c.b16 %v848, %v846
        %v899 = vpack.c.b16 %v851, %v849
        %v900 = vpack.c.b16 %v852, %v850
        %v901 = vpack.c.b16 %v855, %v853
        %v902 = vpack.c.b16 %v856, %v854
        %v903 = vpack.c.b16 %v859, %v857
        %v904 = vpack.c.b16 %v860, %v858
        %v905 = vpack.c.b16 %v863, %v861
        %v906 = vpack.c.b16 %v864, %v862
        %v907 = vpack.c.b16 %v867, %v865
        %v908 = vpack.c.b16 %v868, %v866
        %v909 = vpack.c.b16 %v871, %v869
        %v910 = vpack.c.b16 %v872, %v870
        %v911 = vpack.c.b16 %v875, %v873
        %v912 = vpack.c.b16 %v876, %v874
        %v913 = vpack.c.b16 %v879, %v877
        %v914 = vpack.c.b16 %v880, %v878
        %v915 = vpack.c.b16 %v883, %v881
        %v916 = vpack.c.b16 %v884, %v882
        %949 = vmatpush.bf16.msra.mxu0 %v899
        %950 = vmatpush.bf16.msra.mxu0 %v897
        %951 = vmatpush.bf16.msra.mxu0 %v895
        %952 = vmatpush.bf16.msra.mxu0 %v893
        %953 = vmatpush.bf16.msra.mxu0 %v891
        %954 = vmatpush.bf16.msra.mxu0 %v889
        %955 = vmatpush.bf16.msra.mxu0 %v887
        %956 = vmatpush.bf16.msra.mxu0 %v885
        %957 = vmatmul.bf16.gmra.mxu0 %v731
        %v958 = vpop.f32.mrf.mxu0
        %v959 = vadd.f32 %v785, %v958
        %v960 = vpop.f32.mrf.mxu0
        %v961 = vadd.f32 %v785, %v960
        %962 = vmatmul.bf16.gmra.mxu0 %v733
        %v963 = vpop.f32.mrf.mxu0
        %v964 = vadd.f32 %v785, %v963
        %v965 = vpop.f32.mrf.mxu0
        %v966 = vadd.f32 %v785, %v965
        %967 = vmatmul.bf16.gmra.mxu0 %v735
        %v968 = vpop.f32.mrf.mxu0
        %v969 = vadd.f32 %v785, %v968
        %v970 = vpop.f32.mrf.mxu0
        %v971 = vadd.f32 %v785, %v970
        %972 = vmatmul.bf16.gmra.mxu0 %v737
        %v973 = vpop.f32.mrf.mxu0
        %v974 = vadd.f32 %v785, %v973
        %v975 = vpop.f32.mrf.mxu0
        %v976 = vadd.f32 %v785, %v975
        %977 = vmatmul.bf16.gmra.mxu0 %v739
        %v978 = vpop.f32.mrf.mxu0
        %v979 = vadd.f32 %v785, %v978
        %v980 = vpop.f32.mrf.mxu0
        %v981 = vadd.f32 %v785, %v980
        %982 = vmatmul.bf16.gmra.mxu0 %v741
        %v983 = vpop.f32.mrf.mxu0
        %v984 = vadd.f32 %v785, %v983
        %v985 = vpop.f32.mrf.mxu0
        %v986 = vadd.f32 %v785, %v985
        %987 = vmatmul.bf16.gmra.mxu0 %v743
        %v988 = vpop.f32.mrf.mxu0
        %v989 = vadd.f32 %v785, %v988
        %v990 = vpop.f32.mrf.mxu0
        %v991 = vadd.f32 %v785, %v990
        %992 = vmatmul.bf16.gmra.mxu0 %v745
        %v993 = vpop.f32.mrf.mxu0
        %v994 = vadd.f32 %v785, %v993
        %v995 = vpop.f32.mrf.mxu0
        %v996 = vadd.f32 %v785, %v995
        %997 = vmatmul.bf16.gmra.mxu0 %v747
        %v998 = vpop.f32.mrf.mxu0
        %v999 = vadd.f32 %v785, %v998
        %v1000 = vpop.f32.mrf.mxu0
        %v1001 = vadd.f32 %v785, %v1000
        %1002 = vmatmul.bf16.gmra.mxu0 %v749
        %v1003 = vpop.f32.mrf.mxu0
        %v1004 = vadd.f32 %v785, %v1003
        %v1005 = vpop.f32.mrf.mxu0
        %1006 = vdwg.mxu0
        %1007 = vmatpush.bf16.msra.mxu0 %v915
        %1008 = vmatpush.bf16.msra.mxu0 %v913
        %1009 = vmatpush.bf16.msra.mxu0 %v911
        %1010 = vmatpush.bf16.msra.mxu0 %v909
        %1011 = vmatpush.bf16.msra.mxu0 %v907
        %1012 = vmatpush.bf16.msra.mxu0 %v905
        %1013 = vmatpush.bf16.msra.mxu0 %v903
        %1014 = vmatpush.bf16.msra.mxu0 %v901
        %1015 = vmatmul.bf16.gmra.mxu0 %v732
        %v1016 = vpop.f32.mrf.mxu0
        %v1017 = vadd.f32 %v959, %v1016
        %v1018 = vpop.f32.mrf.mxu0
        %v1019 = vadd.f32 %v961, %v1018
        %1020 = vmatmul.bf16.gmra.mxu0 %v734
        %v1021 = vpop.f32.mrf.mxu0
        %v1022 = vadd.f32 %v964, %v1021
        %v1023 = vpop.f32.mrf.mxu0
        %v1024 = vadd.f32 %v966, %v1023
        %1025 = vmatmul.bf16.gmra.mxu0 %v736
        %v1026 = vpop.f32.mrf.mxu0
        %v1027 = vadd.f32 %v969, %v1026
        %v1028 = vpop.f32.mrf.mxu0
        %v1029 = vadd.f32 %v971, %v1028
        %1030 = vmatmul.bf16.gmra.mxu0 %v738
        %v1031 = vpop.f32.mrf.mxu0
        %v1032 = vadd.f32 %v974, %v1031
        %v1033 = vpop.f32.mrf.mxu0
        %v1034 = vadd.f32 %v976, %v1033
        %1035 = vmatmul.bf16.gmra.mxu0 %v740
        %v1036 = vpop.f32.mrf.mxu0
        %v1037 = vadd.f32 %v979, %v1036
        %v1038 = vpop.f32.mrf.mxu0
        %v1039 = vadd.f32 %v981, %v1038
        %1040 = vmatmul.bf16.gmra.mxu0 %v742
        %v1041 = vpop.f32.mrf.mxu0
        %v1042 = vadd.f32 %v984, %v1041
        %v1043 = vpop.f32.mrf.mxu0
        %v1044 = vadd.f32 %v986, %v1043
        %1045 = vmatmul.bf16.gmra.mxu0 %v744
        %v1046 = vpop.f32.mrf.mxu0
        %v1047 = vadd.f32 %v989, %v1046
        %v1048 = vpop.f32.mrf.mxu0
        %v1049 = vadd.f32 %v991, %v1048
        %1050 = vmatmul.bf16.gmra.mxu0 %v746
        %v1051 = vpop.f32.mrf.mxu0
        %v1052 = vadd.f32 %v994, %v1051
        %v1053 = vpop.f32.mrf.mxu0
        %v1054 = vadd.f32 %v996, %v1053
        %1055 = vmatmul.bf16.gmra.mxu0 %v748
        %v1056 = vpop.f32.mrf.mxu0
        %v1057 = vadd.f32 %v999, %v1056
        %v1058 = vpop.f32.mrf.mxu0
        %v1059 = vadd.f32 %v1001, %v1058
        %1060 = vmatmul.bf16.gmra.mxu0 %v750
        %v1061 = vpop.f32.mrf.mxu0
        %v1062 = vadd.f32 %v1004, %v1061
        %v1063 = vpop.f32.mrf.mxu0
        %1064 = vdwg.mxu0
        %1065 = vmatpush.bf16.msra.mxu0 %v900
        %1066 = vmatpush.bf16.msra.mxu0 %v898
        %1067 = vmatpush.bf16.msra.mxu0 %v896
        %1068 = vmatpush.bf16.msra.mxu0 %v894
        %1069 = vmatpush.bf16.msra.mxu0 %v892
        %1070 = vmatpush.bf16.msra.mxu0 %v890
        %1071 = vmatpush.bf16.msra.mxu0 %v888
        %1072 = vmatpush.bf16.msra.mxu0 %v886
        %1073 = vmatmul.bf16.gmra.mxu0 %v731
        %v1074 = vpop.f32.mrf.mxu0
        %v1075 = vadd.f32 %v786, %v1074
        %v1076 = vpop.f32.mrf.mxu0
        %v1077 = vadd.f32 %v786, %v1076
        %1078 = vmatmul.bf16.gmra.mxu0 %v733
        %v1079 = vpop.f32.mrf.mxu0
        %v1080 = vadd.f32 %v786, %v1079
        %v1081 = vpop.f32.mrf.mxu0
        %v1082 = vadd.f32 %v786, %v1081
        %1083 = vmatmul.bf16.gmra.mxu0 %v735
        %v1084 = vpop.f32.mrf.mxu0
        %v1085 = vadd.f32 %v786, %v1084
        %v1086 = vpop.f32.mrf.mxu0
        %v1087 = vadd.f32 %v786, %v1086
        %1088 = vmatmul.bf16.gmra.mxu0 %v737
        %v1089 = vpop.f32.mrf.mxu0
        %v1090 = vadd.f32 %v786, %v1089
        %v1091 = vpop.f32.mrf.mxu0
        %v1092 = vadd.f32 %v786, %v1091
        %1093 = vmatmul.bf16.gmra.mxu0 %v739
        %v1094 = vpop.f32.mrf.mxu0
        %v1095 = vadd.f32 %v786, %v1094
        %v1096 = vpop.f32.mrf.mxu0
        %v1097 = vadd.f32 %v786, %v1096
        %1098 = vmatmul.bf16.gmra.mxu0 %v741
        %v1099 = vpop.f32.mrf.mxu0
        %v1100 = vadd.f32 %v786, %v1099
        %v1101 = vpop.f32.mrf.mxu0
        %v1102 = vadd.f32 %v786, %v1101
        %1103 = vmatmul.bf16.gmra.mxu0 %v743
        %v1104 = vpop.f32.mrf.mxu0
        %v1105 = vadd.f32 %v786, %v1104
        %v1106 = vpop.f32.mrf.mxu0
        %v1107 = vadd.f32 %v786, %v1106
        %1108 = vmatmul.bf16.gmra.mxu0 %v745
        %v1109 = vpop.f32.mrf.mxu0
        %v1110 = vadd.f32 %v786, %v1109
        %v1111 = vpop.f32.mrf.mxu0
        %v1112 = vadd.f32 %v786, %v1111
        %1113 = vmatmul.bf16.gmra.mxu0 %v747
        %v1114 = vpop.f32.mrf.mxu0
        %v1115 = vadd.f32 %v786, %v1114
        %v1116 = vpop.f32.mrf.mxu0
        %v1117 = vadd.f32 %v786, %v1116
        %1118 = vmatmul.bf16.gmra.mxu0 %v749
        %v1119 = vpop.f32.mrf.mxu0
        %v1120 = vadd.f32 %v786, %v1119
        %v1121 = vpop.f32.mrf.mxu0
        %1122 = vdwg.mxu0
        %1123 = vmatpush.bf16.msra.mxu0 %v916
        %1124 = vmatpush.bf16.msra.mxu0 %v914
        %1125 = vmatpush.bf16.msra.mxu0 %v912
        %1126 = vmatpush.bf16.msra.mxu0 %v910
        %1127 = vmatpush.bf16.msra.mxu0 %v908
        %1128 = vmatpush.bf16.msra.mxu0 %v906
        %1129 = vmatpush.bf16.msra.mxu0 %v904
        %1130 = vmatpush.bf16.msra.mxu0 %v902
        %1131 = vmatmul.bf16.gmra.mxu0 %v732
        %v1132 = vpop.f32.mrf.mxu0
        %v1133 = vadd.f32 %v1075, %v1132
        %v1134 = vpop.f32.mrf.mxu0
        %v1135 = vadd.f32 %v1077, %v1134
        %1136 = vmatmul.bf16.gmra.mxu0 %v734
        %v1137 = vpop.f32.mrf.mxu0
        %v1138 = vadd.f32 %v1080, %v1137
        %v1139 = vpop.f32.mrf.mxu0
        %v1140 = vadd.f32 %v1082, %v1139
        %1141 = vmatmul.bf16.gmra.mxu0 %v736
        %v1142 = vpop.f32.mrf.mxu0
        %v1143 = vadd.f32 %v1085, %v1142
        %v1144 = vpop.f32.mrf.mxu0
        %v1145 = vadd.f32 %v1087, %v1144
        %1146 = vmatmul.bf16.gmra.mxu0 %v738
        %v1147 = vpop.f32.mrf.mxu0
        %v1148 = vadd.f32 %v1090, %v1147
        %v1149 = vpop.f32.mrf.mxu0
        %v1150 = vadd.f32 %v1092, %v1149
        %1151 = vmatmul.bf16.gmra.mxu0 %v740
        %v1152 = vpop.f32.mrf.mxu0
        %v1153 = vadd.f32 %v1095, %v1152
        %v1154 = vpop.f32.mrf.mxu0
        %v1155 = vadd.f32 %v1097, %v1154
        %1156 = vmatmul.bf16.gmra.mxu0 %v742
        %v1157 = vpop.f32.mrf.mxu0
        %v1158 = vadd.f32 %v1100, %v1157
        %v1159 = vpop.f32.mrf.mxu0
        %v1160 = vadd.f32 %v1102, %v1159
        %1161 = vmatmul.bf16.gmra.mxu0 %v744
        %v1162 = vpop.f32.mrf.mxu0
        %v1163 = vadd.f32 %v1105, %v1162
        %v1164 = vpop.f32.mrf.mxu0
        %v1165 = vadd.f32 %v1107, %v1164
        %1166 = vmatmul.bf16.gmra.mxu0 %v746
        %v1167 = vpop.f32.mrf.mxu0
        %v1168 = vadd.f32 %v1110, %v1167
        %v1169 = vpop.f32.mrf.mxu0
        %v1170 = vadd.f32 %v1112, %v1169
        %1171 = vmatmul.bf16.gmra.mxu0 %v748
        %v1172 = vpop.f32.mrf.mxu0
        %v1173 = vadd.f32 %v1115, %v1172
        %v1174 = vpop.f32.mrf.mxu0
        %v1175 = vadd.f32 %v1117, %v1174
        %1176 = vmatmul.bf16.gmra.mxu0 %v750
        %v1177 = vpop.f32.mrf.mxu0
        %v1178 = vadd.f32 %v1120, %v1177
        %v1179 = vpop.f32.mrf.mxu0
        %1180 = vdwg.mxu0
        %v1181 = vmax.f32 %v1017, 0.0
        %v1182 = vmax.f32 %v1133, 0.0
        %v1183 = vmax.f32 %v1019, 0.0
        %v1184 = vmax.f32 %v1135, 0.0
        %v1185 = vmax.f32 %v1022, 0.0
        %v1186 = vmax.f32 %v1138, 0.0
        %v1187 = vmax.f32 %v1024, 0.0
        %v1188 = vmax.f32 %v1140, 0.0
        %v1189 = vmax.f32 %v1027, 0.0
        %v1190 = vmax.f32 %v1143, 0.0
        %v1191 = vmax.f32 %v1029, 0.0
        %v1192 = vmax.f32 %v1145, 0.0
        %v1193 = vmax.f32 %v1032, 0.0
        %v1194 = vmax.f32 %v1148, 0.0
        %v1195 = vmax.f32 %v1034, 0.0
        %v1196 = vmax.f32 %v1150, 0.0
        %v1197 = vmax.f32 %v1037, 0.0
        %v1198 = vmax.f32 %v1153, 0.0
        %v1199 = vmax.f32 %v1039, 0.0
        %v1200 = vmax.f32 %v1155, 0.0
        %v1201 = vmax.f32 %v1042, 0.0
        %v1202 = vmax.f32 %v1158, 0.0
        %v1203 = vmax.f32 %v1044, 0.0
        %v1204 = vmax.f32 %v1160, 0.0
        %v1205 = vmax.f32 %v1047, 0.0
        %v1206 = vmax.f32 %v1163, 0.0
        %v1207 = vmax.f32 %v1049, 0.0
        %v1208 = vmax.f32 %v1165, 0.0
        %v1209 = vmax.f32 %v1052, 0.0
        %v1210 = vmax.f32 %v1168, 0.0
        %v1211 = vmax.f32 %v1054, 0.0
        %v1212 = vmax.f32 %v1170, 0.0
        %v1213 = vmax.f32 %v1057, 0.0
        %v1214 = vmax.f32 %v1173, 0.0
        %v1215 = vmax.f32 %v1059, 0.0
        %v1216 = vmax.f32 %v1175, 0.0
        %v1217 = vmax.f32 %v1062, 0.0
        %v1218 = vmax.f32 %v1178, 0.0
        %v1219 = vpack.c.bf16 %v1183, %v1181
        %v1220 = vpack.c.bf16 %v1184, %v1182
        %v1221 = vpack.c.bf16 %v1187, %v1185
        %v1222 = vpack.c.bf16 %v1188, %v1186
        %v1223 = vpack.c.bf16 %v1191, %v1189
        %v1224 = vpack.c.bf16 %v1192, %v1190
        %v1225 = vpack.c.bf16 %v1195, %v1193
        %v1226 = vpack.c.bf16 %v1196, %v1194
        %v1227 = vpack.c.bf16 %v1199, %v1197
        %v1228 = vpack.c.bf16 %v1200, %v1198
        %v1229 = vpack.c.bf16 %v1203, %v1201
        %v1230 = vpack.c.bf16 %v1204, %v1202
        %v1231 = vpack.c.bf16 %v1207, %v1205
        %v1232 = vpack.c.bf16 %v1208, %v1206
        %v1233 = vpack.c.bf16 %v1211, %v1209
        %v1234 = vpack.c.bf16 %v1212, %v1210
        %v1235 = vpack.c.bf16 %v1215, %v1213
        %v1236 = vpack.c.bf16 %v1216, %v1214
        %v1237 = vpack.c.bf16 %v1217, %v1217
        %v1238 = vpack.c.bf16 %v1218, %v1218
        %v1239 = vld [vmem:[%s5] sm:$0xff]
        %v1240 = vld [vmem:[%s5 + $0x8] sm:$0xff]
        %v1241 = vld [vmem:[%s5 + $0x10] sm:$0xff]
        %v1242 = vld [vmem:[%s5 + $0x18] sm:$0xff]
        %v1243 = vld [vmem:[%s5 + $0x20] sm:$0xff]
        %v1244 = vld [vmem:[%s5 + $0x28] sm:$0xff]
        %v1245 = vld [vmem:[%s5 + $0x30] sm:$0xff]
        %v1246 = vld [vmem:[%s5 + $0x38] sm:$0xff]
        %v1247 = vld [vmem:[%s5 + $0x40] sm:$0xff]
        %v1248 = vld [vmem:[%s5 + $0x48] sm:$0xff]
        %v1249 = vld [vmem:[%s5 + $0x50] sm:$0xff]
        %v1250 = vld [vmem:[%s5 + $0x58] sm:$0xff]
        %v1251 = vld [vmem:[%s5 + $0x60] sm:$0xff]
        %v1252 = vld [vmem:[%s5 + $0x68] sm:$0xff]
        %v1253 = vld [vmem:[%s5 + $0x70] sm:$0xff]
        %v1254 = vld [vmem:[%s5 + $0x78] sm:$0xff]
        %v1255 = vld [vmem:[%s5 + $0x80] sm:$0xff]
        %v1256 = vld [vmem:[%s5 + $0x88] sm:$0xff]
        %v1257 = vld [vmem:[%s5 + $0x90] sm:$0xff]
        %v1258 = vld [vmem:[%s5 + $0x98] sm:$0xff]
        %v1259 = vld [vmem:[%s5 + $0xa0] sm:$0xff]
        %v1260 = vld [vmem:[%s5 + $0xa8] sm:$0xff]
        %v1261 = vld [vmem:[%s5 + $0xb0] sm:$0xff]
        %v1262 = vld [vmem:[%s5 + $0xb8] sm:$0xff]
        %v1263 = vld [vmem:[%s5 + $0xc0] sm:$0xff]
        %v1264 = vld [vmem:[%s5 + $0xc8] sm:$0xff]
        %v1265 = vld [vmem:[%s5 + $0xd0] sm:$0xff]
        %v1266 = vld [vmem:[%s5 + $0xd8] sm:$0xff]
        %v1267 = vld [vmem:[%s5 + $0xe0] sm:$0xff]
        %v1268 = vld [vmem:[%s5 + $0xe8] sm:$0xff]
        %v1269 = vld [vmem:[%s5 + $0xf0] sm:$0xff]
        %v1270 = vld [vmem:[%s5 + $0xf8] sm:$0xff]
        %v1271 = vld [vmem:[%s6] sm:$0x3]
        %v1273 = vperm.slane %v1271, 0
        %v1274 = vperm.slane %v1271, 1
        %v1309 = vunpack.c.l.b16 %v1239
        %v1310 = vunpack.c.h.b16 %v1239
        %v1311 = vunpack.c.l.b16 %v1240
        %v1312 = vunpack.c.h.b16 %v1240
        %v1313 = vunpack.c.l.b16 %v1241
        %v1314 = vunpack.c.h.b16 %v1241
        %v1315 = vunpack.c.l.b16 %v1242
        %v1316 = vunpack.c.h.b16 %v1242
        %v1317 = vunpack.c.l.b16 %v1243
        %v1318 = vunpack.c.h.b16 %v1243
        %v1319 = vunpack.c.l.b16 %v1244
        %v1320 = vunpack.c.h.b16 %v1244
        %v1321 = vunpack.c.l.b16 %v1245
        %v1322 = vunpack.c.h.b16 %v1245
        %v1323 = vunpack.c.l.b16 %v1246
        %v1324 = vunpack.c.h.b16 %v1246
        %v1325 = vunpack.c.l.b16 %v1247
        %v1326 = vunpack.c.h.b16 %v1247
        %v1327 = vunpack.c.l.b16 %v1248
        %v1328 = vunpack.c.h.b16 %v1248
        %v1329 = vunpack.c.l.b16 %v1249
        %v1330 = vunpack.c.h.b16 %v1249
        %v1331 = vunpack.c.l.b16 %v1250
        %v1332 = vunpack.c.h.b16 %v1250
        %v1333 = vunpack.c.l.b16 %v1251
        %v1334 = vunpack.c.h.b16 %v1251
        %v1335 = vunpack.c.l.b16 %v1252
        %v1336 = vunpack.c.h.b16 %v1252
        %v1337 = vunpack.c.l.b16 %v1253
        %v1338 = vunpack.c.h.b16 %v1253
        %v1339 = vunpack.c.l.b16 %v1254
        %v1340 = vunpack.c.h.b16 %v1254
        %v1341 = vunpack.c.l.b16 %v1255
        %v1342 = vunpack.c.h.b16 %v1255
        %v1343 = vunpack.c.l.b16 %v1256
        %v1344 = vunpack.c.h.b16 %v1256
        %v1345 = vunpack.c.l.b16 %v1257
        %v1346 = vunpack.c.h.b16 %v1257
        %v1347 = vunpack.c.l.b16 %v1258
        %v1348 = vunpack.c.h.b16 %v1258
        %v1349 = vunpack.c.l.b16 %v1259
        %v1350 = vunpack.c.h.b16 %v1259
        %v1351 = vunpack.c.l.b16 %v1260
        %v1352 = vunpack.c.h.b16 %v1260
        %v1353 = vunpack.c.l.b16 %v1261
        %v1354 = vunpack.c.h.b16 %v1261
        %v1355 = vunpack.c.l.b16 %v1262
        %v1356 = vunpack.c.h.b16 %v1262
        %v1357 = vunpack.c.l.b16 %v1263
        %v1358 = vunpack.c.h.b16 %v1263
        %v1359 = vunpack.c.l.b16 %v1264
        %v1360 = vunpack.c.h.b16 %v1264
        %v1361 = vunpack.c.l.b16 %v1265
        %v1362 = vunpack.c.h.b16 %v1265
        %v1363 = vunpack.c.l.b16 %v1266
        %v1364 = vunpack.c.h.b16 %v1266
        %v1365 = vunpack.c.l.b16 %v1267
        %v1366 = vunpack.c.h.b16 %v1267
        %v1367 = vunpack.c.l.b16 %v1268
        %v1368 = vunpack.c.h.b16 %v1268
        %v1369 = vunpack.c.l.b16 %v1269
        %v1370 = vunpack.c.h.b16 %v1269
        %v1371 = vunpack.c.l.b16 %v1270
        %v1372 = vunpack.c.h.b16 %v1270
        %v1373 = vpack.c.b16 %v1311, %v1309
        %v1374 = vpack.c.b16 %v1312, %v1310
        %v1375 = vpack.c.b16 %v1315, %v1313
        %v1376 = vpack.c.b16 %v1316, %v1314
        %v1377 = vpack.c.b16 %v1319, %v1317
        %v1378 = vpack.c.b16 %v1320, %v1318
        %v1379 = vpack.c.b16 %v1323, %v1321
        %v1380 = vpack.c.b16 %v1324, %v1322
        %v1381 = vpack.c.b16 %v1327, %v1325
        %v1382 = vpack.c.b16 %v1328, %v1326
        %v1383 = vpack.c.b16 %v1331, %v1329
        %v1384 = vpack.c.b16 %v1332, %v1330
        %v1385 = vpack.c.b16 %v1335, %v1333
        %v1386 = vpack.c.b16 %v1336, %v1334
        %v1387 = vpack.c.b16 %v1339, %v1337
        %v1388 = vpack.c.b16 %v1340, %v1338
        %v1389 = vpack.c.b16 %v1343, %v1341
        %v1390 = vpack.c.b16 %v1344, %v1342
        %v1391 = vpack.c.b16 %v1347, %v1345
        %v1392 = vpack.c.b16 %v1348, %v1346
        %v1393 = vpack.c.b16 %v1351, %v1349
        %v1394 = vpack.c.b16 %v1352, %v1350
        %v1395 = vpack.c.b16 %v1355, %v1353
        %v1396 = vpack.c.b16 %v1356, %v1354
        %v1397 = vpack.c.b16 %v1359, %v1357
        %v1398 = vpack.c.b16 %v1360, %v1358
        %v1399 = vpack.c.b16 %v1363, %v1361
        %v1400 = vpack.c.b16 %v1364, %v1362
        %v1401 = vpack.c.b16 %v1367, %v1365
        %v1402 = vpack.c.b16 %v1368, %v1366
        %v1403 = vpack.c.b16 %v1371, %v1369
        %v1404 = vpack.c.b16 %v1372, %v1370
        %1437 = vmatpush.bf16.msra.mxu0 %v1387
        %1438 = vmatpush.bf16.msra.mxu0 %v1385
        %1439 = vmatpush.bf16.msra.mxu0 %v1383
        %1440 = vmatpush.bf16.msra.mxu0 %v1381
        %1441 = vmatpush.bf16.msra.mxu0 %v1379
        %1442 = vmatpush.bf16.msra.mxu0 %v1377
        %1443 = vmatpush.bf16.msra.mxu0 %v1375
        %1444 = vmatpush.bf16.msra.mxu0 %v1373
        %1445 = vmatmul.bf16.gmra.mxu0 %v1219
        %v1446 = vpop.f32.mrf.mxu0
        %v1447 = vadd.f32 %v1273, %v1446
        %v1448 = vpop.f32.mrf.mxu0
        %v1449 = vadd.f32 %v1273, %v1448
        %1450 = vmatmul.bf16.gmra.mxu0 %v1221
        %v1451 = vpop.f32.mrf.mxu0
        %v1452 = vadd.f32 %v1273, %v1451
        %v1453 = vpop.f32.mrf.mxu0
        %v1454 = vadd.f32 %v1273, %v1453
        %1455 = vmatmul.bf16.gmra.mxu0 %v1223
        %v1456 = vpop.f32.mrf.mxu0
        %v1457 = vadd.f32 %v1273, %v1456
        %v1458 = vpop.f32.mrf.mxu0
        %v1459 = vadd.f32 %v1273, %v1458
        %1460 = vmatmul.bf16.gmra.mxu0 %v1225
        %v1461 = vpop.f32.mrf.mxu0
        %v1462 = vadd.f32 %v1273, %v1461
        %v1463 = vpop.f32.mrf.mxu0
        %v1464 = vadd.f32 %v1273, %v1463
        %1465 = vmatmul.bf16.gmra.mxu0 %v1227
        %v1466 = vpop.f32.mrf.mxu0
        %v1467 = vadd.f32 %v1273, %v1466
        %v1468 = vpop.f32.mrf.mxu0
        %v1469 = vadd.f32 %v1273, %v1468
        %1470 = vmatmul.bf16.gmra.mxu0 %v1229
        %v1471 = vpop.f32.mrf.mxu0
        %v1472 = vadd.f32 %v1273, %v1471
        %v1473 = vpop.f32.mrf.mxu0
        %v1474 = vadd.f32 %v1273, %v1473
        %1475 = vmatmul.bf16.gmra.mxu0 %v1231
        %v1476 = vpop.f32.mrf.mxu0
        %v1477 = vadd.f32 %v1273, %v1476
        %v1478 = vpop.f32.mrf.mxu0
        %v1479 = vadd.f32 %v1273, %v1478
        %1480 = vmatmul.bf16.gmra.mxu0 %v1233
        %v1481 = vpop.f32.mrf.mxu0
        %v1482 = vadd.f32 %v1273, %v1481
        %v1483 = vpop.f32.mrf.mxu0
        %v1484 = vadd.f32 %v1273, %v1483
        %1485 = vmatmul.bf16.gmra.mxu0 %v1235
        %v1486 = vpop.f32.mrf.mxu0
        %v1487 = vadd.f32 %v1273, %v1486
        %v1488 = vpop.f32.mrf.mxu0
        %v1489 = vadd.f32 %v1273, %v1488
        %1490 = vmatmul.bf16.gmra.mxu0 %v1237
        %v1491 = vpop.f32.mrf.mxu0
        %v1492 = vadd.f32 %v1273, %v1491
        %v1493 = vpop.f32.mrf.mxu0
        %1494 = vdwg.mxu0
        %1495 = vmatpush.bf16.msra.mxu0 %v1403
        %1496 = vmatpush.bf16.msra.mxu0 %v1401
        %1497 = vmatpush.bf16.msra.mxu0 %v1399
        %1498 = vmatpush.bf16.msra.mxu0 %v1397
        %1499 = vmatpush.bf16.msra.mxu0 %v1395
        %1500 = vmatpush.bf16.msra.mxu0 %v1393
        %1501 = vmatpush.bf16.msra.mxu0 %v1391
        %1502 = vmatpush.bf16.msra.mxu0 %v1389
        %1503 = vmatmul.bf16.gmra.mxu0 %v1220
        %v1504 = vpop.f32.mrf.mxu0
        %v1505 = vadd.f32 %v1447, %v1504
        %v1506 = vpop.f32.mrf.mxu0
        %v1507 = vadd.f32 %v1449, %v1506
        %1508 = vmatmul.bf16.gmra.mxu0 %v1222
        %v1509 = vpop.f32.mrf.mxu0
        %v1510 = vadd.f32 %v1452, %v1509
        %v1511 = vpop.f32.mrf.mxu0
        %v1512 = vadd.f32 %v1454, %v1511
        %1513 = vmatmul.bf16.gmra.mxu0 %v1224
        %v1514 = vpop.f32.mrf.mxu0
        %v1515 = vadd.f32 %v1457, %v1514
        %v1516 = vpop.f32.mrf.mxu0
        %v1517 = vadd.f32 %v1459, %v1516
        %1518 = vmatmul.bf16.gmra.mxu0 %v1226
        %v1519 = vpop.f32.mrf.mxu0
        %v1520 = vadd.f32 %v1462, %v1519
        %v1521 = vpop.f32.mrf.mxu0
        %v1522 = vadd.f32 %v1464, %v1521
        %1523 = vmatmul.bf16.gmra.mxu0 %v1228
        %v1524 = vpop.f32.mrf.mxu0
        %v1525 = vadd.f32 %v1467, %v1524
        %v1526 = vpop.f32.mrf.mxu0
        %v1527 = vadd.f32 %v1469, %v1526
        %1528 = vmatmul.bf16.gmra.mxu0 %v1230
        %v1529 = vpop.f32.mrf.mxu0
        %v1530 = vadd.f32 %v1472, %v1529
        %v1531 = vpop.f32.mrf.mxu0
        %v1532 = vadd.f32 %v1474, %v1531
        %1533 = vmatmul.bf16.gmra.mxu0 %v1232
        %v1534 = vpop.f32.mrf.mxu0
        %v1535 = vadd.f32 %v1477, %v1534
        %v1536 = vpop.f32.mrf.mxu0
        %v1537 = vadd.f32 %v1479, %v1536
        %1538 = vmatmul.bf16.gmra.mxu0 %v1234
        %v1539 = vpop.f32.mrf.mxu0
        %v1540 = vadd.f32 %v1482, %v1539
        %v1541 = vpop.f32.mrf.mxu0
        %v1542 = vadd.f32 %v1484, %v1541
        %1543 = vmatmul.bf16.gmra.mxu0 %v1236
        %v1544 = vpop.f32.mrf.mxu0
        %v1545 = vadd.f32 %v1487, %v1544
        %v1546 = vpop.f32.mrf.mxu0
        %v1547 = vadd.f32 %v1489, %v1546
        %1548 = vmatmul.bf16.gmra.mxu0 %v1238
        %v1549 = vpop.f32.mrf.mxu0
        %v1550 = vadd.f32 %v1492, %v1549
        %v1551 = vpop.f32.mrf.mxu0
        %1552 = vdwg.mxu0
        %1553 = vmatpush.bf16.msra.mxu0 %v1388
        %1554 = vmatpush.bf16.msra.mxu0 %v1386
        %1555 = vmatpush.bf16.msra.mxu0 %v1384
        %1556 = vmatpush.bf16.msra.mxu0 %v1382
        %1557 = vmatpush.bf16.msra.mxu0 %v1380
        %1558 = vmatpush.bf16.msra.mxu0 %v1378
        %1559 = vmatpush.bf16.msra.mxu0 %v1376
        %1560 = vmatpush.bf16.msra.mxu0 %v1374
        %1561 = vmatmul.bf16.gmra.mxu0 %v1219
        %v1562 = vpop.f32.mrf.mxu0
        %v1563 = vadd.f32 %v1274, %v1562
        %v1564 = vpop.f32.mrf.mxu0
        %v1565 = vadd.f32 %v1274, %v1564
        %1566 = vmatmul.bf16.gmra.mxu0 %v1221
        %v1567 = vpop.f32.mrf.mxu0
        %v1568 = vadd.f32 %v1274, %v1567
        %v1569 = vpop.f32.mrf.mxu0
        %v1570 = vadd.f32 %v1274, %v1569
        %1571 = vmatmul.bf16.gmra.mxu0 %v1223
        %v1572 = vpop.f32.mrf.mxu0
        %v1573 = vadd.f32 %v1274, %v1572
        %v1574 = vpop.f32.mrf.mxu0
        %v1575 = vadd.f32 %v1274, %v1574
        %1576 = vmatmul.bf16.gmra.mxu0 %v1225
        %v1577 = vpop.f32.mrf.mxu0
        %v1578 = vadd.f32 %v1274, %v1577
        %v1579 = vpop.f32.mrf.mxu0
        %v1580 = vadd.f32 %v1274, %v1579
        %1581 = vmatmul.bf16.gmra.mxu0 %v1227
        %v1582 = vpop.f32.mrf.mxu0
        %v1583 = vadd.f32 %v1274, %v1582
        %v1584 = vpop.f32.mrf.mxu0
        %v1585 = vadd.f32 %v1274, %v1584
        %1586 = vmatmul.bf16.gmra.mxu0 %v1229
        %v1587 = vpop.f32.mrf.mxu0
        %v1588 = vadd.f32 %v1274, %v1587
        %v1589 = vpop.f32.mrf.mxu0
        %v1590 = vadd.f32 %v1274, %v1589
        %1591 = vmatmul.bf16.gmra.mxu0 %v1231
        %v1592 = vpop.f32.mrf.mxu0
        %v1593 = vadd.f32 %v1274, %v1592
        %v1594 = vpop.f32.mrf.mxu0
        %v1595 = vadd.f32 %v1274, %v1594
        %1596 = vmatmul.bf16.gmra.mxu0 %v1233
        %v1597 = vpop.f32.mrf.mxu0
        %v1598 = vadd.f32 %v1274, %v1597
        %v1599 = vpop.f32.mrf.mxu0
        %v1600 = vadd.f32 %v1274, %v1599
        %1601 = vmatmul.bf16.gmra.mxu0 %v1235
        %v1602 = vpop.f32.mrf.mxu0
        %v1603 = vadd.f32 %v1274, %v1602
        %v1604 = vpop.f32.mrf.mxu0
        %v1605 = vadd.f32 %v1274, %v1604
        %1606 = vmatmul.bf16.gmra.mxu0 %v1237
        %v1607 = vpop.f32.mrf.mxu0
        %v1608 = vadd.f32 %v1274, %v1607
        %v1609 = vpop.f32.mrf.mxu0
        %1610 = vdwg.mxu0
        %1611 = vmatpush.bf16.msra.mxu0 %v1404
        %1612 = vmatpush.bf16.msra.mxu0 %v1402
        %1613 = vmatpush.bf16.msra.mxu0 %v1400
        %1614 = vmatpush.bf16.msra.mxu0 %v1398
        %1615 = vmatpush.bf16.msra.mxu0 %v1396
        %1616 = vmatpush.bf16.msra.mxu0 %v1394
        %1617 = vmatpush.bf16.msra.mxu0 %v1392
        %1618 = vmatpush.bf16.msra.mxu0 %v1390
        %1619 = vmatmul.bf16.gmra.mxu0 %v1220
        %v1620 = vpop.f32.mrf.mxu0
        %v1621 = vadd.f32 %v1563, %v1620
        %v1622 = vpop.f32.mrf.mxu0
        %v1623 = vadd.f32 %v1565, %v1622
        %1624 = vmatmul.bf16.gmra.mxu0 %v1222
        %v1625 = vpop.f32.mrf.mxu0
        %v1626 = vadd.f32 %v1568, %v1625
        %v1627 = vpop.f32.mrf.mxu0
        %v1628 = vadd.f32 %v1570, %v1627
        %1629 = vmatmul.bf16.gmra.mxu0 %v1224
        %v1630 = vpop.f32.mrf.mxu0
        %v1631 = vadd.f32 %v1573, %v1630
        %v1632 = vpop.f32.mrf.mxu0
        %v1633 = vadd.f32 %v1575, %v1632
        %1634 = vmatmul.bf16.gmra.mxu0 %v1226
        %v1635 = vpop.f32.mrf.mxu0
        %v1636 = vadd.f32 %v1578, %v1635
        %v1637 = vpop.f32.mrf.mxu0
        %v1638 = vadd.f32 %v1580, %v1637
        %1639 = vmatmul.bf16.gmra.mxu0 %v1228
        %v1640 = vpop.f32.mrf.mxu0
        %v1641 = vadd.f32 %v1583, %v1640
        %v1642 = vpop.f32.mrf.mxu0
        %v1643 = vadd.f32 %v1585, %v1642
        %1644 = vmatmul.bf16.gmra.mxu0 %v1230
        %v1645 = vpop.f32.mrf.mxu0
        %v1646 = vadd.f32 %v1588, %v1645
        %v1647 = vpop.f32.mrf.mxu0
        %v1648 = vadd.f32 %v1590, %v1647
        %1649 = vmatmul.bf16.gmra.mxu0 %v1232
        %v1650 = vpop.f32.mrf.mxu0
        %v1651 = vadd.f32 %v1593, %v1650
        %v1652 = vpop.f32.mrf.mxu0
        %v1653 = vadd.f32 %v1595, %v1652
        %1654 = vmatmul.bf16.gmra.mxu0 %v1234
        %v1655 = vpop.f32.mrf.mxu0
        %v1656 = vadd.f32 %v1598, %v1655
        %v1657 = vpop.f32.mrf.mxu0
        %v1658 = vadd.f32 %v1600, %v1657
        %1659 = vmatmul.bf16.gmra.mxu0 %v1236
        %v1660 = vpop.f32.mrf.mxu0
        %v1661 = vadd.f32 %v1603, %v1660
        %v1662 = vpop.f32.mrf.mxu0
        %v1663 = vadd.f32 %v1605, %v1662
        %1664 = vmatmul.bf16.gmra.mxu0 %v1238
        %v1665 = vpop.f32.mrf.mxu0
        %v1666 = vadd.f32 %v1608, %v1665
        %v1667 = vpop.f32.mrf.mxu0
        %1668 = vdwg.mxu0
        %v1669 = vmax.f32 %v1505, 0.0
        %v1670 = vmax.f32 %v1621, 0.0
        %v1671 = vmax.f32 %v1507, 0.0
        %v1672 = vmax.f32 %v1623, 0.0
        %v1673 = vmax.f32 %v1510, 0.0
        %v1674 = vmax.f32 %v1626, 0.0
        %v1675 = vmax.f32 %v1512, 0.0
        %v1676 = vmax.f32 %v1628, 0.0
        %v1677 = vmax.f32 %v1515, 0.0
        %v1678 = vmax.f32 %v1631, 0.0
        %v1679 = vmax.f32 %v1517, 0.0
        %v1680 = vmax.f32 %v1633, 0.0
        %v1681 = vmax.f32 %v1520, 0.0
        %v1682 = vmax.f32 %v1636, 0.0
        %v1683 = vmax.f32 %v1522, 0.0
        %v1684 = vmax.f32 %v1638, 0.0
        %v1685 = vmax.f32 %v1525, 0.0
        %v1686 = vmax.f32 %v1641, 0.0
        %v1687 = vmax.f32 %v1527, 0.0
        %v1688 = vmax.f32 %v1643, 0.0
        %v1689 = vmax.f32 %v1530, 0.0
        %v1690 = vmax.f32 %v1646, 0.0
        %v1691 = vmax.f32 %v1532, 0.0
        %v1692 = vmax.f32 %v1648, 0.0
        %v1693 = vmax.f32 %v1535, 0.0
        %v1694 = vmax.f32 %v1651, 0.0
        %v1695 = vmax.f32 %v1537, 0.0
        %v1696 = vmax.f32 %v1653, 0.0
        %v1697 = vmax.f32 %v1540, 0.0
        %v1698 = vmax.f32 %v1656, 0.0
        %v1699 = vmax.f32 %v1542, 0.0
        %v1700 = vmax.f32 %v1658, 0.0
        %v1701 = vmax.f32 %v1545, 0.0
        %v1702 = vmax.f32 %v1661, 0.0
        %v1703 = vmax.f32 %v1547, 0.0
        %v1704 = vmax.f32 %v1663, 0.0
        %v1705 = vmax.f32 %v1550, 0.0
        %v1706 = vmax.f32 %v1666, 0.0
        %v1707 = vpack.c.bf16 %v1671, %v1669
        %v1708 = vpack.c.bf16 %v1672, %v1670
        %v1709 = vpack.c.bf16 %v1675, %v1673
        %v1710 = vpack.c.bf16 %v1676, %v1674
        %v1711 = vpack.c.bf16 %v1679, %v1677
        %v1712 = vpack.c.bf16 %v1680, %v1678
        %v1713 = vpack.c.bf16 %v1683, %v1681
        %v1714 = vpack.c.bf16 %v1684, %v1682
        %v1715 = vpack.c.bf16 %v1687, %v1685
        %v1716 = vpack.c.bf16 %v1688, %v1686
        %v1717 = vpack.c.bf16 %v1691, %v1689
        %v1718 = vpack.c.bf16 %v1692, %v1690
        %v1719 = vpack.c.bf16 %v1695, %v1693
        %v1720 = vpack.c.bf16 %v1696, %v1694
        %v1721 = vpack.c.bf16 %v1699, %v1697
        %v1722 = vpack.c.bf16 %v1700, %v1698
        %v1723 = vpack.c.bf16 %v1703, %v1701
        %v1724 = vpack.c.bf16 %v1704, %v1702
        %v1725 = vpack.c.bf16 %v1705, %v1705
        %v1726 = vpack.c.bf16 %v1706, %v1706
        %v1727 = vld [vmem:[#allocation5] sm:$0xff]
        %v1728 = vld [vmem:[#allocation5 + $0x8] sm:$0xff]
        %v1729 = vld [vmem:[#allocation5 + $0x10] sm:$0xff]
        %v1730 = vld [vmem:[#allocation5 + $0x18] sm:$0xff]
        %v1731 = vld [vmem:[#allocation5 + $0x20] sm:$0xff]
        %v1732 = vld [vmem:[#allocation5 + $0x28] sm:$0xff]
        %v1733 = vld [vmem:[#allocation5 + $0x30] sm:$0xff]
        %v1734 = vld [vmem:[#allocation5 + $0x38] sm:$0xff]
        %v1735 = vld [vmem:[#allocation5 + $0x40] sm:$0xff]
        %v1736 = vld [vmem:[#allocation5 + $0x48] sm:$0xff]
        %v1737 = vld [vmem:[#allocation5 + $0x50] sm:$0xff]
        %v1738 = vld [vmem:[#allocation5 + $0x58] sm:$0xff]
        %v1739 = vld [vmem:[#allocation5 + $0x60] sm:$0xff]
        %v1740 = vld [vmem:[#allocation5 + $0x68] sm:$0xff]
        %v1741 = vld [vmem:[#allocation5 + $0x70] sm:$0xff]
        %v1742 = vld [vmem:[#allocation5 + $0x78] sm:$0xff]
        %v1743 = vld [vmem:[#allocation5 + $0x80] sm:$0xff]
        %v1744 = vld [vmem:[#allocation5 + $0x88] sm:$0xff]
        %v1745 = vld [vmem:[#allocation5 + $0x90] sm:$0xff]
        %v1746 = vld [vmem:[#allocation5 + $0x98] sm:$0xff]
        %v1747 = vld [vmem:[#allocation5 + $0xa0] sm:$0xff]
        %v1748 = vld [vmem:[#allocation5 + $0xa8] sm:$0xff]
        %v1749 = vld [vmem:[#allocation5 + $0xb0] sm:$0xff]
        %v1750 = vld [vmem:[#allocation5 + $0xb8] sm:$0xff]
        %v1751 = vld [vmem:[#allocation5 + $0xc0] sm:$0xff]
        %v1752 = vld [vmem:[#allocation5 + $0xc8] sm:$0xff]
        %v1753 = vld [vmem:[#allocation5 + $0xd0] sm:$0xff]
        %v1754 = vld [vmem:[#allocation5 + $0xd8] sm:$0xff]
        %v1755 = vld [vmem:[#allocation5 + $0xe0] sm:$0xff]
        %v1756 = vld [vmem:[#allocation5 + $0xe8] sm:$0xff]
        %v1757 = vld [vmem:[#allocation5 + $0xf0] sm:$0xff]
        %v1758 = vld [vmem:[#allocation5 + $0xf8] sm:$0xff]
        %v1759 = vld [vmem:[%s8] sm:$0x3]
        %v1761 = vperm.slane %v1759, 0
        %v1762 = vperm.slane %v1759, 1
        %v1797 = vunpack.c.l.b16 %v1727
        %v1798 = vunpack.c.h.b16 %v1727
        %v1799 = vunpack.c.l.b16 %v1728
        %v1800 = vunpack.c.h.b16 %v1728
        %v1801 = vunpack.c.l.b16 %v1729
        %v1802 = vunpack.c.h.b16 %v1729
        %v1803 = vunpack.c.l.b16 %v1730
        %v1804 = vunpack.c.h.b16 %v1730
        %v1805 = vunpack.c.l.b16 %v1731
        %v1806 = vunpack.c.h.b16 %v1731
        %v1807 = vunpack.c.l.b16 %v1732
        %v1808 = vunpack.c.h.b16 %v1732
        %v1809 = vunpack.c.l.b16 %v1733
        %v1810 = vunpack.c.h.b16 %v1733
        %v1811 = vunpack.c.l.b16 %v1734
        %v1812 = vunpack.c.h.b16 %v1734
        %v1813 = vunpack.c.l.b16 %v1735
        %v1814 = vunpack.c.h.b16 %v1735
        %v1815 = vunpack.c.l.b16 %v1736
        %v1816 = vunpack.c.h.b16 %v1736
        %v1817 = vunpack.c.l.b16 %v1737
        %v1818 = vunpack.c.h.b16 %v1737
        %v1819 = vunpack.c.l.b16 %v1738
        %v1820 = vunpack.c.h.b16 %v1738
        %v1821 = vunpack.c.l.b16 %v1739
        %v1822 = vunpack.c.h.b16 %v1739
        %v1823 = vunpack.c.l.b16 %v1740
        %v1824 = vunpack.c.h.b16 %v1740
        %v1825 = vunpack.c.l.b16 %v1741
        %v1826 = vunpack.c.h.b16 %v1741
        %v1827 = vunpack.c.l.b16 %v1742
        %v1828 = vunpack.c.h.b16 %v1742
        %v1829 = vunpack.c.l.b16 %v1743
        %v1830 = vunpack.c.h.b16 %v1743
        %v1831 = vunpack.c.l.b16 %v1744
        %v1832 = vunpack.c.h.b16 %v1744
        %v1833 = vunpack.c.l.b16 %v1745
        %v1834 = vunpack.c.h.b16 %v1745
        %v1835 = vunpack.c.l.b16 %v1746
        %v1836 = vunpack.c.h.b16 %v1746
        %v1837 = vunpack.c.l.b16 %v1747
        %v1838 = vunpack.c.h.b16 %v1747
        %v1839 = vunpack.c.l.b16 %v1748
        %v1840 = vunpack.c.h.b16 %v1748
        %v1841 = vunpack.c.l.b16 %v1749
        %v1842 = vunpack.c.h.b16 %v1749
        %v1843 = vunpack.c.l.b16 %v1750
        %v1844 = vunpack.c.h.b16 %v1750
        %v1845 = vunpack.c.l.b16 %v1751
        %v1846 = vunpack.c.h.b16 %v1751
        %v1847 = vunpack.c.l.b16 %v1752
        %v1848 = vunpack.c.h.b16 %v1752
        %v1849 = vunpack.c.l.b16 %v1753
        %v1850 = vunpack.c.h.b16 %v1753
        %v1851 = vunpack.c.l.b16 %v1754
        %v1852 = vunpack.c.h.b16 %v1754
        %v1853 = vunpack.c.l.b16 %v1755
        %v1854 = vunpack.c.h.b16 %v1755
        %v1855 = vunpack.c.l.b16 %v1756
        %v1856 = vunpack.c.h.b16 %v1756
        %v1857 = vunpack.c.l.b16 %v1757
        %v1858 = vunpack.c.h.b16 %v1757
        %v1859 = vunpack.c.l.b16 %v1758
        %v1860 = vunpack.c.h.b16 %v1758
        %v1861 = vpack.c.b16 %v1799, %v1797
        %v1862 = vpack.c.b16 %v1800, %v1798
        %v1863 = vpack.c.b16 %v1803, %v1801
        %v1864 = vpack.c.b16 %v1804, %v1802
        %v1865 = vpack.c.b16 %v1807, %v1805
        %v1866 = vpack.c.b16 %v1808, %v1806
        %v1867 = vpack.c.b16 %v1811, %v1809
        %v1868 = vpack.c.b16 %v1812, %v1810
        %v1869 = vpack.c.b16 %v1815, %v1813
        %v1870 = vpack.c.b16 %v1816, %v1814
        %v1871 = vpack.c.b16 %v1819, %v1817
        %v1872 = vpack.c.b16 %v1820, %v1818
        %v1873 = vpack.c.b16 %v1823, %v1821
        %v1874 = vpack.c.b16 %v1824, %v1822
        %v1875 = vpack.c.b16 %v1827, %v1825
        %v1876 = vpack.c.b16 %v1828, %v1826
        %v1877 = vpack.c.b16 %v1831, %v1829
        %v1878 = vpack.c.b16 %v1832, %v1830
        %v1879 = vpack.c.b16 %v1835, %v1833
        %v1880 = vpack.c.b16 %v1836, %v1834
        %v1881 = vpack.c.b16 %v1839, %v1837
        %v1882 = vpack.c.b16 %v1840, %v1838
        %v1883 = vpack.c.b16 %v1843, %v1841
        %v1884 = vpack.c.b16 %v1844, %v1842
        %v1885 = vpack.c.b16 %v1847, %v1845
        %v1886 = vpack.c.b16 %v1848, %v1846
        %v1887 = vpack.c.b16 %v1851, %v1849
        %v1888 = vpack.c.b16 %v1852, %v1850
        %v1889 = vpack.c.b16 %v1855, %v1853
        %v1890 = vpack.c.b16 %v1856, %v1854
        %v1891 = vpack.c.b16 %v1859, %v1857
        %v1892 = vpack.c.b16 %v1860, %v1858
        %1925 = vmatpush.bf16.msra.mxu0 %v1875
        %1926 = vmatpush.bf16.msra.mxu0 %v1873
        %1927 = vmatpush.bf16.msra.mxu0 %v1871
        %1928 = vmatpush.bf16.msra.mxu0 %v1869
        %1929 = vmatpush.bf16.msra.mxu0 %v1867
        %1930 = vmatpush.bf16.msra.mxu0 %v1865
        %1931 = vmatpush.bf16.msra.mxu0 %v1863
        %1932 = vmatpush.bf16.msra.mxu0 %v1861
        %1933 = vmatmul.bf16.gmra.mxu0 %v1707
        %v1934 = vpop.f32.mrf.mxu0
        %v1935 = vadd.f32 %v1761, %v1934
        %v1936 = vpop.f32.mrf.mxu0
        %v1937 = vadd.f32 %v1761, %v1936
        %1938 = vmatmul.bf16.gmra.mxu0 %v1709
        %v1939 = vpop.f32.mrf.mxu0
        %v1940 = vadd.f32 %v1761, %v1939
        %v1941 = vpop.f32.mrf.mxu0
        %v1942 = vadd.f32 %v1761, %v1941
        %1943 = vmatmul.bf16.gmra.mxu0 %v1711
        %v1944 = vpop.f32.mrf.mxu0
        %v1945 = vadd.f32 %v1761, %v1944
        %v1946 = vpop.f32.mrf.mxu0
        %v1947 = vadd.f32 %v1761, %v1946
        %1948 = vmatmul.bf16.gmra.mxu0 %v1713
        %v1949 = vpop.f32.mrf.mxu0
        %v1950 = vadd.f32 %v1761, %v1949
        %v1951 = vpop.f32.mrf.mxu0
        %v1952 = vadd.f32 %v1761, %v1951
        %1953 = vmatmul.bf16.gmra.mxu0 %v1715
        %v1954 = vpop.f32.mrf.mxu0
        %v1955 = vadd.f32 %v1761, %v1954
        %v1956 = vpop.f32.mrf.mxu0
        %v1957 = vadd.f32 %v1761, %v1956
        %1958 = vmatmul.bf16.gmra.mxu0 %v1717
        %v1959 = vpop.f32.mrf.mxu0
        %v1960 = vadd.f32 %v1761, %v1959
        %v1961 = vpop.f32.mrf.mxu0
        %v1962 = vadd.f32 %v1761, %v1961
        %1963 = vmatmul.bf16.gmra.mxu0 %v1719
        %v1964 = vpop.f32.mrf.mxu0
        %v1965 = vadd.f32 %v1761, %v1964
        %v1966 = vpop.f32.mrf.mxu0
        %v1967 = vadd.f32 %v1761, %v1966
        %1968 = vmatmul.bf16.gmra.mxu0 %v1721
        %v1969 = vpop.f32.mrf.mxu0
        %v1970 = vadd.f32 %v1761, %v1969
        %v1971 = vpop.f32.mrf.mxu0
        %v1972 = vadd.f32 %v1761, %v1971
        %1973 = vmatmul.bf16.gmra.mxu0 %v1723
        %v1974 = vpop.f32.mrf.mxu0
        %v1975 = vadd.f32 %v1761, %v1974
        %v1976 = vpop.f32.mrf.mxu0
        %v1977 = vadd.f32 %v1761, %v1976
        %1978 = vmatmul.bf16.gmra.mxu0 %v1725
        %v1979 = vpop.f32.mrf.mxu0
        %v1980 = vadd.f32 %v1761, %v1979
        %v1981 = vpop.f32.mrf.mxu0
        %1982 = vdwg.mxu0
        %1983 = vmatpush.bf16.msra.mxu0 %v1891
        %1984 = vmatpush.bf16.msra.mxu0 %v1889
        %1985 = vmatpush.bf16.msra.mxu0 %v1887
        %1986 = vmatpush.bf16.msra.mxu0 %v1885
        %1987 = vmatpush.bf16.msra.mxu0 %v1883
        %1988 = vmatpush.bf16.msra.mxu0 %v1881
        %1989 = vmatpush.bf16.msra.mxu0 %v1879
        %1990 = vmatpush.bf16.msra.mxu0 %v1877
        %1991 = vmatmul.bf16.gmra.mxu0 %v1708
        %v1992 = vpop.f32.mrf.mxu0
        %v1993 = vadd.f32 %v1935, %v1992
        %v1994 = vpop.f32.mrf.mxu0
        %v1995 = vadd.f32 %v1937, %v1994
        %1996 = vmatmul.bf16.gmra.mxu0 %v1710
        %v1997 = vpop.f32.mrf.mxu0
        %v1998 = vadd.f32 %v1940, %v1997
        %v1999 = vpop.f32.mrf.mxu0
        %v2000 = vadd.f32 %v1942, %v1999
        %2001 = vmatmul.bf16.gmra.mxu0 %v1712
        %v2002 = vpop.f32.mrf.mxu0
        %v2003 = vadd.f32 %v1945, %v2002
        %v2004 = vpop.f32.mrf.mxu0
        %v2005 = vadd.f32 %v1947, %v2004
        %2006 = vmatmul.bf16.gmra.mxu0 %v1714
        %v2007 = vpop.f32.mrf.mxu0
        %v2008 = vadd.f32 %v1950, %v2007
        %v2009 = vpop.f32.mrf.mxu0
        %v2010 = vadd.f32 %v1952, %v2009
        %2011 = vmatmul.bf16.gmra.mxu0 %v1716
        %v2012 = vpop.f32.mrf.mxu0
        %v2013 = vadd.f32 %v1955, %v2012
        %v2014 = vpop.f32.mrf.mxu0
        %v2015 = vadd.f32 %v1957, %v2014
        %2016 = vmatmul.bf16.gmra.mxu0 %v1718
        %v2017 = vpop.f32.mrf.mxu0
        %v2018 = vadd.f32 %v1960, %v2017
        %v2019 = vpop.f32.mrf.mxu0
        %v2020 = vadd.f32 %v1962, %v2019
        %2021 = vmatmul.bf16.gmra.mxu0 %v1720
        %v2022 = vpop.f32.mrf.mxu0
        %v2023 = vadd.f32 %v1965, %v2022
        %v2024 = vpop.f32.mrf.mxu0
        %v2025 = vadd.f32 %v1967, %v2024
        %2026 = vmatmul.bf16.gmra.mxu0 %v1722
        %v2027 = vpop.f32.mrf.mxu0
        %v2028 = vadd.f32 %v1970, %v2027
        %v2029 = vpop.f32.mrf.mxu0
        %v2030 = vadd.f32 %v1972, %v2029
        %2031 = vmatmul.bf16.gmra.mxu0 %v1724
        %v2032 = vpop.f32.mrf.mxu0
        %v2033 = vadd.f32 %v1975, %v2032
        %v2034 = vpop.f32.mrf.mxu0
        %v2035 = vadd.f32 %v1977, %v2034
        %2036 = vmatmul.bf16.gmra.mxu0 %v1726
        %v2037 = vpop.f32.mrf.mxu0
        %v2038 = vadd.f32 %v1980, %v2037
        %v2039 = vpop.f32.mrf.mxu0
        %2040 = vdwg.mxu0
        %2041 = vmatpush.bf16.msra.mxu0 %v1876
        %2042 = vmatpush.bf16.msra.mxu0 %v1874
        %2043 = vmatpush.bf16.msra.mxu0 %v1872
        %2044 = vmatpush.bf16.msra.mxu0 %v1870
        %2045 = vmatpush.bf16.msra.mxu0 %v1868
        %2046 = vmatpush.bf16.msra.mxu0 %v1866
        %2047 = vmatpush.bf16.msra.mxu0 %v1864
        %2048 = vmatpush.bf16.msra.mxu0 %v1862
        %2049 = vmatmul.bf16.gmra.mxu0 %v1707
        %v2050 = vpop.f32.mrf.mxu0
        %v2051 = vadd.f32 %v1762, %v2050
        %v2052 = vpop.f32.mrf.mxu0
        %v2053 = vadd.f32 %v1762, %v2052
        %2054 = vmatmul.bf16.gmra.mxu0 %v1709
        %v2055 = vpop.f32.mrf.mxu0
        %v2056 = vadd.f32 %v1762, %v2055
        %v2057 = vpop.f32.mrf.mxu0
        %v2058 = vadd.f32 %v1762, %v2057
        %2059 = vmatmul.bf16.gmra.mxu0 %v1711
        %v2060 = vpop.f32.mrf.mxu0
        %v2061 = vadd.f32 %v1762, %v2060
        %v2062 = vpop.f32.mrf.mxu0
        %v2063 = vadd.f32 %v1762, %v2062
        %2064 = vmatmul.bf16.gmra.mxu0 %v1713
        %v2065 = vpop.f32.mrf.mxu0
        %v2066 = vadd.f32 %v1762, %v2065
        %v2067 = vpop.f32.mrf.mxu0
        %v2068 = vadd.f32 %v1762, %v2067
        %2069 = vmatmul.bf16.gmra.mxu0 %v1715
        %v2070 = vpop.f32.mrf.mxu0
        %v2071 = vadd.f32 %v1762, %v2070
        %v2072 = vpop.f32.mrf.mxu0
        %v2073 = vadd.f32 %v1762, %v2072
        %2074 = vmatmul.bf16.gmra.mxu0 %v1717
        %v2075 = vpop.f32.mrf.mxu0
        %v2076 = vadd.f32 %v1762, %v2075
        %v2077 = vpop.f32.mrf.mxu0
        %v2078 = vadd.f32 %v1762, %v2077
        %2079 = vmatmul.bf16.gmra.mxu0 %v1719
        %v2080 = vpop.f32.mrf.mxu0
        %v2081 = vadd.f32 %v1762, %v2080
        %v2082 = vpop.f32.mrf.mxu0
        %v2083 = vadd.f32 %v1762, %v2082
        %2084 = vmatmul.bf16.gmra.mxu0 %v1721
        %v2085 = vpop.f32.mrf.mxu0
        %v2086 = vadd.f32 %v1762, %v2085
        %v2087 = vpop.f32.mrf.mxu0
        %v2088 = vadd.f32 %v1762, %v2087
        %2089 = vmatmul.bf16.gmra.mxu0 %v1723
        %v2090 = vpop.f32.mrf.mxu0
        %v2091 = vadd.f32 %v1762, %v2090
        %v2092 = vpop.f32.mrf.mxu0
        %v2093 = vadd.f32 %v1762, %v2092
        %2094 = vmatmul.bf16.gmra.mxu0 %v1725
        %v2095 = vpop.f32.mrf.mxu0
        %v2096 = vadd.f32 %v1762, %v2095
        %v2097 = vpop.f32.mrf.mxu0
        %2098 = vdwg.mxu0
        %2099 = vmatpush.bf16.msra.mxu0 %v1892
        %2100 = vmatpush.bf16.msra.mxu0 %v1890
        %2101 = vmatpush.bf16.msra.mxu0 %v1888
        %2102 = vmatpush.bf16.msra.mxu0 %v1886
        %2103 = vmatpush.bf16.msra.mxu0 %v1884
        %2104 = vmatpush.bf16.msra.mxu0 %v1882
        %2105 = vmatpush.bf16.msra.mxu0 %v1880
        %2106 = vmatpush.bf16.msra.mxu0 %v1878
        %2107 = vmatmul.bf16.gmra.mxu0 %v1708
        %v2108 = vpop.f32.mrf.mxu0
        %v2109 = vadd.f32 %v2051, %v2108
        %v2110 = vpop.f32.mrf.mxu0
        %v2111 = vadd.f32 %v2053, %v2110
        %2112 = vmatmul.bf16.gmra.mxu0 %v1710
        %v2113 = vpop.f32.mrf.mxu0
        %v2114 = vadd.f32 %v2056, %v2113
        %v2115 = vpop.f32.mrf.mxu0
        %v2116 = vadd.f32 %v2058, %v2115
        %2117 = vmatmul.bf16.gmra.mxu0 %v1712
        %v2118 = vpop.f32.mrf.mxu0
        %v2119 = vadd.f32 %v2061, %v2118
        %v2120 = vpop.f32.mrf.mxu0
        %v2121 = vadd.f32 %v2063, %v2120
        %2122 = vmatmul.bf16.gmra.mxu0 %v1714
        %v2123 = vpop.f32.mrf.mxu0
        %v2124 = vadd.f32 %v2066, %v2123
        %v2125 = vpop.f32.mrf.mxu0
        %v2126 = vadd.f32 %v2068, %v2125
        %2127 = vmatmul.bf16.gmra.mxu0 %v1716
        %v2128 = vpop.f32.mrf.mxu0
        %v2129 = vadd.f32 %v2071, %v2128
        %v2130 = vpop.f32.mrf.mxu0
        %v2131 = vadd.f32 %v2073, %v2130
        %2132 = vmatmul.bf16.gmra.mxu0 %v1718
        %v2133 = vpop.f32.mrf.mxu0
        %v2134 = vadd.f32 %v2076, %v2133
        %v2135 = vpop.f32.mrf.mxu0
        %v2136 = vadd.f32 %v2078, %v2135
        %2137 = vmatmul.bf16.gmra.mxu0 %v1720
        %v2138 = vpop.f32.mrf.mxu0
        %v2139 = vadd.f32 %v2081, %v2138
        %v2140 = vpop.f32.mrf.mxu0
        %v2141 = vadd.f32 %v2083, %v2140
        %2142 = vmatmul.bf16.gmra.mxu0 %v1722
        %v2143 = vpop.f32.mrf.mxu0
        %v2144 = vadd.f32 %v2086, %v2143
        %v2145 = vpop.f32.mrf.mxu0
        %v2146 = vadd.f32 %v2088, %v2145
        %2147 = vmatmul.bf16.gmra.mxu0 %v1724
        %v2148 = vpop.f32.mrf.mxu0
        %v2149 = vadd.f32 %v2091, %v2148
        %v2150 = vpop.f32.mrf.mxu0
        %v2151 = vadd.f32 %v2093, %v2150
        %2152 = vmatmul.bf16.gmra.mxu0 %v1726
        %v2153 = vpop.f32.mrf.mxu0
        %v2154 = vadd.f32 %v2096, %v2153
        %v2155 = vpop.f32.mrf.mxu0
        %2156 = vdwg.mxu0
        %v2157 = vmax.f32 %v1993, 0.0
        %v2158 = vmax.f32 %v2109, 0.0
        %v2159 = vmax.f32 %v1995, 0.0
        %v2160 = vmax.f32 %v2111, 0.0
        %v2161 = vmax.f32 %v1998, 0.0
        %v2162 = vmax.f32 %v2114, 0.0
        %v2163 = vmax.f32 %v2000, 0.0
        %v2164 = vmax.f32 %v2116, 0.0
        %v2165 = vmax.f32 %v2003, 0.0
        %v2166 = vmax.f32 %v2119, 0.0
        %v2167 = vmax.f32 %v2005, 0.0
        %v2168 = vmax.f32 %v2121, 0.0
        %v2169 = vmax.f32 %v2008, 0.0
        %v2170 = vmax.f32 %v2124, 0.0
        %v2171 = vmax.f32 %v2010, 0.0
        %v2172 = vmax.f32 %v2126, 0.0
        %v2173 = vmax.f32 %v2013, 0.0
        %v2174 = vmax.f32 %v2129, 0.0
        %v2175 = vmax.f32 %v2015, 0.0
        %v2176 = vmax.f32 %v2131, 0.0
        %v2177 = vmax.f32 %v2018, 0.0
        %v2178 = vmax.f32 %v2134, 0.0
        %v2179 = vmax.f32 %v2020, 0.0
        %v2180 = vmax.f32 %v2136, 0.0
        %v2181 = vmax.f32 %v2023, 0.0
        %v2182 = vmax.f32 %v2139, 0.0
        %v2183 = vmax.f32 %v2025, 0.0
        %v2184 = vmax.f32 %v2141, 0.0
        %v2185 = vmax.f32 %v2028, 0.0
        %v2186 = vmax.f32 %v2144, 0.0
        %v2187 = vmax.f32 %v2030, 0.0
        %v2188 = vmax.f32 %v2146, 0.0
        %v2189 = vmax.f32 %v2033, 0.0
        %v2190 = vmax.f32 %v2149, 0.0
        %v2191 = vmax.f32 %v2035, 0.0
        %v2192 = vmax.f32 %v2151, 0.0
        %v2193 = vmax.f32 %v2038, 0.0
        %v2194 = vmax.f32 %v2154, 0.0
        %v2195 = vpack.c.bf16 %v2159, %v2157
        %v2196 = vpack.c.bf16 %v2160, %v2158
        %v2197 = vpack.c.bf16 %v2163, %v2161
        %v2198 = vpack.c.bf16 %v2164, %v2162
        %v2199 = vpack.c.bf16 %v2167, %v2165
        %v2200 = vpack.c.bf16 %v2168, %v2166
        %v2201 = vpack.c.bf16 %v2171, %v2169
        %v2202 = vpack.c.bf16 %v2172, %v2170
        %v2203 = vpack.c.bf16 %v2175, %v2173
        %v2204 = vpack.c.bf16 %v2176, %v2174
        %v2205 = vpack.c.bf16 %v2179, %v2177
        %v2206 = vpack.c.bf16 %v2180, %v2178
        %v2207 = vpack.c.bf16 %v2183, %v2181
        %v2208 = vpack.c.bf16 %v2184, %v2182
        %v2209 = vpack.c.bf16 %v2187, %v2185
        %v2210 = vpack.c.bf16 %v2188, %v2186
        %v2211 = vpack.c.bf16 %v2191, %v2189
        %v2212 = vpack.c.bf16 %v2192, %v2190
        %v2213 = vpack.c.bf16 %v2193, %v2193
        %v2214 = vpack.c.bf16 %v2194, %v2194
        %v2215 = vld [vmem:[#allocation7] sm:$0xf]
        %v2216 = vld [vmem:[#allocation7 + $0x4] sm:$0xf]
        %v2217 = vld [vmem:[#allocation7 + $0x8] sm:$0xf]
        %v2218 = vld [vmem:[#allocation7 + $0xc] sm:$0xf]
        %v2219 = vld [vmem:[#allocation7 + $0x10] sm:$0xf]
        %v2220 = vld [vmem:[#allocation7 + $0x14] sm:$0xf]
        %v2221 = vld [vmem:[#allocation7 + $0x18] sm:$0xf]
        %v2222 = vld [vmem:[#allocation7 + $0x1c] sm:$0xf]
        %v2223 = vld [vmem:[#allocation7 + $0x20] sm:$0xf]
        %v2224 = vld [vmem:[#allocation7 + $0x24] sm:$0xf]
        %v2225 = vld [vmem:[#allocation7 + $0x28] sm:$0xf]
        %v2226 = vld [vmem:[#allocation7 + $0x2c] sm:$0xf]
        %v2227 = vld [vmem:[#allocation7 + $0x30] sm:$0xf]
        %v2228 = vld [vmem:[#allocation7 + $0x34] sm:$0xf]
        %v2229 = vld [vmem:[#allocation7 + $0x38] sm:$0xf]
        %v2230 = vld [vmem:[#allocation7 + $0x3c] sm:$0xf]
        %v2231 = vld [vmem:[#allocation7 + $0x40] sm:$0xf]
        %v2232 = vld [vmem:[#allocation7 + $0x44] sm:$0xf]
        %v2233 = vld [vmem:[#allocation7 + $0x48] sm:$0xf]
        %v2234 = vld [vmem:[#allocation7 + $0x4c] sm:$0xf]
        %v2235 = vld [vmem:[#allocation7 + $0x50] sm:$0xf]
        %v2236 = vld [vmem:[#allocation7 + $0x54] sm:$0xf]
        %v2237 = vld [vmem:[#allocation7 + $0x58] sm:$0xf]
        %v2238 = vld [vmem:[#allocation7 + $0x5c] sm:$0xf]
        %v2239 = vld [vmem:[#allocation7 + $0x60] sm:$0xf]
        %v2240 = vld [vmem:[#allocation7 + $0x64] sm:$0xf]
        %v2241 = vld [vmem:[#allocation7 + $0x68] sm:$0xf]
        %v2242 = vld [vmem:[#allocation7 + $0x6c] sm:$0xf]
        %v2243 = vld [vmem:[#allocation7 + $0x70] sm:$0xf]
        %v2244 = vld [vmem:[#allocation7 + $0x74] sm:$0xf]
        %v2245 = vld [vmem:[#allocation7 + $0x78] sm:$0xf]
        %v2246 = vld [vmem:[#allocation7 + $0x7c] sm:$0xf]
        %v2247 = vld [vmem:[%s10] sm:$0x1]
        %v2249 = vperm.slane %v2247, 0
        %v2283 = vunpack.c.l.b16 %v2215
        %v2284 = vunpack.c.l.b16 %v2216
        %v2285 = vunpack.c.l.b16 %v2217
        %v2286 = vunpack.c.l.b16 %v2218
        %v2287 = vunpack.c.l.b16 %v2219
        %v2288 = vunpack.c.l.b16 %v2220
        %v2289 = vunpack.c.l.b16 %v2221
        %v2290 = vunpack.c.l.b16 %v2222
        %v2291 = vunpack.c.l.b16 %v2223
        %v2292 = vunpack.c.l.b16 %v2224
        %v2293 = vunpack.c.l.b16 %v2225
        %v2294 = vunpack.c.l.b16 %v2226
        %v2295 = vunpack.c.l.b16 %v2227
        %v2296 = vunpack.c.l.b16 %v2228
        %v2297 = vunpack.c.l.b16 %v2229
        %v2298 = vunpack.c.l.b16 %v2230
        %v2299 = vunpack.c.l.b16 %v2231
        %v2300 = vunpack.c.l.b16 %v2232
        %v2301 = vunpack.c.l.b16 %v2233
        %v2302 = vunpack.c.l.b16 %v2234
        %v2303 = vunpack.c.l.b16 %v2235
        %v2304 = vunpack.c.l.b16 %v2236
        %v2305 = vunpack.c.l.b16 %v2237
        %v2306 = vunpack.c.l.b16 %v2238
        %v2307 = vunpack.c.l.b16 %v2239
        %v2308 = vunpack.c.l.b16 %v2240
        %v2309 = vunpack.c.l.b16 %v2241
        %v2310 = vunpack.c.l.b16 %v2242
        %v2311 = vunpack.c.l.b16 %v2243
        %v2312 = vunpack.c.l.b16 %v2244
        %v2313 = vunpack.c.l.b16 %v2245
        %v2314 = vunpack.c.l.b16 %v2246
        %v2315 = vpack.c.b16 %v2284, %v2283
        %v2316 = vpack.c.b16 %v2286, %v2285
        %v2317 = vpack.c.b16 %v2288, %v2287
        %v2318 = vpack.c.b16 %v2290, %v2289
        %v2319 = vpack.c.b16 %v2292, %v2291
        %v2320 = vpack.c.b16 %v2294, %v2293
        %v2321 = vpack.c.b16 %v2296, %v2295
        %v2322 = vpack.c.b16 %v2298, %v2297
        %v2323 = vpack.c.b16 %v2300, %v2299
        %v2324 = vpack.c.b16 %v2302, %v2301
        %v2325 = vpack.c.b16 %v2304, %v2303
        %v2326 = vpack.c.b16 %v2306, %v2305
        %v2327 = vpack.c.b16 %v2308, %v2307
        %v2328 = vpack.c.b16 %v2310, %v2309
        %v2329 = vpack.c.b16 %v2312, %v2311
        %v2330 = vpack.c.b16 %v2314, %v2313
        %2347 = vmatpush.bf16.msra.mxu0 %v2322
        %2348 = vmatpush.bf16.msra.mxu0 %v2321
        %2349 = vmatpush.bf16.msra.mxu0 %v2320
        %2350 = vmatpush.bf16.msra.mxu0 %v2319
        %2351 = vmatpush.bf16.msra.mxu0 %v2318
        %2352 = vmatpush.bf16.msra.mxu0 %v2317
        %2353 = vmatpush.bf16.msra.mxu0 %v2316
        %2354 = vmatpush.bf16.msra.mxu0 %v2315
        %2355 = vmatmul.bf16.gmra.mxu0 %v2195
        %v2356 = vpop.f32.mrf.mxu0
        %v2357 = vadd.f32 %v2249, %v2356
        %v2358 = vpop.f32.mrf.mxu0
        %v2359 = vadd.f32 %v2249, %v2358
        %2360 = vmatmul.bf16.gmra.mxu0 %v2197
        %v2361 = vpop.f32.mrf.mxu0
        %v2362 = vadd.f32 %v2249, %v2361
        %v2363 = vpop.f32.mrf.mxu0
        %v2364 = vadd.f32 %v2249, %v2363
        %2365 = vmatmul.bf16.gmra.mxu0 %v2199
        %v2366 = vpop.f32.mrf.mxu0
        %v2367 = vadd.f32 %v2249, %v2366
        %v2368 = vpop.f32.mrf.mxu0
        %v2369 = vadd.f32 %v2249, %v2368
        %2370 = vmatmul.bf16.gmra.mxu0 %v2201
        %v2371 = vpop.f32.mrf.mxu0
        %v2372 = vadd.f32 %v2249, %v2371
        %v2373 = vpop.f32.mrf.mxu0
        %v2374 = vadd.f32 %v2249, %v2373
        %2375 = vmatmul.bf16.gmra.mxu0 %v2203
        %v2376 = vpop.f32.mrf.mxu0
        %v2377 = vadd.f32 %v2249, %v2376
        %v2378 = vpop.f32.mrf.mxu0
        %v2379 = vadd.f32 %v2249, %v2378
        %2380 = vmatmul.bf16.gmra.mxu0 %v2205
        %v2381 = vpop.f32.mrf.mxu0
        %v2382 = vadd.f32 %v2249, %v2381
        %v2383 = vpop.f32.mrf.mxu0
        %v2384 = vadd.f32 %v2249, %v2383
        %2385 = vmatmul.bf16.gmra.mxu0 %v2207
        %v2386 = vpop.f32.mrf.mxu0
        %v2387 = vadd.f32 %v2249, %v2386
        %v2388 = vpop.f32.mrf.mxu0
        %v2389 = vadd.f32 %v2249, %v2388
        %2390 = vmatmul.bf16.gmra.mxu0 %v2209
        %v2391 = vpop.f32.mrf.mxu0
        %v2392 = vadd.f32 %v2249, %v2391
        %v2393 = vpop.f32.mrf.mxu0
        %v2394 = vadd.f32 %v2249, %v2393
        %2395 = vmatmul.bf16.gmra.mxu0 %v2211
        %v2396 = vpop.f32.mrf.mxu0
        %v2397 = vadd.f32 %v2249, %v2396
        %v2398 = vpop.f32.mrf.mxu0
        %v2399 = vadd.f32 %v2249, %v2398
        %2400 = vmatmul.bf16.gmra.mxu0 %v2213
        %v2401 = vpop.f32.mrf.mxu0
        %v2402 = vadd.f32 %v2249, %v2401
        %v2403 = vpop.f32.mrf.mxu0
        %2404 = vdwg.mxu0
        %2405 = vmatpush.bf16.msra.mxu0 %v2330
        %2406 = vmatpush.bf16.msra.mxu0 %v2329
        %2407 = vmatpush.bf16.msra.mxu0 %v2328
        %2408 = vmatpush.bf16.msra.mxu0 %v2327
        %2409 = vmatpush.bf16.msra.mxu0 %v2326
        %2410 = vmatpush.bf16.msra.mxu0 %v2325
        %2411 = vmatpush.bf16.msra.mxu0 %v2324
        %2412 = vmatpush.bf16.msra.mxu0 %v2323
        %2413 = vmatmul.bf16.gmra.mxu0 %v2196
        %v2414 = vpop.f32.mrf.mxu0
        %v2415 = vadd.f32 %v2357, %v2414
        %v2416 = vpop.f32.mrf.mxu0
        %v2417 = vadd.f32 %v2359, %v2416
        %2418 = vmatmul.bf16.gmra.mxu0 %v2198
        %v2419 = vpop.f32.mrf.mxu0
        %v2420 = vadd.f32 %v2362, %v2419
        %v2421 = vpop.f32.mrf.mxu0
        %v2422 = vadd.f32 %v2364, %v2421
        %2423 = vmatmul.bf16.gmra.mxu0 %v2200
        %v2424 = vpop.f32.mrf.mxu0
        %v2425 = vadd.f32 %v2367, %v2424
        %v2426 = vpop.f32.mrf.mxu0
        %v2427 = vadd.f32 %v2369, %v2426
        %2428 = vmatmul.bf16.gmra.mxu0 %v2202
        %v2429 = vpop.f32.mrf.mxu0
        %v2430 = vadd.f32 %v2372, %v2429
        %v2431 = vpop.f32.mrf.mxu0
        %v2432 = vadd.f32 %v2374, %v2431
        %2433 = vmatmul.bf16.gmra.mxu0 %v2204
        %v2434 = vpop.f32.mrf.mxu0
        %v2435 = vadd.f32 %v2377, %v2434
        %v2436 = vpop.f32.mrf.mxu0
        %v2437 = vadd.f32 %v2379, %v2436
        %2438 = vmatmul.bf16.gmra.mxu0 %v2206
        %v2439 = vpop.f32.mrf.mxu0
        %v2440 = vadd.f32 %v2382, %v2439
        %v2441 = vpop.f32.mrf.mxu0
        %v2442 = vadd.f32 %v2384, %v2441
        %2443 = vmatmul.bf16.gmra.mxu0 %v2208
        %v2444 = vpop.f32.mrf.mxu0
        %v2445 = vadd.f32 %v2387, %v2444
        %v2446 = vpop.f32.mrf.mxu0
        %v2447 = vadd.f32 %v2389, %v2446
        %2448 = vmatmul.bf16.gmra.mxu0 %v2210
        %v2449 = vpop.f32.mrf.mxu0
        %v2450 = vadd.f32 %v2392, %v2449
        %v2451 = vpop.f32.mrf.mxu0
        %v2452 = vadd.f32 %v2394, %v2451
        %2453 = vmatmul.bf16.gmra.mxu0 %v2212
        %v2454 = vpop.f32.mrf.mxu0
        %v2455 = vadd.f32 %v2397, %v2454
        %v2456 = vpop.f32.mrf.mxu0
        %v2457 = vadd.f32 %v2399, %v2456
        %2458 = vmatmul.bf16.gmra.mxu0 %v2214
        %v2459 = vpop.f32.mrf.mxu0
        %v2460 = vadd.f32 %v2402, %v2459
        %v2461 = vpop.f32.mrf.mxu0
        %2462 = vdwg.mxu0
        %2463 = vst [vmem:[%s430] sm:$0xff] %v2415
        %2464 = vst [vmem:[%s430 + $0x8] sm:$0xff] %v2417
        %2465 = vst [vmem:[%s430 + $0x10] sm:$0xff] %v2420
        %2466 = vst [vmem:[%s430 + $0x18] sm:$0xff] %v2422
        %2467 = vst [vmem:[%s430 + $0x20] sm:$0xff] %v2425
        %2468 = vst [vmem:[%s430 + $0x28] sm:$0xff] %v2427
        %2469 = vst [vmem:[%s430 + $0x30] sm:$0xff] %v2430
        %2470 = vst [vmem:[%s430 + $0x38] sm:$0xff] %v2432
        %2471 = vst [vmem:[%s430 + $0x40] sm:$0xff] %v2435
        %2472 = vst [vmem:[%s430 + $0x48] sm:$0xff] %v2437
        %2473 = vst [vmem:[%s430 + $0x50] sm:$0xff] %v2440
        %2474 = vst [vmem:[%s430 + $0x58] sm:$0xff] %v2442
        %2475 = vst [vmem:[%s430 + $0x60] sm:$0xff] %v2445
        %2476 = vst [vmem:[%s430 + $0x68] sm:$0xff] %v2447
        %2477 = vst [vmem:[%s430 + $0x70] sm:$0xff] %v2450
        %2478 = vst [vmem:[%s430 + $0x78] sm:$0xff] %v2452
        %2479 = vst [vmem:[%s430 + $0x80] sm:$0xff] %v2455
        %2480 = vst [vmem:[%s430 + $0x88] sm:$0xff] %v2457
        %2481 = vst [vmem:[%s430 + $0x90] sm:$0xff] %v2460
        %s2482 = sand.u32 %s271, 1
        %s2483 = scalar_lea.sflag [#allocation4], %s2482
        %s2484 = sand.u32 %s271, 1
        %s2485 = smul.addr %s2484, 152
        %s2486 = scalar_lea.vmem [#allocation8], %s2485
        // Predicated region
        $region77: #{tpu_custom_call.1} parent=63 // pred_check
          %p2487 = pneg %p281
        $region78: #{tpu_custom_call.1} parent=63 // pred_check_branch
          %2489 = sbr.rel (%p2487) target = $region80
        $region79: #{tpu_custom_call.1} parent=63 // pred_region
          %s2490 = smul.u32 19, %s27
          %2492 = vsyncadd %s2483, 0
          %s2493 = smul.addr %s2490, 8
          %s2494 = scalar_lea.hbm %s11, %s2493
          %s2495 = sshll.u32 %s2486, 4
          %s2496 = int_to_ptr.vmem [resolvable:$true] %s2495
          %s2497 = sshll.u32 %s2494, 4
          %s2498 = int_to_ptr.hbm [resolvable:$true] %s2497
          %2503 = dma.vmem_to_hbm [thread:$0]  %s2496, 2432, %s2498, %s2483, 128, 128, 8
        $region80: #{tpu_custom_call.1} parent=63 // pred_fallthru
          _
      $region64: #{tpu_custom_call.1} parent=5 // pred_fallthru
        _
      %p2504 = scmp.le.s32.totalorder 2, %s22
      // Predicated region
      $region81: #{tpu_custom_call.1} parent=5 // pred_check
        %p2505 = pneg %p2504
      $region82: #{tpu_custom_call.1} parent=5 // pred_check_branch
        %2507 = sbr.rel (%p2505) target = $region84
      $region83: #{tpu_custom_call.1} parent=5 // pred_region
        %s2508 = ssub.s32 %s22, 2
        // Predicated region
        $region85: #{tpu_custom_call.1} parent=83 // pred_check
          %p2509 = pneg %p287
        $region86: #{tpu_custom_call.1} parent=83 // pred_check_branch
          %2511 = sbr.rel (%p2509) target = $region88
        $region87: #{tpu_custom_call.1} parent=83 // pred_region
          %s2512 = sand.u32 %s272, 1
          %s2513 = scalar_lea.sflag [#allocation4], %s2512
          %s2514 = sand.u32 %s272, 1
          %s2515 = smul.addr %s2514, 152
          %s2516 = scalar_lea.vmem [#allocation8], %s2515
          %2518 = dma.done %s2513, 2432
        $region88: #{tpu_custom_call.1} parent=83 // pred_fallthru
          _
      $region84: #{tpu_custom_call.1} parent=5 // pred_fallthru
        _
    $region6: #{tpu_custom_call.1} parent=1 // loop_footer
      %s26 = sadd.s32 1, %s22
    $region7: #{tpu_custom_call.1} parent=1 // loop_footer_branch
      %21 = sbr.rel target = $region3
    $region8: #{tpu_custom_call.1} parent=1 // loop_exit
      _
    %2519 = vsyncpa [#allocation3], 1
    %s2520 = scalar_lea.sflag [#allocation3], 1
    %2521 = vsyncpa %s2520, 1
    %2522 = vsyncpa [#allocation6], 1
    %2523 = vsyncpa [#allocation4], 1
    %s2524 = scalar_lea.sflag [#allocation4], 1
    %2525 = vsyncpa %s2524, 1

</llo_original>
